<compile_context>
chip_gen: v7x
topology: tpu7x:2x2x1
jax: 0.10.0
libtpu: 0.0.40
codegen_flags: <defaults>
</compile_context>

<pallas_src>
import functools

import jax
import jax.numpy as jnp
from jax.experimental import pallas as pl
from jax.experimental.pallas import tpu as pltpu

# Small synthetic config (tiny BERT-style encoder). H is a multiple of 128 so
# the lane dimension is dense.
B, S, H, F, VOCAB = 2, 8, 128, 256, 50
NUM_LAYERS = 2
DROP_P = 0.3
KEEP_SCALE = 1.0 / (1.0 - DROP_P)
DROP_THRESHOLD = int(DROP_P * (1 << 32))  # drop iff uint32 bits < threshold

# Rows of the packed per-layer (NUM_LAYERS, 9, H) vector table.
(ROW_BQ, ROW_BK, ROW_BV, ROW_BO, ROW_B2,
 ROW_LN1G, ROW_LN1B, ROW_LN2G, ROW_LN2B) = range(9)


# ----------------------------------------------------------------------------
# Fused kernel: one grid step == one encoder (query or text).
#   x_ref      : (1, B*S, H)            f32   token embeddings
#   w_attn_ref : (1, NUM_LAYERS*4, H,H) bf16  [wq, wk, wv, wo] per layer
#   w1_ref     : (1, NUM_LAYERS, H, F)  bf16  FFN up-proj
#   w2_ref     : (1, NUM_LAYERS, F, H)  bf16  FFN down-proj
#   b1_ref     : (1, NUM_LAYERS, 1, F)  f32   FFN up-proj bias
#   vec_ref    : (1, NUM_LAYERS, 9, H)  f32   packed biases / LN params
#   rbits_ref  : (1, B, H)              u32   dropout random bits
#   o_ref      : (1, B, H)              f32   pooled + dropout embeddings
# ----------------------------------------------------------------------------
def dual_encoder_kernel(x_ref, w_attn_ref, w1_ref, w2_ref, b1_ref, vec_ref,
                        rbits_ref, o_ref, *, training):
    h = x_ref[0].astype(jnp.float32)                       # (B*S, H)
    scale = 1.0 / float(H) ** 0.5

    for l in range(NUM_LAYERS):
        wq = w_attn_ref[0, 4 * l + 0]                      # (H, H) bf16
        wk = w_attn_ref[0, 4 * l + 1]
        wv = w_attn_ref[0, 4 * l + 2]
        wo = w_attn_ref[0, 4 * l + 3]

        bq = vec_ref[0, l, ROW_BQ:ROW_BQ + 1, :]           # (1, H) f32
        bk = vec_ref[0, l, ROW_BK:ROW_BK + 1, :]
        bv = vec_ref[0, l, ROW_BV:ROW_BV + 1, :]
        bo = vec_ref[0, l, ROW_BO:ROW_BO + 1, :]
        b2 = vec_ref[0, l, ROW_B2:ROW_B2 + 1, :]
        ln1_g = vec_ref[0, l, ROW_LN1G:ROW_LN1G + 1, :]
        ln1_b = vec_ref[0, l, ROW_LN1B:ROW_LN1B + 1, :]
        ln2_g = vec_ref[0, l, ROW_LN2G:ROW_LN2G + 1, :]
        ln2_b = vec_ref[0, l, ROW_LN2B:ROW_LN2B + 1, :]

        # ---- Self-attention (single head), bf16 MXU operands, f32 accum ----
        xb = h.astype(jnp.bfloat16)
        q = jnp.dot(xb, wq, preferred_element_type=jnp.float32) + bq
        k = jnp.dot(xb, wk, preferred_element_type=jnp.float32) + bk
        v = jnp.dot(xb, wv, preferred_element_type=jnp.float32) + bv

        q3 = q.reshape(B, S, H).astype(jnp.bfloat16)
        k3 = k.reshape(B, S, H).astype(jnp.bfloat16)
        v3 = v.reshape(B, S, H).astype(jnp.bfloat16)

        # Contraction over K's last dim directly (no transpose).
        scores = jnp.einsum("bqd,bkd->bqk", q3, k3,
                            preferred_element_type=jnp.float32) * scale
        scores = scores - jnp.max(scores, axis=-1, keepdims=True)
        p = jnp.exp(scores)
        p = p / jnp.sum(p, axis=-1, keepdims=True)
        ctx = jnp.einsum("bqk,bkd->bqd", p.astype(jnp.bfloat16), v3,
                         preferred_element_type=jnp.float32)
        attn = ctx.reshape(B * S, H)
        attn = jnp.dot(attn.astype(jnp.bfloat16), wo,
                       preferred_element_type=jnp.float32) + bo

        # ---- Residual + LayerNorm 1 (f32) ----
        r = h + attn
        mu = jnp.mean(r, axis=-1, keepdims=True)
        var = jnp.mean((r - mu) ** 2, axis=-1, keepdims=True)
        r = (r - mu) * jax.lax.rsqrt(var + 1e-5) * ln1_g + ln1_b

        # ---- Feed-forward ----
        f = jnp.dot(r.astype(jnp.bfloat16), w1_ref[0, l],
                    preferred_element_type=jnp.float32) + b1_ref[0, l]
        # TODO(synk): PyTorch/BERT GELU is exact-erf; erf has no guaranteed
        # Mosaic lowering, so the tanh approximation is used here.
        f = jax.nn.gelu(f, approximate=True)
        f = jnp.dot(f.astype(jnp.bfloat16), w2_ref[0, l],
                    preferred_element_type=jnp.float32) + b2

        # ---- Residual + LayerNorm 2 (f32) ----
        r2 = r + f
        mu2 = jnp.mean(r2, axis=-1, keepdims=True)
        var2 = jnp.mean((r2 - mu2) ** 2, axis=-1, keepdims=True)
        h = (r2 - mu2) * jax.lax.rsqrt(var2 + 1e-5) * ln2_g + ln2_b

    # ---- torch.max(hidden, dim=1) + Dropout(0.3) epilogue ----
    pooled = jnp.max(h.reshape(B, S, H), axis=1)           # (B, H)
    if training:
        bits = rbits_ref[0]                                # (B, H) uint32
        keep = bits >= jnp.uint32(DROP_THRESHOLD)
        pooled = jnp.where(keep, pooled * KEEP_SCALE, 0.0)

    o_ref[0] = pooled.astype(o_ref.dtype)


# ----------------------------------------------------------------------------
# Wrapper: one pallas_call for BOTH encoders (grid axis 0 = encoder index,
# "parallel" -> dual-TensorCore on v7x).
# ----------------------------------------------------------------------------
def targeted_sentiment_encoder_forward(query_ids, sentence_ids,
                                       q_params, t_params, dropout_key,
                                       training=True):
    # Embedding lookup (gather) stays in plain JAX.
    x_q = jnp.take(q_params["embed"], query_ids, axis=0).reshape(B * S, H)
    x_s = jnp.take(t_params["embed"], sentence_ids, axis=0).reshape(B * S, H)
    x = jnp.stack([x_q, x_s])                              # (2, B*S, H)

    def stack(name):
        return jnp.stack([q_params[name], t_params[name]])

    w_attn = stack("w_attn")                               # (2, L*4, H, H) bf16
    w1 = stack("w1")                                       # (2, L, H, F)  bf16
    w2 = stack("w2")                                       # (2, L, F, H)  bf16
    b1 = stack("b1")                                       # (2, L, 1, F)  f32
    vec = stack("vec")                                     # (2, L, 9, H)  f32

    # Fresh per-call dropout randomness (matches nn.Dropout across steps).
    rbits = jax.random.bits(dropout_key, (2, B, H), dtype=jnp.uint32)

    embeds = pl.pallas_call(
        functools.partial(dual_encoder_kernel, training=training),
        out_shape=jax.ShapeDtypeStruct((2, B, H), jnp.float32),
        grid=(2,),
        in_specs=[
            pl.BlockSpec((1, B * S, H), lambda e: (e, 0, 0)),
            pl.BlockSpec((1, NUM_LAYERS * 4, H, H), lambda e: (e, 0, 0, 0)),
            pl.BlockSpec((1, NUM_LAYERS, H, F), lambda e: (e, 0, 0, 0)),
            pl.BlockSpec((1, NUM_LAYERS, F, H), lambda e: (e, 0, 0, 0)),
            pl.BlockSpec((1, NUM_LAYERS, 1, F), lambda e: (e, 0, 0, 0)),
            pl.BlockSpec((1, NUM_LAYERS, 9, H), lambda e: (e, 0, 0, 0)),
            pl.BlockSpec((1, B, H), lambda e: (e, 0, 0)),
        ],
        out_specs=pl.BlockSpec((1, B, H), lambda e: (e, 0, 0)),
        compiler_params=pltpu.CompilerParams(
            dimension_semantics=("parallel",)),
    )(x, w_attn, w1, w2, b1, vec, rbits)

    return embeds[0], embeds[1]


# ----------------------------------------------------------------------------
# Deterministic synthetic parameter init (stand-in for a pretrained encoder).
# ----------------------------------------------------------------------------
def init_encoder_params(key):
    def w(k, shape):
        return 0.02 * jax.random.normal(k, shape, jnp.float32)

    k_attn, k_w1, k_w2, k_emb = jax.random.split(key, 4)
    w_attn = w(k_attn, (NUM_LAYERS * 4, H, H)).astype(jnp.bfloat16)
    w1 = w(k_w1, (NUM_LAYERS, H, F)).astype(jnp.bfloat16)
    w2 = w(k_w2, (NUM_LAYERS, F, H)).astype(jnp.bfloat16)
    b1 = jnp.zeros((NUM_LAYERS, 1, F), jnp.float32)
    vec = jnp.zeros((NUM_LAYERS, 9, H), jnp.float32)
    vec = vec.at[:, ROW_LN1G].set(1.0).at[:, ROW_LN2G].set(1.0)
    embed = w(k_emb, (VOCAB, H))
    return {"embed": embed, "w_attn": w_attn, "w1": w1, "w2": w2,
            "b1": b1, "vec": vec}


if __name__ == "__main__":
    key = jax.random.PRNGKey(0)
    k_q, k_t, k_ids_q, k_ids_s, k_drop = jax.random.split(key, 5)

    q_params = init_encoder_params(k_q)   # query_encoder weights
    t_params = init_encoder_params(k_t)   # text_encoder weights

    # TODO(synk): the HuggingFace tokenizer has no Pallas equivalent;
    # inputs are pre-tokenized integer token-id tensors.
    query_ids = jax.random.randint(k_ids_q, (B, S), 0, VOCAB, dtype=jnp.int32)
    sentence_ids = jax.random.randint(k_ids_s, (B, S), 0, VOCAB, dtype=jnp.int32)

    query_embeds, sentence_embeds = targeted_sentiment_encoder_forward(
        query_ids, sentence_ids, q_params, t_params,
        dropout_key=k_drop, training=True)

    jax.block_until_ready((query_embeds, sentence_embeds))
    assert query_embeds.shape == (B, H) and sentence_embeds.shape == (B, H)
    assert bool(jnp.all(jnp.isfinite(query_embeds)))
    assert bool(jnp.all(jnp.isfinite(sentence_embeds)))
    print("KERNEL_OK")
</pallas_src>

<mosaic_0001>
module attributes {stable_mosaic.version = 11 : i64} {
  func.func @dual_encoder_kernel(%arg0: i32, %arg1: memref<1x16x128xf32, #tpu.memory_space<vmem>>, %arg2: memref<1x8x128x128xbf16, #tpu.memory_space<vmem>>, %arg3: memref<1x2x128x256xbf16, #tpu.memory_space<vmem>>, %arg4: memref<1x2x256x128xbf16, #tpu.memory_space<vmem>>, %arg5: memref<1x2x1x256xf32, #tpu.memory_space<vmem>>, %arg6: memref<1x2x9x128xf32, #tpu.memory_space<vmem>>, %arg7: memref<1x2x128xi32, #tpu.memory_space<vmem>>, %arg8: memref<1x2x128xf32, #tpu.memory_space<vmem>>) attributes {dimension_semantics = [#tpu.dimension_semantics<parallel>], iteration_bounds = array<i64: 2>, scalar_prefetch = 0 : i64, scratch_operands = 0 : i64, tpu.core_type = #tpu.core_type<tc>, window_params = [{transform_indices = @transform_0, window_bounds = array<i64: 1, 16, 128>}, {transform_indices = @transform_1, window_bounds = array<i64: 1, 8, 128, 128>}, {transform_indices = @transform_2, window_bounds = array<i64: 1, 2, 128, 256>}, {transform_indices = @transform_3, window_bounds = array<i64: 1, 2, 256, 128>}, {transform_indices = @transform_4, window_bounds = array<i64: 1, 2, 1, 256>}, {transform_indices = @transform_5, window_bounds = array<i64: 1, 2, 9, 128>}, {transform_indices = @transform_6, window_bounds = array<i64: 1, 2, 128>}, {transform_indices = @transform_7, window_bounds = array<i64: 1, 2, 128>}]} {
    %c0 = arith.constant 0 : index
    %c0_0 = arith.constant 0 : index
    %c0_1 = arith.constant 0 : index
    %0 = vector.load %arg1[%c0, %c0_0, %c0_1] : memref<1x16x128xf32, #tpu.memory_space<vmem>>, vector<1x16x128xf32>
    %1 = vector.shape_cast %0 : vector<1x16x128xf32> to vector<16x128xf32>
    %c0_2 = arith.constant 0 : index
    %c0_3 = arith.constant 0 : index
    %c0_4 = arith.constant 0 : index
    %c0_5 = arith.constant 0 : index
    %2 = vector.load %arg2[%c0_2, %c0_3, %c0_4, %c0_5] : memref<1x8x128x128xbf16, #tpu.memory_space<vmem>>, vector<1x1x128x128xbf16>
    %3 = vector.shape_cast %2 : vector<1x1x128x128xbf16> to vector<128x128xbf16>
    %c0_6 = arith.constant 0 : index
    %c1 = arith.constant 1 : index
    %c0_7 = arith.constant 0 : index
    %c0_8 = arith.constant 0 : index
    %4 = vector.load %arg2[%c0_6, %c1, %c0_7, %c0_8] : memref<1x8x128x128xbf16, #tpu.memory_space<vmem>>, vector<1x1x128x128xbf16>
    %5 = vector.shape_cast %4 : vector<1x1x128x128xbf16> to vector<128x128xbf16>
    %c0_9 = arith.constant 0 : index
    %c2 = arith.constant 2 : index
    %c0_10 = arith.constant 0 : index
    %c0_11 = arith.constant 0 : index
    %6 = vector.load %arg2[%c0_9, %c2, %c0_10, %c0_11] : memref<1x8x128x128xbf16, #tpu.memory_space<vmem>>, vector<1x1x128x128xbf16>
    %7 = vector.shape_cast %6 : vector<1x1x128x128xbf16> to vector<128x128xbf16>
    %c0_12 = arith.constant 0 : index
    %c3 = arith.constant 3 : index
    %c0_13 = arith.constant 0 : index
    %c0_14 = arith.constant 0 : index
    %8 = vector.load %arg2[%c0_12, %c3, %c0_13, %c0_14] : memref<1x8x128x128xbf16, #tpu.memory_space<vmem>>, vector<1x1x128x128xbf16>
    %9 = vector.shape_cast %8 : vector<1x1x128x128xbf16> to vector<128x128xbf16>
    %c0_15 = arith.constant 0 : index
    %c0_16 = arith.constant 0 : index
    %c0_17 = arith.constant 0 : index
    %c0_18 = arith.constant 0 : index
    %10 = vector.load %arg6[%c0_15, %c0_16, %c0_17, %c0_18] : memref<1x2x9x128xf32, #tpu.memory_space<vmem>>, vector<1x1x1x128xf32>
    %11 = vector.shape_cast %10 : vector<1x1x1x128xf32> to vector<1x128xf32>
    %c0_19 = arith.constant 0 : index
    %c0_20 = arith.constant 0 : index
    %c1_21 = arith.constant 1 : index
    %c0_22 = arith.constant 0 : index
    %12 = vector.load %arg6[%c0_19, %c0_20, %c1_21, %c0_22] : memref<1x2x9x128xf32, #tpu.memory_space<vmem>>, vector<1x1x1x128xf32>
    %13 = vector.shape_cast %12 : vector<1x1x1x128xf32> to vector<1x128xf32>
    %c0_23 = arith.constant 0 : index
    %c0_24 = arith.constant 0 : index
    %c2_25 = arith.constant 2 : index
    %c0_26 = arith.constant 0 : index
    %14 = vector.load %arg6[%c0_23, %c0_24, %c2_25, %c0_26] : memref<1x2x9x128xf32, #tpu.memory_space<vmem>>, vector<1x1x1x128xf32>
    %15 = vector.shape_cast %14 : vector<1x1x1x128xf32> to vector<1x128xf32>
    %c0_27 = arith.constant 0 : index
    %c0_28 = arith.constant 0 : index
    %c3_29 = arith.constant 3 : index
    %c0_30 = arith.constant 0 : index
    %16 = vector.load %arg6[%c0_27, %c0_28, %c3_29, %c0_30] : memref<1x2x9x128xf32, #tpu.memory_space<vmem>>, vector<1x1x1x128xf32>
    %17 = vector.shape_cast %16 : vector<1x1x1x128xf32> to vector<1x128xf32>
    %c0_31 = arith.constant 0 : index
    %c0_32 = arith.constant 0 : index
    %c4 = arith.constant 4 : index
    %c0_33 = arith.constant 0 : index
    %18 = vector.load %arg6[%c0_31, %c0_32, %c4, %c0_33] : memref<1x2x9x128xf32, #tpu.memory_space<vmem>>, vector<1x1x1x128xf32>
    %19 = vector.shape_cast %18 : vector<1x1x1x128xf32> to vector<1x128xf32>
    %c0_34 = arith.constant 0 : index
    %c0_35 = arith.constant 0 : index
    %c5 = arith.constant 5 : index
    %c0_36 = arith.constant 0 : index
    %20 = vector.load %arg6[%c0_34, %c0_35, %c5, %c0_36] : memref<1x2x9x128xf32, #tpu.memory_space<vmem>>, vector<1x1x1x128xf32>
    %21 = vector.shape_cast %20 : vector<1x1x1x128xf32> to vector<1x128xf32>
    %c0_37 = arith.constant 0 : index
    %c0_38 = arith.constant 0 : index
    %c6 = arith.constant 6 : index
    %c0_39 = arith.constant 0 : index
    %22 = vector.load %arg6[%c0_37, %c0_38, %c6, %c0_39] : memref<1x2x9x128xf32, #tpu.memory_space<vmem>>, vector<1x1x1x128xf32>
    %23 = vector.shape_cast %22 : vector<1x1x1x128xf32> to vector<1x128xf32>
    %c0_40 = arith.constant 0 : index
    %c0_41 = arith.constant 0 : index
    %c7 = arith.constant 7 : index
    %c0_42 = arith.constant 0 : index
    %24 = vector.load %arg6[%c0_40, %c0_41, %c7, %c0_42] : memref<1x2x9x128xf32, #tpu.memory_space<vmem>>, vector<1x1x1x128xf32>
    %25 = vector.shape_cast %24 : vector<1x1x1x128xf32> to vector<1x128xf32>
    %c0_43 = arith.constant 0 : index
    %c0_44 = arith.constant 0 : index
    %c8 = arith.constant 8 : index
    %c0_45 = arith.constant 0 : index
    %26 = vector.load %arg6[%c0_43, %c0_44, %c8, %c0_45] : memref<1x2x9x128xf32, #tpu.memory_space<vmem>>, vector<1x1x1x128xf32>
    %27 = vector.shape_cast %26 : vector<1x1x1x128xf32> to vector<1x128xf32>
    %28 = arith.truncf %1 : vector<16x128xf32> to vector<16x128xbf16>
    %cst = arith.constant dense<0.000000e+00> : vector<16x128xf32>
    %29 = tpu.matmul %28, %3, %cst {dimension_numbers = #tpu.dot_dimension_numbers<[1], [0], [0], [1], [0, 0, 1, 1], [], []>} : vector<16x128xbf16>, vector<128x128xbf16>, vector<16x128xf32> -> vector<16x128xf32>
    %30 = vector.broadcast %11 : vector<1x128xf32> to vector<16x128xf32>
    %31 = arith.addf %29, %30 : vector<16x128xf32>
    %cst_46 = arith.constant dense<0.000000e+00> : vector<16x128xf32>
    %32 = tpu.matmul %28, %5, %cst_46 {dimension_numbers = #tpu.dot_dimension_numbers<[1], [0], [0], [1], [0, 0, 1, 1], [], []>} : vector<16x128xbf16>, vector<128x128xbf16>, vector<16x128xf32> -> vector<16x128xf32>
    %33 = vector.broadcast %13 : vector<1x128xf32> to vector<16x128xf32>
    %34 = arith.addf %32, %33 : vector<16x128xf32>
    %cst_47 = arith.constant dense<0.000000e+00> : vector<16x128xf32>
    %35 = tpu.matmul %28, %7, %cst_47 {dimension_numbers = #tpu.dot_dimension_numbers<[1], [0], [0], [1], [0, 0, 1, 1], [], []>} : vector<16x128xbf16>, vector<128x128xbf16>, vector<16x128xf32> -> vector<16x128xf32>
    %36 = vector.broadcast %15 : vector<1x128xf32> to vector<16x128xf32>
    %37 = arith.addf %35, %36 : vector<16x128xf32>
    %38 = vector.shape_cast %31 : vector<16x128xf32> to vector<2x8x128xf32>
    %39 = arith.truncf %38 : vector<2x8x128xf32> to vector<2x8x128xbf16>
    %40 = vector.shape_cast %34 : vector<16x128xf32> to vector<2x8x128xf32>
    %41 = arith.truncf %40 : vector<2x8x128xf32> to vector<2x8x128xbf16>
    %42 = vector.shape_cast %37 : vector<16x128xf32> to vector<2x8x128xf32>
    %43 = arith.truncf %42 : vector<2x8x128xf32> to vector<2x8x128xbf16>
    "tpu.trace_start"() <{level = 10 : i32, message = "bqd,bkd->bqk"}> : () -> ()
    %cst_48 = arith.constant dense<0.000000e+00> : vector<2x8x8xf32>
    %44 = tpu.matmul %39, %41, %cst_48 {dimension_numbers = #tpu.dot_dimension_numbers<[2], [2], [1], [1], [0, 0, 0, 1, 1, 1], [0], [0]>} : vector<2x8x128xbf16>, vector<2x8x128xbf16>, vector<2x8x8xf32> -> vector<2x8x8xf32>
    "tpu.trace_stop"() : () -> ()
    %cst_49 = arith.constant 0.0883883461 : f32
    %45 = vector.broadcast %cst_49 : f32 to vector<2x8x8xf32>
    %46 = arith.mulf %44, %45 : vector<2x8x8xf32>
    %cst_50 = arith.constant dense<0xFF800000> : vector<2x8xf32>
    %47 = vector.multi_reduction <maximumf>, %46, %cst_50 [2] : vector<2x8x8xf32> to vector<2x8xf32>
    %48 = vector.shape_cast %47 : vector<2x8xf32> to vector<2x8x1xf32>
    %49 = vector.broadcast %48 : vector<2x8x1xf32> to vector<2x8x8xf32>
    %50 = arith.subf %46, %49 : vector<2x8x8xf32>
    %51 = math.exp %50 : vector<2x8x8xf32>
    %cst_51 = arith.constant dense<0.000000e+00> : vector<2x8xf32>
    %52 = vector.multi_reduction <add>, %51, %cst_51 [2] : vector<2x8x8xf32> to vector<2x8xf32>
    %53 = vector.shape_cast %52 : vector<2x8xf32> to vector<2x8x1xf32>
    %54 = vector.broadcast %53 : vector<2x8x1xf32> to vector<2x8x8xf32>
    %55 = arith.divf %51, %54 : vector<2x8x8xf32>
    %56 = arith.truncf %55 : vector<2x8x8xf32> to vector<2x8x8xbf16>
    "tpu.trace_start"() <{level = 10 : i32, message = "bqk,bkd->bqd"}> : () -> ()
    %cst_52 = arith.constant dense<0.000000e+00> : vector<2x8x128xf32>
    %57 = tpu.matmul %56, %43, %cst_52 {dimension_numbers = #tpu.dot_dimension_numbers<[2], [1], [1], [2], [0, 0, 0, 1, 1, 2], [0], [0]>} : vector<2x8x8xbf16>, vector<2x8x128xbf16>, vector<2x8x128xf32> -> vector<2x8x128xf32>
    "tpu.trace_stop"() : () -> ()
    %58 = vector.shape_cast %57 : vector<2x8x128xf32> to vector<16x128xf32>
    %59 = arith.truncf %58 : vector<16x128xf32> to vector<16x128xbf16>
    %cst_53 = arith.constant dense<0.000000e+00> : vector<16x128xf32>
    %60 = tpu.matmul %59, %9, %cst_53 {dimension_numbers = #tpu.dot_dimension_numbers<[1], [0], [0], [1], [0, 0, 1, 1], [], []>} : vector<16x128xbf16>, vector<128x128xbf16>, vector<16x128xf32> -> vector<16x128xf32>
    %61 = vector.broadcast %17 : vector<1x128xf32> to vector<16x128xf32>
    %62 = arith.addf %60, %61 : vector<16x128xf32>
    %63 = arith.addf %1, %62 : vector<16x128xf32>
    %cst_54 = arith.constant dense<0.000000e+00> : vector<16xf32>
    %64 = vector.multi_reduction <add>, %63, %cst_54 [1] : vector<16x128xf32> to vector<16xf32>
    %65 = vector.shape_cast %64 : vector<16xf32> to vector<16x1xf32>
    %cst_55 = arith.constant 1.280000e+02 : f32
    %66 = vector.broadcast %cst_55 : f32 to vector<16x1xf32>
    %67 = arith.divf %65, %66 : vector<16x1xf32>
    %68 = vector.broadcast %67 : vector<16x1xf32> to vector<16x128xf32>
    %69 = arith.subf %63, %68 : vector<16x128xf32>
    %70 = arith.mulf %69, %69 : vector<16x128xf32>
    %cst_56 = arith.constant dense<0.000000e+00> : vector<16xf32>
    %71 = vector.multi_reduction <add>, %70, %cst_56 [1] : vector<16x128xf32> to vector<16xf32>
    %72 = vector.shape_cast %71 : vector<16xf32> to vector<16x1xf32>
    %cst_57 = arith.constant 1.280000e+02 : f32
    %73 = vector.broadcast %cst_57 : f32 to vector<16x1xf32>
    %74 = arith.divf %72, %73 : vector<16x1xf32>
    %75 = vector.broadcast %67 : vector<16x1xf32> to vector<16x128xf32>
    %76 = arith.subf %63, %75 : vector<16x128xf32>
    %cst_58 = arith.constant 9.99999974E-6 : f32
    %77 = vector.broadcast %cst_58 : f32 to vector<16x1xf32>
    %78 = arith.addf %74, %77 : vector<16x1xf32>
    %79 = math.rsqrt %78 : vector<16x1xf32>
    %80 = vector.broadcast %79 : vector<16x1xf32> to vector<16x128xf32>
    %81 = arith.mulf %76, %80 : vector<16x128xf32>
    %82 = vector.broadcast %21 : vector<1x128xf32> to vector<16x128xf32>
    %83 = arith.mulf %81, %82 : vector<16x128xf32>
    %84 = vector.broadcast %23 : vector<1x128xf32> to vector<16x128xf32>
    %85 = arith.addf %83, %84 : vector<16x128xf32>
    %86 = arith.truncf %85 : vector<16x128xf32> to vector<16x128xbf16>
    %c0_59 = arith.constant 0 : index
    %c0_60 = arith.constant 0 : index
    %c0_61 = arith.constant 0 : index
    %c0_62 = arith.constant 0 : index
    %87 = vector.load %arg3[%c0_59, %c0_60, %c0_61, %c0_62] : memref<1x2x128x256xbf16, #tpu.memory_space<vmem>>, vector<1x1x128x256xbf16>
    %88 = vector.shape_cast %87 : vector<1x1x128x256xbf16> to vector<128x256xbf16>
    %cst_63 = arith.constant dense<0.000000e+00> : vector<16x256xf32>
    %89 = tpu.matmul %86, %88, %cst_63 {dimension_numbers = #tpu.dot_dimension_numbers<[1], [0], [0], [1], [0, 0, 1, 1], [], []>} : vector<16x128xbf16>, vector<128x256xbf16>, vector<16x256xf32> -> vector<16x256xf32>
    %c0_64 = arith.constant 0 : index
    %c0_65 = arith.constant 0 : index
    %c0_66 = arith.constant 0 : index
    %c0_67 = arith.constant 0 : index
    %90 = vector.load %arg5[%c0_64, %c0_65, %c0_66, %c0_67] : memref<1x2x1x256xf32, #tpu.memory_space<vmem>>, vector<1x1x1x256xf32>
    %91 = vector.shape_cast %90 : vector<1x1x1x256xf32> to vector<1x256xf32>
    %92 = vector.broadcast %91 : vector<1x256xf32> to vector<16x256xf32>
    %93 = arith.addf %89, %92 : vector<16x256xf32>
    %94 = arith.mulf %93, %93 : vector<16x256xf32>
    %95 = arith.mulf %93, %94 : vector<16x256xf32>
    %cst_68 = arith.constant 4.471500e-02 : f32
    %96 = vector.broadcast %cst_68 : f32 to vector<16x256xf32>
    %97 = arith.mulf %96, %95 : vector<16x256xf32>
    %98 = arith.addf %93, %97 : vector<16x256xf32>
    %cst_69 = arith.constant 0.797884583 : f32
    %99 = vector.broadcast %cst_69 : f32 to vector<16x256xf32>
    %100 = arith.mulf %99, %98 : vector<16x256xf32>
    %101 = math.tanh %100 : vector<16x256xf32>
    %cst_70 = arith.constant 1.000000e+00 : f32
    %102 = vector.broadcast %cst_70 : f32 to vector<16x256xf32>
    %103 = arith.addf %102, %101 : vector<16x256xf32>
    %cst_71 = arith.constant 5.000000e-01 : f32
    %104 = vector.broadcast %cst_71 : f32 to vector<16x256xf32>
    %105 = arith.mulf %104, %103 : vector<16x256xf32>
    %106 = arith.mulf %93, %105 : vector<16x256xf32>
    %107 = arith.truncf %106 : vector<16x256xf32> to vector<16x256xbf16>
    %c0_72 = arith.constant 0 : index
    %c0_73 = arith.constant 0 : index
    %c0_74 = arith.constant 0 : index
    %c0_75 = arith.constant 0 : index
    %108 = vector.load %arg4[%c0_72, %c0_73, %c0_74, %c0_75] : memref<1x2x256x128xbf16, #tpu.memory_space<vmem>>, vector<1x1x256x128xbf16>
    %109 = vector.shape_cast %108 : vector<1x1x256x128xbf16> to vector<256x128xbf16>
    %cst_76 = arith.constant dense<0.000000e+00> : vector<16x128xf32>
    %110 = tpu.matmul %107, %109, %cst_76 {dimension_numbers = #tpu.dot_dimension_numbers<[1], [0], [0], [1], [0, 0, 1, 1], [], []>} : vector<16x256xbf16>, vector<256x128xbf16>, vector<16x128xf32> -> vector<16x128xf32>
    %111 = vector.broadcast %19 : vector<1x128xf32> to vector<16x128xf32>
    %112 = arith.addf %110, %111 : vector<16x128xf32>
    %113 = arith.addf %85, %112 : vector<16x128xf32>
    %cst_77 = arith.constant dense<0.000000e+00> : vector<16xf32>
    %114 = vector.multi_reduction <add>, %113, %cst_77 [1] : vector<16x128xf32> to vector<16xf32>
    %115 = vector.shape_cast %114 : vector<16xf32> to vector<16x1xf32>
    %cst_78 = arith.constant 1.280000e+02 : f32
    %116 = vector.broadcast %cst_78 : f32 to vector<16x1xf32>
    %117 = arith.divf %115, %116 : vector<16x1xf32>
    %118 = vector.broadcast %117 : vector<16x1xf32> to vector<16x128xf32>
    %119 = arith.subf %113, %118 : vector<16x128xf32>
    %120 = arith.mulf %119, %119 : vector<16x128xf32>
    %cst_79 = arith.constant dense<0.000000e+00> : vector<16xf32>
    %121 = vector.multi_reduction <add>, %120, %cst_79 [1] : vector<16x128xf32> to vector<16xf32>
    %122 = vector.shape_cast %121 : vector<16xf32> to vector<16x1xf32>
    %cst_80 = arith.constant 1.280000e+02 : f32
    %123 = vector.broadcast %cst_80 : f32 to vector<16x1xf32>
    %124 = arith.divf %122, %123 : vector<16x1xf32>
    %125 = vector.broadcast %117 : vector<16x1xf32> to vector<16x128xf32>
    %126 = arith.subf %113, %125 : vector<16x128xf32>
    %cst_81 = arith.constant 9.99999974E-6 : f32
    %127 = vector.broadcast %cst_81 : f32 to vector<16x1xf32>
    %128 = arith.addf %124, %127 : vector<16x1xf32>
    %129 = math.rsqrt %128 : vector<16x1xf32>
    %130 = vector.broadcast %129 : vector<16x1xf32> to vector<16x128xf32>
    %131 = arith.mulf %126, %130 : vector<16x128xf32>
    %132 = vector.broadcast %25 : vector<1x128xf32> to vector<16x128xf32>
    %133 = arith.mulf %131, %132 : vector<16x128xf32>
    %134 = vector.broadcast %27 : vector<1x128xf32> to vector<16x128xf32>
    %135 = arith.addf %133, %134 : vector<16x128xf32>
    %c0_82 = arith.constant 0 : index
    %c4_83 = arith.constant 4 : index
    %c0_84 = arith.constant 0 : index
    %c0_85 = arith.constant 0 : index
    %136 = vector.load %arg2[%c0_82, %c4_83, %c0_84, %c0_85] : memref<1x8x128x128xbf16, #tpu.memory_space<vmem>>, vector<1x1x128x128xbf16>
    %137 = vector.shape_cast %136 : vector<1x1x128x128xbf16> to vector<128x128xbf16>
    %c0_86 = arith.constant 0 : index
    %c5_87 = arith.constant 5 : index
    %c0_88 = arith.constant 0 : index
    %c0_89 = arith.constant 0 : index
    %138 = vector.load %arg2[%c0_86, %c5_87, %c0_88, %c0_89] : memref<1x8x128x128xbf16, #tpu.memory_space<vmem>>, vector<1x1x128x128xbf16>
    %139 = vector.shape_cast %138 : vector<1x1x128x128xbf16> to vector<128x128xbf16>
    %c0_90 = arith.constant 0 : index
    %c6_91 = arith.constant 6 : index
    %c0_92 = arith.constant 0 : index
    %c0_93 = arith.constant 0 : index
    %140 = vector.load %arg2[%c0_90, %c6_91, %c0_92, %c0_93] : memref<1x8x128x128xbf16, #tpu.memory_space<vmem>>, vector<1x1x128x128xbf16>
    %141 = vector.shape_cast %140 : vector<1x1x128x128xbf16> to vector<128x128xbf16>
    %c0_94 = arith.constant 0 : index
    %c7_95 = arith.constant 7 : index
    %c0_96 = arith.constant 0 : index
    %c0_97 = arith.constant 0 : index
    %142 = vector.load %arg2[%c0_94, %c7_95, %c0_96, %c0_97] : memref<1x8x128x128xbf16, #tpu.memory_space<vmem>>, vector<1x1x128x128xbf16>
    %143 = vector.shape_cast %142 : vector<1x1x128x128xbf16> to vector<128x128xbf16>
    %c0_98 = arith.constant 0 : index
    %c1_99 = arith.constant 1 : index
    %c0_100 = arith.constant 0 : index
    %c0_101 = arith.constant 0 : index
    %144 = vector.load %arg6[%c0_98, %c1_99, %c0_100, %c0_101] : memref<1x2x9x128xf32, #tpu.memory_space<vmem>>, vector<1x1x1x128xf32>
    %145 = vector.shape_cast %144 : vector<1x1x1x128xf32> to vector<1x128xf32>
    %c0_102 = arith.constant 0 : index
    %c1_103 = arith.constant 1 : index
    %c1_104 = arith.constant 1 : index
    %c0_105 = arith.constant 0 : index
    %146 = vector.load %arg6[%c0_102, %c1_103, %c1_104, %c0_105] : memref<1x2x9x128xf32, #tpu.memory_space<vmem>>, vector<1x1x1x128xf32>
    %147 = vector.shape_cast %146 : vector<1x1x1x128xf32> to vector<1x128xf32>
    %c0_106 = arith.constant 0 : index
    %c1_107 = arith.constant 1 : index
    %c2_108 = arith.constant 2 : index
    %c0_109 = arith.constant 0 : index
    %148 = vector.load %arg6[%c0_106, %c1_107, %c2_108, %c0_109] : memref<1x2x9x128xf32, #tpu.memory_space<vmem>>, vector<1x1x1x128xf32>
    %149 = vector.shape_cast %148 : vector<1x1x1x128xf32> to vector<1x128xf32>
    %c0_110 = arith.constant 0 : index
    %c1_111 = arith.constant 1 : index
    %c3_112 = arith.constant 3 : index
    %c0_113 = arith.constant 0 : index
    %150 = vector.load %arg6[%c0_110, %c1_111, %c3_112, %c0_113] : memref<1x2x9x128xf32, #tpu.memory_space<vmem>>, vector<1x1x1x128xf32>
    %151 = vector.shape_cast %150 : vector<1x1x1x128xf32> to vector<1x128xf32>
    %c0_114 = arith.constant 0 : index
    %c1_115 = arith.constant 1 : index
    %c4_116 = arith.constant 4 : index
    %c0_117 = arith.constant 0 : index
    %152 = vector.load %arg6[%c0_114, %c1_115, %c4_116, %c0_117] : memref<1x2x9x128xf32, #tpu.memory_space<vmem>>, vector<1x1x1x128xf32>
    %153 = vector.shape_cast %152 : vector<1x1x1x128xf32> to vector<1x128xf32>
    %c0_118 = arith.constant 0 : index
    %c1_119 = arith.constant 1 : index
    %c5_120 = arith.constant 5 : index
    %c0_121 = arith.constant 0 : index
    %154 = vector.load %arg6[%c0_118, %c1_119, %c5_120, %c0_121] : memref<1x2x9x128xf32, #tpu.memory_space<vmem>>, vector<1x1x1x128xf32>
    %155 = vector.shape_cast %154 : vector<1x1x1x128xf32> to vector<1x128xf32>
    %c0_122 = arith.constant 0 : index
    %c1_123 = arith.constant 1 : index
    %c6_124 = arith.constant 6 : index
    %c0_125 = arith.constant 0 : index
    %156 = vector.load %arg6[%c0_122, %c1_123, %c6_124, %c0_125] : memref<1x2x9x128xf32, #tpu.memory_space<vmem>>, vector<1x1x1x128xf32>
    %157 = vector.shape_cast %156 : vector<1x1x1x128xf32> to vector<1x128xf32>
    %c0_126 = arith.constant 0 : index
    %c1_127 = arith.constant 1 : index
    %c7_128 = arith.constant 7 : index
    %c0_129 = arith.constant 0 : index
    %158 = vector.load %arg6[%c0_126, %c1_127, %c7_128, %c0_129] : memref<1x2x9x128xf32, #tpu.memory_space<vmem>>, vector<1x1x1x128xf32>
    %159 = vector.shape_cast %158 : vector<1x1x1x128xf32> to vector<1x128xf32>
    %c0_130 = arith.constant 0 : index
    %c1_131 = arith.constant 1 : index
    %c8_132 = arith.constant 8 : index
    %c0_133 = arith.constant 0 : index
    %160 = vector.load %arg6[%c0_130, %c1_131, %c8_132, %c0_133] : memref<1x2x9x128xf32, #tpu.memory_space<vmem>>, vector<1x1x1x128xf32>
    %161 = vector.shape_cast %160 : vector<1x1x1x128xf32> to vector<1x128xf32>
    %162 = arith.truncf %135 : vector<16x128xf32> to vector<16x128xbf16>
    %cst_134 = arith.constant dense<0.000000e+00> : vector<16x128xf32>
    %163 = tpu.matmul %162, %137, %cst_134 {dimension_numbers = #tpu.dot_dimension_numbers<[1], [0], [0], [1], [0, 0, 1, 1], [], []>} : vector<16x128xbf16>, vector<128x128xbf16>, vector<16x128xf32> -> vector<16x128xf32>
    %164 = vector.broadcast %145 : vector<1x128xf32> to vector<16x128xf32>
    %165 = arith.addf %163, %164 : vector<16x128xf32>
    %cst_135 = arith.constant dense<0.000000e+00> : vector<16x128xf32>
    %166 = tpu.matmul %162, %139, %cst_135 {dimension_numbers = #tpu.dot_dimension_numbers<[1], [0], [0], [1], [0, 0, 1, 1], [], []>} : vector<16x128xbf16>, vector<128x128xbf16>, vector<16x128xf32> -> vector<16x128xf32>
    %167 = vector.broadcast %147 : vector<1x128xf32> to vector<16x128xf32>
    %168 = arith.addf %166, %167 : vector<16x128xf32>
    %cst_136 = arith.constant dense<0.000000e+00> : vector<16x128xf32>
    %169 = tpu.matmul %162, %141, %cst_136 {dimension_numbers = #tpu.dot_dimension_numbers<[1], [0], [0], [1], [0, 0, 1, 1], [], []>} : vector<16x128xbf16>, vector<128x128xbf16>, vector<16x128xf32> -> vector<16x128xf32>
    %170 = vector.broadcast %149 : vector<1x128xf32> to vector<16x128xf32>
    %171 = arith.addf %169, %170 : vector<16x128xf32>
    %172 = vector.shape_cast %165 : vector<16x128xf32> to vector<2x8x128xf32>
    %173 = arith.truncf %172 : vector<2x8x128xf32> to vector<2x8x128xbf16>
    %174 = vector.shape_cast %168 : vector<16x128xf32> to vector<2x8x128xf32>
    %175 = arith.truncf %174 : vector<2x8x128xf32> to vector<2x8x128xbf16>
    %176 = vector.shape_cast %171 : vector<16x128xf32> to vector<2x8x128xf32>
    %177 = arith.truncf %176 : vector<2x8x128xf32> to vector<2x8x128xbf16>
    "tpu.trace_start"() <{level = 10 : i32, message = "bqd,bkd->bqk"}> : () -> ()
    %cst_137 = arith.constant dense<0.000000e+00> : vector<2x8x8xf32>
    %178 = tpu.matmul %173, %175, %cst_137 {dimension_numbers = #tpu.dot_dimension_numbers<[2], [2], [1], [1], [0, 0, 0, 1, 1, 1], [0], [0]>} : vector<2x8x128xbf16>, vector<2x8x128xbf16>, vector<2x8x8xf32> -> vector<2x8x8xf32>
    "tpu.trace_stop"() : () -> ()
    %cst_138 = arith.constant 0.0883883461 : f32
    %179 = vector.broadcast %cst_138 : f32 to vector<2x8x8xf32>
    %180 = arith.mulf %178, %179 : vector<2x8x8xf32>
    %cst_139 = arith.constant dense<0xFF800000> : vector<2x8xf32>
    %181 = vector.multi_reduction <maximumf>, %180, %cst_139 [2] : vector<2x8x8xf32> to vector<2x8xf32>
    %182 = vector.shape_cast %181 : vector<2x8xf32> to vector<2x8x1xf32>
    %183 = vector.broadcast %182 : vector<2x8x1xf32> to vector<2x8x8xf32>
    %184 = arith.subf %180, %183 : vector<2x8x8xf32>
    %185 = math.exp %184 : vector<2x8x8xf32>
    %cst_140 = arith.constant dense<0.000000e+00> : vector<2x8xf32>
    %186 = vector.multi_reduction <add>, %185, %cst_140 [2] : vector<2x8x8xf32> to vector<2x8xf32>
    %187 = vector.shape_cast %186 : vector<2x8xf32> to vector<2x8x1xf32>
    %188 = vector.broadcast %187 : vector<2x8x1xf32> to vector<2x8x8xf32>
    %189 = arith.divf %185, %188 : vector<2x8x8xf32>
    %190 = arith.truncf %189 : vector<2x8x8xf32> to vector<2x8x8xbf16>
    "tpu.trace_start"() <{level = 10 : i32, message = "bqk,bkd->bqd"}> : () -> ()
    %cst_141 = arith.constant dense<0.000000e+00> : vector<2x8x128xf32>
    %191 = tpu.matmul %190, %177, %cst_141 {dimension_numbers = #tpu.dot_dimension_numbers<[2], [1], [1], [2], [0, 0, 0, 1, 1, 2], [0], [0]>} : vector<2x8x8xbf16>, vector<2x8x128xbf16>, vector<2x8x128xf32> -> vector<2x8x128xf32>
    "tpu.trace_stop"() : () -> ()
    %192 = vector.shape_cast %191 : vector<2x8x128xf32> to vector<16x128xf32>
    %193 = arith.truncf %192 : vector<16x128xf32> to vector<16x128xbf16>
    %cst_142 = arith.constant dense<0.000000e+00> : vector<16x128xf32>
    %194 = tpu.matmul %193, %143, %cst_142 {dimension_numbers = #tpu.dot_dimension_numbers<[1], [0], [0], [1], [0, 0, 1, 1], [], []>} : vector<16x128xbf16>, vector<128x128xbf16>, vector<16x128xf32> -> vector<16x128xf32>
    %195 = vector.broadcast %151 : vector<1x128xf32> to vector<16x128xf32>
    %196 = arith.addf %194, %195 : vector<16x128xf32>
    %197 = arith.addf %135, %196 : vector<16x128xf32>
    %cst_143 = arith.constant dense<0.000000e+00> : vector<16xf32>
    %198 = vector.multi_reduction <add>, %197, %cst_143 [1] : vector<16x128xf32> to vector<16xf32>
    %199 = vector.shape_cast %198 : vector<16xf32> to vector<16x1xf32>
    %cst_144 = arith.constant 1.280000e+02 : f32
    %200 = vector.broadcast %cst_144 : f32 to vector<16x1xf32>
    %201 = arith.divf %199, %200 : vector<16x1xf32>
    %202 = vector.broadcast %201 : vector<16x1xf32> to vector<16x128xf32>
    %203 = arith.subf %197, %202 : vector<16x128xf32>
    %204 = arith.mulf %203, %203 : vector<16x128xf32>
    %cst_145 = arith.constant dense<0.000000e+00> : vector<16xf32>
    %205 = vector.multi_reduction <add>, %204, %cst_145 [1] : vector<16x128xf32> to vector<16xf32>
    %206 = vector.shape_cast %205 : vector<16xf32> to vector<16x1xf32>
    %cst_146 = arith.constant 1.280000e+02 : f32
    %207 = vector.broadcast %cst_146 : f32 to vector<16x1xf32>
    %208 = arith.divf %206, %207 : vector<16x1xf32>
    %209 = vector.broadcast %201 : vector<16x1xf32> to vector<16x128xf32>
    %210 = arith.subf %197, %209 : vector<16x128xf32>
    %cst_147 = arith.constant 9.99999974E-6 : f32
    %211 = vector.broadcast %cst_147 : f32 to vector<16x1xf32>
    %212 = arith.addf %208, %211 : vector<16x1xf32>
    %213 = math.rsqrt %212 : vector<16x1xf32>
    %214 = vector.broadcast %213 : vector<16x1xf32> to vector<16x128xf32>
    %215 = arith.mulf %210, %214 : vector<16x128xf32>
    %216 = vector.broadcast %155 : vector<1x128xf32> to vector<16x128xf32>
    %217 = arith.mulf %215, %216 : vector<16x128xf32>
    %218 = vector.broadcast %157 : vector<1x128xf32> to vector<16x128xf32>
    %219 = arith.addf %217, %218 : vector<16x128xf32>
    %220 = arith.truncf %219 : vector<16x128xf32> to vector<16x128xbf16>
    %c0_148 = arith.constant 0 : index
    %c1_149 = arith.constant 1 : index
    %c0_150 = arith.constant 0 : index
    %c0_151 = arith.constant 0 : index
    %221 = vector.load %arg3[%c0_148, %c1_149, %c0_150, %c0_151] : memref<1x2x128x256xbf16, #tpu.memory_space<vmem>>, vector<1x1x128x256xbf16>
    %222 = vector.shape_cast %221 : vector<1x1x128x256xbf16> to vector<128x256xbf16>
    %cst_152 = arith.constant dense<0.000000e+00> : vector<16x256xf32>
    %223 = tpu.matmul %220, %222, %cst_152 {dimension_numbers = #tpu.dot_dimension_numbers<[1], [0], [0], [1], [0, 0, 1, 1], [], []>} : vector<16x128xbf16>, vector<128x256xbf16>, vector<16x256xf32> -> vector<16x256xf32>
    %c0_153 = arith.constant 0 : index
    %c1_154 = arith.constant 1 : index
    %c0_155 = arith.constant 0 : index
    %c0_156 = arith.constant 0 : index
    %224 = vector.load %arg5[%c0_153, %c1_154, %c0_155, %c0_156] : memref<1x2x1x256xf32, #tpu.memory_space<vmem>>, vector<1x1x1x256xf32>
    %225 = vector.shape_cast %224 : vector<1x1x1x256xf32> to vector<1x256xf32>
    %226 = vector.broadcast %225 : vector<1x256xf32> to vector<16x256xf32>
    %227 = arith.addf %223, %226 : vector<16x256xf32>
    %228 = arith.mulf %227, %227 : vector<16x256xf32>
    %229 = arith.mulf %227, %228 : vector<16x256xf32>
    %cst_157 = arith.constant 4.471500e-02 : f32
    %230 = vector.broadcast %cst_157 : f32 to vector<16x256xf32>
    %231 = arith.mulf %230, %229 : vector<16x256xf32>
    %232 = arith.addf %227, %231 : vector<16x256xf32>
    %cst_158 = arith.constant 0.797884583 : f32
    %233 = vector.broadcast %cst_158 : f32 to vector<16x256xf32>
    %234 = arith.mulf %233, %232 : vector<16x256xf32>
    %235 = math.tanh %234 : vector<16x256xf32>
    %cst_159 = arith.constant 1.000000e+00 : f32
    %236 = vector.broadcast %cst_159 : f32 to vector<16x256xf32>
    %237 = arith.addf %236, %235 : vector<16x256xf32>
    %cst_160 = arith.constant 5.000000e-01 : f32
    %238 = vector.broadcast %cst_160 : f32 to vector<16x256xf32>
    %239 = arith.mulf %238, %237 : vector<16x256xf32>
    %240 = arith.mulf %227, %239 : vector<16x256xf32>
    %241 = arith.truncf %240 : vector<16x256xf32> to vector<16x256xbf16>
    %c0_161 = arith.constant 0 : index
    %c1_162 = arith.constant 1 : index
    %c0_163 = arith.constant 0 : index
    %c0_164 = arith.constant 0 : index
    %242 = vector.load %arg4[%c0_161, %c1_162, %c0_163, %c0_164] : memref<1x2x256x128xbf16, #tpu.memory_space<vmem>>, vector<1x1x256x128xbf16>
    %243 = vector.shape_cast %242 : vector<1x1x256x128xbf16> to vector<256x128xbf16>
    %cst_165 = arith.constant dense<0.000000e+00> : vector<16x128xf32>
    %244 = tpu.matmul %241, %243, %cst_165 {dimension_numbers = #tpu.dot_dimension_numbers<[1], [0], [0], [1], [0, 0, 1, 1], [], []>} : vector<16x256xbf16>, vector<256x128xbf16>, vector<16x128xf32> -> vector<16x128xf32>
    %245 = vector.broadcast %153 : vector<1x128xf32> to vector<16x128xf32>
    %246 = arith.addf %244, %245 : vector<16x128xf32>
    %247 = arith.addf %219, %246 : vector<16x128xf32>
    %cst_166 = arith.constant dense<0.000000e+00> : vector<16xf32>
    %248 = vector.multi_reduction <add>, %247, %cst_166 [1] : vector<16x128xf32> to vector<16xf32>
    %249 = vector.shape_cast %248 : vector<16xf32> to vector<16x1xf32>
    %cst_167 = arith.constant 1.280000e+02 : f32
    %250 = vector.broadcast %cst_167 : f32 to vector<16x1xf32>
    %251 = arith.divf %249, %250 : vector<16x1xf32>
    %252 = vector.broadcast %251 : vector<16x1xf32> to vector<16x128xf32>
    %253 = arith.subf %247, %252 : vector<16x128xf32>
    %254 = arith.mulf %253, %253 : vector<16x128xf32>
    %cst_168 = arith.constant dense<0.000000e+00> : vector<16xf32>
    %255 = vector.multi_reduction <add>, %254, %cst_168 [1] : vector<16x128xf32> to vector<16xf32>
    %256 = vector.shape_cast %255 : vector<16xf32> to vector<16x1xf32>
    %cst_169 = arith.constant 1.280000e+02 : f32
    %257 = vector.broadcast %cst_169 : f32 to vector<16x1xf32>
    %258 = arith.divf %256, %257 : vector<16x1xf32>
    %259 = vector.broadcast %251 : vector<16x1xf32> to vector<16x128xf32>
    %260 = arith.subf %247, %259 : vector<16x128xf32>
    %cst_170 = arith.constant 9.99999974E-6 : f32
    %261 = vector.broadcast %cst_170 : f32 to vector<16x1xf32>
    %262 = arith.addf %258, %261 : vector<16x1xf32>
    %263 = math.rsqrt %262 : vector<16x1xf32>
    %264 = vector.broadcast %263 : vector<16x1xf32> to vector<16x128xf32>
    %265 = arith.mulf %260, %264 : vector<16x128xf32>
    %266 = vector.broadcast %159 : vector<1x128xf32> to vector<16x128xf32>
    %267 = arith.mulf %265, %266 : vector<16x128xf32>
    %268 = vector.broadcast %161 : vector<1x128xf32> to vector<16x128xf32>
    %269 = arith.addf %267, %268 : vector<16x128xf32>
    %270 = vector.shape_cast %269 : vector<16x128xf32> to vector<2x8x128xf32>
    %cst_171 = arith.constant dense<0xFF800000> : vector<2x128xf32>
    %271 = vector.multi_reduction <maximumf>, %270, %cst_171 [1] : vector<2x8x128xf32> to vector<2x128xf32>
    %c0_172 = arith.constant 0 : index
    %c0_173 = arith.constant 0 : index
    %c0_174 = arith.constant 0 : index
    %272 = vector.load %arg7[%c0_172, %c0_173, %c0_174] : memref<1x2x128xi32, #tpu.memory_space<vmem>>, vector<1x2x128xi32>
    %273 = vector.shape_cast %272 : vector<1x2x128xi32> to vector<2x128xi32>
    %c1288490188_i32 = arith.constant 1288490188 : i32
    %274 = vector.broadcast %c1288490188_i32 : i32 to vector<2x128xi32>
    %275 = arith.cmpi uge, %273, %274 : vector<2x128xi32>
    %cst_175 = arith.constant 1.42857146 : f32
    %276 = vector.broadcast %cst_175 : f32 to vector<2x128xf32>
    %277 = arith.mulf %271, %276 : vector<2x128xf32>
    %cst_176 = arith.constant 0.000000e+00 : f32
    %278 = vector.broadcast %cst_176 : f32 to vector<2x128xf32>
    %279 = arith.select %275, %277, %278 : vector<2x128xi1>, vector<2x128xf32>
    %c0_177 = arith.constant 0 : index
    %c0_178 = arith.constant 0 : index
    %c0_179 = arith.constant 0 : index
    %280 = vector.load %arg8[%c0_177, %c0_178, %c0_179] : memref<1x2x128xf32, #tpu.memory_space<vmem>>, vector<1x2x128xf32>
    %281 = vector.shape_cast %280 : vector<1x2x128xf32> to vector<2x128xf32>
    %282 = vector.shape_cast %279 : vector<2x128xf32> to vector<1x2x128xf32>
    tpu.vector_store %arg8[%c0_177, %c0_178, %c0_179], %282 {strides = array<i32>} : memref<1x2x128xf32, #tpu.memory_space<vmem>>, vector<1x2x128xf32>,
    return
  }
  func.func @transform_0(%arg0: i32) -> (i32, i32, i32) {
    %c0_i32 = arith.constant 0 : i32
    %c0_i32_0 = arith.constant 0 : i32
    %c0_i32_1 = arith.constant 0 : i32
    return %arg0, %c0_i32, %c0_i32_0 : i32, i32, i32
  }
  func.func @transform_1(%arg0: i32) -> (i32, i32, i32, i32) {
    %c0_i32 = arith.constant 0 : i32
    %c0_i32_0 = arith.constant 0 : i32
    %c0_i32_1 = arith.constant 0 : i32
    %c0_i32_2 = arith.constant 0 : i32
    return %arg0, %c0_i32, %c0_i32_0, %c0_i32_1 : i32, i32, i32, i32
  }
  func.func @transform_2(%arg0: i32) -> (i32, i32, i32, i32) {
    %c0_i32 = arith.constant 0 : i32
    %c0_i32_0 = arith.constant 0 : i32
    %c0_i32_1 = arith.constant 0 : i32
    %c0_i32_2 = arith.constant 0 : i32
    return %arg0, %c0_i32, %c0_i32_0, %c0_i32_1 : i32, i32, i32, i32
  }
  func.func @transform_3(%arg0: i32) -> (i32, i32, i32, i32) {
    %c0_i32 = arith.constant 0 : i32
    %c0_i32_0 = arith.constant 0 : i32
    %c0_i32_1 = arith.constant 0 : i32
    %c0_i32_2 = arith.constant 0 : i32
    return %arg0, %c0_i32, %c0_i32_0, %c0_i32_1 : i32, i32, i32, i32
  }
  func.func @transform_4(%arg0: i32) -> (i32, i32, i32, i32) {
    %c0_i32 = arith.constant 0 : i32
    %c0_i32_0 = arith.constant 0 : i32
    %c0_i32_1 = arith.constant 0 : i32
    %c0_i32_2 = arith.constant 0 : i32
    return %arg0, %c0_i32, %c0_i32_0, %c0_i32_1 : i32, i32, i32, i32
  }
  func.func @transform_5(%arg0: i32) -> (i32, i32, i32, i32) {
    %c0_i32 = arith.constant 0 : i32
    %c0_i32_0 = arith.constant 0 : i32
    %c0_i32_1 = arith.constant 0 : i32
    %c0_i32_2 = arith.constant 0 : i32
    return %arg0, %c0_i32, %c0_i32_0, %c0_i32_1 : i32, i32, i32, i32
  }
  func.func @transform_6(%arg0: i32) -> (i32, i32, i32) {
    %c0_i32 = arith.constant 0 : i32
    %c0_i32_0 = arith.constant 0 : i32
    %c0_i32_1 = arith.constant 0 : i32
    return %arg0, %c0_i32, %c0_i32_0 : i32, i32, i32
  }
  func.func @transform_7(%arg0: i32) -> (i32, i32, i32) {
    %c0_i32 = arith.constant 0 : i32
    %c0_i32_0 = arith.constant 0 : i32
    %c0_i32_1 = arith.constant 0 : i32
    return %arg0, %c0_i32, %c0_i32_0 : i32, i32, i32
  }
}

</mosaic_0001>

<llo_original>
// kernel: tpu_custom_call.1
$region0: #{tpu_custom_call.1}
  #allocation0 [shape = 'u32[]', space=smem, size = 0x4, offset = 0x4, fixed_abs, tag = 'smem constant byte address 0x4 - core index']
  #allocation1 [shape = 'u32[144,128]{1,0:T(1,128)}', space=vmem, size = 0x12000, scoped, tag = 'internal scratch']
  %s0 = inlined_call_operand.vmem [shape: f32[2,16,128], index: 0, kind: input, shape index: {}]
  %s1 = inlined_call_operand.hbm [shape: bf16[2,8,128,128], index: 1, kind: input, shape index: {}]
  %s2 = inlined_call_operand.hbm [shape: bf16[2,2,128,256], index: 2, kind: input, shape index: {}]
  %s3 = inlined_call_operand.hbm [shape: bf16[2,2,256,128], index: 3, kind: input, shape index: {}]
  %s4 = inlined_call_operand.vmem [shape: f32[2,2,1,256], index: 4, kind: input, shape index: {}]
  %s5 = inlined_call_operand.vmem [shape: f32[2,2,9,128], index: 5, kind: input, shape index: {}]
  %s6 = inlined_call_operand.vmem [shape: u32[2,2,128], index: 6, kind: input, shape index: {}]
  %s7 = inlined_call_operand.hbm [shape: f32[2,2,128], index: 7, kind: output, shape index: {}]
  %s8 = sld [smem:[#allocation0]]
  $region73: #{tpu_custom_call.1} parent=0
    _
  %s10 = ssub.s32 1, %s8
  %s11 = scalar_select 0, %s10, %s8
  $region1: #{tpu_custom_call.1} parent=0
    #allocation2 [shape = 'u8[524288]{0}', space=vmem, size = 0x80000, scoped, tag = 'input window, operand 1']
    #allocation3 [shape = 's32[2]{0}', space=sflag, size = 0x8, scoped, tag = 'scoped memory for tpu_custom_call.1']
    #allocation4 [shape = 's32[2]{0}', space=sflag, size = 0x8, scoped, tag = 'scoped memory for tpu_custom_call.1']
    #allocation5 [shape = 'u8[262144]{0}', space=vmem, size = 0x40000, scoped, tag = 'input window, operand 2']
    #allocation6 [shape = 's32[2]{0}', space=sflag, size = 0x8, scoped, tag = 'scoped memory for tpu_custom_call.1']
    #allocation7 [shape = 'u8[262144]{0}', space=vmem, size = 0x40000, scoped, tag = 'input window, operand 3']
    #allocation8 [shape = 'u8[2048]{0}', space=vmem, size = 0x800, scoped, tag = 'output window, operand 0']
    %12 = vsyncpa [#allocation3], 0
    %s13 = scalar_lea.sflag [#allocation3], 1
    %14 = vsyncpa %s13, 0
    %15 = vsyncpa [#allocation6], 0
    %s16 = scalar_lea.sflag [#allocation6], 1
    %17 = vsyncpa %s16, 0
    %18 = vsyncpa [#allocation4], 0
    %s19 = scalar_lea.sflag [#allocation4], 1
    %20 = vsyncpa %s19, 0
    loop: start=0, step=1, limit=4
    $region2: #{tpu_custom_call.1} parent=1 // loop_pre_header
      _
    $region3: #{tpu_custom_call.1} parent=1 // loop_header
      %s22 = sphi 0, %s26
      %p23 = scmp.ge.s32.totalorder %s22, 4
      %s32 = sphi 0, %s34
      %s35 = sphi 0, %s32
      %s36 = sphi 0, %s35
      %s52 = sphi 0, %s36
      %s58 = sphi 0, %s60
      %s61 = sphi 0, %s58
      %s62 = sphi 0, %s61
      %s78 = sphi 0, %s62
      %s84 = sphi 0, %s86
      %s87 = sphi 0, %s84
      %s88 = sphi 0, %s87
      %s104 = sphi 0, %s88
      %s110 = sphi 0, %s112
      %s113 = sphi 0, %s110
      %s114 = sphi 0, %s113
      %s130 = sphi 0, %s114
      %s136 = sphi 0, %s138
      %s139 = sphi 0, %s136
      %s140 = sphi 0, %s139
      %s156 = sphi 0, %s140
      %s162 = sphi 0, %s164
      %s165 = sphi 0, %s162
      %s166 = sphi 0, %s165
      %s182 = sphi 0, %s166
      %s188 = sphi 0, %s190
      %s191 = sphi 0, %s188
      %s192 = sphi 0, %s191
      %s208 = sphi 0, %s192
      %s214 = sphi 0, %s216
      %s217 = sphi 0, %s214
      %s218 = sphi 0, %s217
      %s234 = sphi 0, %s218
    $region4: #{tpu_custom_call.1} parent=1 // loop_header_branch
      %25 = sbr.rel (%p23) target = $region8
    $region5: #{tpu_custom_call.1} parent=1 // loop_body
      %s27 = ssub.s32 %s22, 1
      %s28 = ssub.s32 %s22, 2
      %s29 = sadd.s32 %s22, 1
      %s30 = ssub.s32 %s22, %s29
      %p31 = scmp.eq.s32.totalorder %s30, 0
      %s33 = sadd.s32 %s32, 1
      %s34 = scalar_select %p31, %s32, %s33
      %p37 = pneg %p31
      %p38 = scmp.eq.s32.totalorder %s22, 1
      %p39 = por %p37, %p38
      %p40 = scmp.ne.s32.totalorder %s32, %s35
      %p41 = scmp.eq.s32.totalorder %s22, 0
      %p42 = por %p40, %p41
      %p43 = scmp.ne.s32.totalorder %s32, %s35
      %p44 = scmp.eq.s32.totalorder %s27, 1
      %p45 = por %p43, %p44
      %p46 = scmp.ne.s32.totalorder %s35, %s36
      %p47 = scmp.eq.s32.totalorder %s27, 0
      %p48 = por %p46, %p47
      %p49 = scmp.ne.s32.totalorder %s35, %s36
      %p50 = scmp.eq.s32.totalorder %s28, 1
      %p51 = por %p49, %p50
      %p53 = scmp.ne.s32.totalorder %s36, %s52
      %p54 = scmp.eq.s32.totalorder %s28, 0
      %p55 = por %p53, %p54
      %s56 = ssub.s32 %s22, %s29
      %p57 = scmp.eq.s32.totalorder %s56, 0
      %s59 = sadd.s32 %s58, 1
      %s60 = scalar_select %p57, %s58, %s59
      %p63 = pneg %p57
      %p64 = scmp.eq.s32.totalorder %s22, 1
      %p65 = por %p63, %p64
      %p66 = scmp.ne.s32.totalorder %s58, %s61
      %p67 = scmp.eq.s32.totalorder %s22, 0
      %p68 = por %p66, %p67
      %p69 = scmp.ne.s32.totalorder %s58, %s61
      %p70 = scmp.eq.s32.totalorder %s27, 1
      %p71 = por %p69, %p70
      %p72 = scmp.ne.s32.totalorder %s61, %s62
      %p73 = scmp.eq.s32.totalorder %s27, 0
      %p74 = por %p72, %p73
      %p75 = scmp.ne.s32.totalorder %s61, %s62
      %p76 = scmp.eq.s32.totalorder %s28, 1
      %p77 = por %p75, %p76
      %p79 = scmp.ne.s32.totalorder %s62, %s78
      %p80 = scmp.eq.s32.totalorder %s28, 0
      %p81 = por %p79, %p80
      %s82 = ssub.s32 %s22, %s29
      %p83 = scmp.eq.s32.totalorder %s82, 0
      %s85 = sadd.s32 %s84, 1
      %s86 = scalar_select %p83, %s84, %s85
      %p89 = pneg %p83
      %p90 = scmp.eq.s32.totalorder %s22, 1
      %p91 = por %p89, %p90
      %p92 = scmp.ne.s32.totalorder %s84, %s87
      %p93 = scmp.eq.s32.totalorder %s22, 0
      %p94 = por %p92, %p93
      %p95 = scmp.ne.s32.totalorder %s84, %s87
      %p96 = scmp.eq.s32.totalorder %s27, 1
      %p97 = por %p95, %p96
      %p98 = scmp.ne.s32.totalorder %s87, %s88
      %p99 = scmp.eq.s32.totalorder %s27, 0
      %p100 = por %p98, %p99
      %p101 = scmp.ne.s32.totalorder %s87, %s88
      %p102 = scmp.eq.s32.totalorder %s28, 1
      %p103 = por %p101, %p102
      %p105 = scmp.ne.s32.totalorder %s88, %s104
      %p106 = scmp.eq.s32.totalorder %s28, 0
      %p107 = por %p105, %p106
      %s108 = ssub.s32 %s22, %s29
      %p109 = scmp.eq.s32.totalorder %s108, 0
      %s111 = sadd.s32 %s110, 1
      %s112 = scalar_select %p109, %s110, %s111
      %p115 = pneg %p109
      %p116 = scmp.eq.s32.totalorder %s22, 1
      %p117 = por %p115, %p116
      %p118 = scmp.ne.s32.totalorder %s110, %s113
      %p119 = scmp.eq.s32.totalorder %s22, 0
      %p120 = por %p118, %p119
      %p121 = scmp.ne.s32.totalorder %s110, %s113
      %p122 = scmp.eq.s32.totalorder %s27, 1
      %p123 = por %p121, %p122
      %p124 = scmp.ne.s32.totalorder %s113, %s114
      %p125 = scmp.eq.s32.totalorder %s27, 0
      %p126 = por %p124, %p125
      %p127 = scmp.ne.s32.totalorder %s113, %s114
      %p128 = scmp.eq.s32.totalorder %s28, 1
      %p129 = por %p127, %p128
      %p131 = scmp.ne.s32.totalorder %s114, %s130
      %p132 = scmp.eq.s32.totalorder %s28, 0
      %p133 = por %p131, %p132
      %s134 = ssub.s32 %s22, %s29
      %p135 = scmp.eq.s32.totalorder %s134, 0
      %s137 = sadd.s32 %s136, 1
      %s138 = scalar_select %p135, %s136, %s137
      %p141 = pneg %p135
      %p142 = scmp.eq.s32.totalorder %s22, 1
      %p143 = por %p141, %p142
      %p144 = scmp.ne.s32.totalorder %s136, %s139
      %p145 = scmp.eq.s32.totalorder %s22, 0
      %p146 = por %p144, %p145
      %p147 = scmp.ne.s32.totalorder %s136, %s139
      %p148 = scmp.eq.s32.totalorder %s27, 1
      %p149 = por %p147, %p148
      %p150 = scmp.ne.s32.totalorder %s139, %s140
      %p151 = scmp.eq.s32.totalorder %s27, 0
      %p152 = por %p150, %p151
      %p153 = scmp.ne.s32.totalorder %s139, %s140
      %p154 = scmp.eq.s32.totalorder %s28, 1
      %p155 = por %p153, %p154
      %p157 = scmp.ne.s32.totalorder %s140, %s156
      %p158 = scmp.eq.s32.totalorder %s28, 0
      %p159 = por %p157, %p158
      %s160 = ssub.s32 %s22, %s29
      %p161 = scmp.eq.s32.totalorder %s160, 0
      %s163 = sadd.s32 %s162, 1
      %s164 = scalar_select %p161, %s162, %s163
      %p167 = pneg %p161
      %p168 = scmp.eq.s32.totalorder %s22, 1
      %p169 = por %p167, %p168
      %p170 = scmp.ne.s32.totalorder %s162, %s165
      %p171 = scmp.eq.s32.totalorder %s22, 0
      %p172 = por %p170, %p171
      %p173 = scmp.ne.s32.totalorder %s162, %s165
      %p174 = scmp.eq.s32.totalorder %s27, 1
      %p175 = por %p173, %p174
      %p176 = scmp.ne.s32.totalorder %s165, %s166
      %p177 = scmp.eq.s32.totalorder %s27, 0
      %p178 = por %p176, %p177
      %p179 = scmp.ne.s32.totalorder %s165, %s166
      %p180 = scmp.eq.s32.totalorder %s28, 1
      %p181 = por %p179, %p180
      %p183 = scmp.ne.s32.totalorder %s166, %s182
      %p184 = scmp.eq.s32.totalorder %s28, 0
      %p185 = por %p183, %p184
      %s186 = ssub.s32 %s22, %s29
      %p187 = scmp.eq.s32.totalorder %s186, 0
      %s189 = sadd.s32 %s188, 1
      %s190 = scalar_select %p187, %s188, %s189
      %p193 = pneg %p187
      %p194 = scmp.eq.s32.totalorder %s22, 1
      %p195 = por %p193, %p194
      %p196 = scmp.ne.s32.totalorder %s188, %s191
      %p197 = scmp.eq.s32.totalorder %s22, 0
      %p198 = por %p196, %p197
      %p199 = scmp.ne.s32.totalorder %s188, %s191
      %p200 = scmp.eq.s32.totalorder %s27, 1
      %p201 = por %p199, %p200
      %p202 = scmp.ne.s32.totalorder %s191, %s192
      %p203 = scmp.eq.s32.totalorder %s27, 0
      %p204 = por %p202, %p203
      %p205 = scmp.ne.s32.totalorder %s191, %s192
      %p206 = scmp.eq.s32.totalorder %s28, 1
      %p207 = por %p205, %p206
      %p209 = scmp.ne.s32.totalorder %s192, %s208
      %p210 = scmp.eq.s32.totalorder %s28, 0
      %p211 = por %p209, %p210
      %s212 = ssub.s32 %s22, %s29
      %p213 = scmp.eq.s32.totalorder %s212, 0
      %s215 = sadd.s32 %s214, 1
      %s216 = scalar_select %p213, %s214, %s215
      %p219 = pneg %p213
      %p220 = scmp.eq.s32.totalorder %s22, 1
      %p221 = por %p219, %p220
      %p222 = scmp.ne.s32.totalorder %s214, %s217
      %p223 = scmp.eq.s32.totalorder %s22, 0
      %p224 = por %p222, %p223
      %p225 = scmp.ne.s32.totalorder %s214, %s217
      %p226 = scmp.eq.s32.totalorder %s27, 1
      %p227 = por %p225, %p226
      %p228 = scmp.ne.s32.totalorder %s217, %s218
      %p229 = scmp.eq.s32.totalorder %s27, 0
      %p230 = por %p228, %p229
      %p231 = scmp.ne.s32.totalorder %s217, %s218
      %p232 = scmp.eq.s32.totalorder %s28, 1
      %p233 = por %p231, %p232
      %p235 = scmp.ne.s32.totalorder %s218, %s234
      %p236 = scmp.eq.s32.totalorder %s28, 0
      %p237 = por %p235, %p236
      %p238 = scmp.le.s32.totalorder 1, %s22
      %p239 = scmp.lt.s32.totalorder %s22, 3
      %p240 = pnand %p238, %p239
      %p241 = pneg %p240
      // Predicated region
      $region9: #{tpu_custom_call.1} parent=5 // pred_check
        _
      $region10: #{tpu_custom_call.1} parent=5 // pred_check_branch
        %243 = sbr.rel (%p240) target = $region12
      $region11: #{tpu_custom_call.1} parent=5 // pred_region
        %s244 = ssub.s32 %s22, 1
      $region12: #{tpu_custom_call.1} parent=5 // pred_fallthru
        _
      %p245 = scmp.lt.s32.totalorder %s22, 2
      // Predicated region
      $region13: #{tpu_custom_call.1} parent=5 // pred_check
        %p246 = pneg %p245
      $region14: #{tpu_custom_call.1} parent=5 // pred_check_branch
        %248 = sbr.rel (%p246) target = $region16
      $region15: #{tpu_custom_call.1} parent=5 // pred_region
        // Predicated region
        $region17: #{tpu_custom_call.1} parent=15 // pred_check
          %p249 = pneg %p42
        $region18: #{tpu_custom_call.1} parent=15 // pred_check_branch
          %251 = sbr.rel (%p249) target = $region20
        $region19: #{tpu_custom_call.1} parent=15 // pred_region
          %p252 = scmp.lt.s32.totalorder %s22, 1
          %s253 = scalar_select %p252, %s22, 1
          %s254 = smul.addr %s253, 2
          %s255 = smul.addr %s254, 8
          %s256 = scalar_lea.vmem %s0, %s255
        $region20: #{tpu_custom_call.1} parent=15 // pred_fallthru
          _
        // Predicated region
        $region21: #{tpu_custom_call.1} parent=15 // pred_check
          %p257 = pneg %p68
        $region22: #{tpu_custom_call.1} parent=15 // pred_check_branch
          %259 = sbr.rel (%p257) target = $region24
        $region23: #{tpu_custom_call.1} parent=15 // pred_region
          %s260 = sand.u32 %s58, 1
          %s261 = scalar_lea.sflag [#allocation3], %s260
          %s262 = sand.u32 %s58, 1
          %s263 = smul.addr %s262, 512
          %s264 = scalar_lea.vmem [#allocation2], %s263
          %s266 = ssub.s32 8192, 8192
          %267 = vsyncadd %s261, %s266
          %s268 = smul.addr %s22, 128
          %s269 = smul.addr %s268, 64
          %s270 = scalar_lea.hbm %s1, %s269
          %s271 = sshll.u32 %s264, 4
          %s272 = int_to_ptr.vmem [resolvable:$true] %s271
          %277 = dma.hbm_to_vmem [thread:$0]  %s270, 8192, %s272, %s261, 64, 64, 4
        $region24: #{tpu_custom_call.1} parent=15 // pred_fallthru
          _
        // Predicated region
        $region25: #{tpu_custom_call.1} parent=15 // pred_check
          %p278 = pneg %p94
        $region26: #{tpu_custom_call.1} parent=15 // pred_check_branch
          %280 = sbr.rel (%p278) target = $region28
        $region27: #{tpu_custom_call.1} parent=15 // pred_region
          %s281 = sand.u32 %s22, 1
          %s282 = scalar_lea.sflag [#allocation6], %s281
          %s283 = sand.u32 %s84, 1
          %s284 = smul.addr %s283, 256
          %s285 = scalar_lea.vmem [#allocation5], %s284
          %s287 = ssub.s32 4096, 4096
          %288 = vsyncadd %s282, %s287
          %s289 = smul.addr %s22, 64
          %s290 = smul.addr %s289, 64
          %s291 = scalar_lea.hbm %s2, %s290
          %s292 = sshll.u32 %s285, 4
          %s293 = int_to_ptr.vmem [resolvable:$true] %s292
          %298 = dma.hbm_to_vmem [thread:$0]  %s291, 4096, %s293, %s282, 128, 128, 8
        $region28: #{tpu_custom_call.1} parent=15 // pred_fallthru
          _
        // Predicated region
        $region29: #{tpu_custom_call.1} parent=15 // pred_check
          %p299 = pneg %p120
        $region30: #{tpu_custom_call.1} parent=15 // pred_check_branch
          %301 = sbr.rel (%p299) target = $region32
        $region31: #{tpu_custom_call.1} parent=15 // pred_region
          %s302 = sand.u32 %s22, 1
          %s303 = scalar_lea.sflag [#allocation6], %s302
          %s304 = sand.u32 %s110, 1
          %s305 = smul.addr %s304, 256
          %s306 = scalar_lea.vmem [#allocation7], %s305
          %s308 = ssub.s32 4096, 4096
          %309 = vsyncadd %s303, %s308
          %s310 = smul.addr %s22, 64
          %s311 = smul.addr %s310, 64
          %s312 = scalar_lea.hbm %s3, %s311
          %s313 = sshll.u32 %s306, 4
          %s314 = int_to_ptr.vmem [resolvable:$true] %s313
          %319 = dma.hbm_to_vmem [thread:$0]  %s312, 4096, %s314, %s303, 64, 64, 4
        $region32: #{tpu_custom_call.1} parent=15 // pred_fallthru
          _
        // Predicated region
        $region33: #{tpu_custom_call.1} parent=15 // pred_check
          %p320 = pneg %p146
        $region34: #{tpu_custom_call.1} parent=15 // pred_check_branch
          %322 = sbr.rel (%p320) target = $region36
        $region35: #{tpu_custom_call.1} parent=15 // pred_region
          %p323 = scmp.lt.s32.totalorder %s22, 1
          %s324 = scalar_select %p323, %s22, 1
          %s325 = smul.addr %s324, 4
          %s326 = scalar_lea.vmem %s4, %s325
        $region36: #{tpu_custom_call.1} parent=15 // pred_fallthru
          _
        // Predicated region
        $region37: #{tpu_custom_call.1} parent=15 // pred_check
          %p327 = pneg %p172
        $region38: #{tpu_custom_call.1} parent=15 // pred_check_branch
          %329 = sbr.rel (%p327) target = $region40
        $region39: #{tpu_custom_call.1} parent=15 // pred_region
          %p330 = scmp.lt.s32.totalorder %s22, 1
          %s331 = scalar_select %p330, %s22, 1
          %s332 = smul.addr %s331, 4
          %s333 = smul.addr %s332, 8
          %s334 = scalar_lea.vmem %s5, %s333
        $region40: #{tpu_custom_call.1} parent=15 // pred_fallthru
          _
        // Predicated region
        $region41: #{tpu_custom_call.1} parent=15 // pred_check
          %p335 = pneg %p198
        $region42: #{tpu_custom_call.1} parent=15 // pred_check_branch
          %337 = sbr.rel (%p335) target = $region44
        $region43: #{tpu_custom_call.1} parent=15 // pred_region
          %p338 = scmp.lt.s32.totalorder %s22, 1
          %s339 = scalar_select %p338, %s22, 1
          %s340 = smul.addr %s339, 2
          %s341 = scalar_lea.vmem %s6, %s340
        $region44: #{tpu_custom_call.1} parent=15 // pred_fallthru
          _
      $region16: #{tpu_custom_call.1} parent=5 // pred_fallthru
        _
      %p342 = scmp.le.s32.totalorder 1, %s22
      %p343 = scmp.lt.s32.totalorder %s22, 3
      %p344 = pnand %p342, %p343
      %p345 = pneg %p344
      // Predicated region
      $region45: #{tpu_custom_call.1} parent=5 // pred_check
        _
      $region46: #{tpu_custom_call.1} parent=5 // pred_check_branch
        %347 = sbr.rel (%p344) target = $region48
      $region47: #{tpu_custom_call.1} parent=5 // pred_region
        %s348 = ssub.s32 %s22, 1
        %s349 = sand.u32 %s61, 1
        %s350 = scalar_lea.sflag [#allocation3], %s349
        %s351 = sand.u32 %s61, 1
        %s352 = smul.addr %s351, 512
        %s353 = scalar_lea.vmem [#allocation2], %s352
        // Predicated region
        $region49: #{tpu_custom_call.1} parent=47 // pred_check
          %p354 = pneg %p74
        $region50: #{tpu_custom_call.1} parent=47 // pred_check_branch
          %356 = sbr.rel (%p354) target = $region52
        $region51: #{tpu_custom_call.1} parent=47 // pred_region
          %357 = dma.done %s350, 8192
        $region52: #{tpu_custom_call.1} parent=47 // pred_fallthru
          _
        %s358 = sand.u32 %s27, 1
        %s359 = scalar_lea.sflag [#allocation6], %s358
        %s360 = sand.u32 %s87, 1
        %s361 = smul.addr %s360, 256
        %s362 = scalar_lea.vmem [#allocation5], %s361
        // Predicated region
        $region53: #{tpu_custom_call.1} parent=47 // pred_check
          %p363 = pneg %p100
        $region54: #{tpu_custom_call.1} parent=47 // pred_check_branch
          %365 = sbr.rel (%p363) target = $region56
        $region55: #{tpu_custom_call.1} parent=47 // pred_region
          %366 = dma.done %s359, 4096
        $region56: #{tpu_custom_call.1} parent=47 // pred_fallthru
          _
        %s367 = sand.u32 %s27, 1
        %s368 = scalar_lea.sflag [#allocation6], %s367
        %s369 = sand.u32 %s113, 1
        %s370 = smul.addr %s369, 256
        %s371 = scalar_lea.vmem [#allocation7], %s370
        // Predicated region
        $region57: #{tpu_custom_call.1} parent=47 // pred_check
          %p372 = pneg %p126
        $region58: #{tpu_custom_call.1} parent=47 // pred_check_branch
          %374 = sbr.rel (%p372) target = $region60
        $region59: #{tpu_custom_call.1} parent=47 // pred_region
          %375 = dma.done %s368, 4096
        $region60: #{tpu_custom_call.1} parent=47 // pred_fallthru
          _
        %p376 = scmp.lt.s32.totalorder %s27, 1
        %s377 = scalar_select %p376, %s27, 1
        %s378 = smul.addr %s377, 2
        %s379 = smul.addr %s378, 8
        %s380 = scalar_lea.vmem %s0, %s379
        %p381 = pneg %p48
        %p382 = pneg %p45
        %s383 = sand.u32 %s61, 1
        %s384 = scalar_lea.sflag [#allocation3], %s383
        %s385 = sand.u32 %s61, 1
        %s386 = smul.addr %s385, 512
        %s387 = scalar_lea.vmem [#allocation2], %s386
        %p388 = pneg %p74
        %p389 = pneg %p71
        %s390 = sand.u32 %s27, 1
        %s391 = scalar_lea.sflag [#allocation6], %s390
        %s392 = sand.u32 %s87, 1
        %s393 = smul.addr %s392, 256
        %s394 = scalar_lea.vmem [#allocation5], %s393
        %p395 = pneg %p100
        %p396 = pneg %p97
        %s397 = sand.u32 %s27, 1
        %s398 = scalar_lea.sflag [#allocation6], %s397
        %s399 = sand.u32 %s113, 1
        %s400 = smul.addr %s399, 256
        %s401 = scalar_lea.vmem [#allocation7], %s400
        %p402 = pneg %p126
        %p403 = pneg %p123
        %p404 = scmp.lt.s32.totalorder %s27, 1
        %s405 = scalar_select %p404, %s27, 1
        %s406 = smul.addr %s405, 4
        %s407 = scalar_lea.vmem %s4, %s406
        %p408 = pneg %p152
        %p409 = pneg %p149
        %p410 = scmp.lt.s32.totalorder %s27, 1
        %s411 = scalar_select %p410, %s27, 1
        %s412 = smul.addr %s411, 4
        %s413 = smul.addr %s412, 8
        %s414 = scalar_lea.vmem %s5, %s413
        %p415 = pneg %p178
        %p416 = pneg %p175
        %p417 = scmp.lt.s32.totalorder %s27, 1
        %s418 = scalar_select %p417, %s27, 1
        %s419 = smul.addr %s418, 2
        %s420 = scalar_lea.vmem %s6, %s419
        %p421 = pneg %p204
        %p422 = pneg %p201
        %p423 = pneg %p230
        %p424 = pneg %p227
        %s425 = sand.u32 %s217, 1
        %s426 = scalar_lea.sflag [#allocation4], %s425
        %s427 = sand.u32 %s217, 1
        %s428 = smul.addr %s427, 2
        %s429 = scalar_lea.vmem [#allocation8], %s428
        %p430 = scmp.lt.s32.totalorder %s27, 1
        %s431 = scalar_select %p430, %s27, 1
        %s432 = smul.addr %s431, 2
        %s433 = smul.addr %s432, 8
        %s434 = scalar_lea.vmem %s0, %s433
        %p435 = scmp.lt.s32.totalorder %s27, 1
        %s436 = scalar_select %p435, %s27, 1
        %s437 = smul.addr %s436, 4
        %s438 = scalar_lea.vmem %s4, %s437
        %p439 = scmp.lt.s32.totalorder %s27, 1
        %s440 = scalar_select %p439, %s27, 1
        %s441 = smul.addr %s440, 4
        %s442 = smul.addr %s441, 8
        %s443 = scalar_lea.vmem %s5, %s442
        %p444 = scmp.lt.s32.totalorder %s27, 1
        %s445 = scalar_select %p444, %s27, 1
        %s446 = smul.addr %s445, 2
        %s447 = scalar_lea.vmem %s6, %s446
        %v449 = vld [vmem:[%s434] sm:$0xff]
        %v450 = vld [vmem:[%s434 + $0x8] sm:$0xff]
        %v451 = vld [vmem:[%s353] sm:$0xf]
        %v452 = vld [vmem:[%s353 + $0x4] sm:$0xf]
        %v453 = vld [vmem:[%s353 + $0x8] sm:$0xf]
        %v454 = vld [vmem:[%s353 + $0xc] sm:$0xf]
        %v455 = vld [vmem:[%s353 + $0x10] sm:$0xf]
        %v456 = vld [vmem:[%s353 + $0x14] sm:$0xf]
        %v457 = vld [vmem:[%s353 + $0x18] sm:$0xf]
        %v458 = vld [vmem:[%s353 + $0x1c] sm:$0xf]
        %v459 = vld [vmem:[%s353 + $0x20] sm:$0xf]
        %v460 = vld [vmem:[%s353 + $0x24] sm:$0xf]
        %v461 = vld [vmem:[%s353 + $0x28] sm:$0xf]
        %v462 = vld [vmem:[%s353 + $0x2c] sm:$0xf]
        %v463 = vld [vmem:[%s353 + $0x30] sm:$0xf]
        %v464 = vld [vmem:[%s353 + $0x34] sm:$0xf]
        %v465 = vld [vmem:[%s353 + $0x38] sm:$0xf]
        %v466 = vld [vmem:[%s353 + $0x3c] sm:$0xf]
        %s467 = scalar_lea.vmem %s353, 64 [#allocation2]
        %v468 = vld [vmem:[%s467] sm:$0xf]
        %v469 = vld [vmem:[%s467 + $0x4] sm:$0xf]
        %v470 = vld [vmem:[%s467 + $0x8] sm:$0xf]
        %v471 = vld [vmem:[%s467 + $0xc] sm:$0xf]
        %v472 = vld [vmem:[%s467 + $0x10] sm:$0xf]
        %v473 = vld [vmem:[%s467 + $0x14] sm:$0xf]
        %v474 = vld [vmem:[%s467 + $0x18] sm:$0xf]
        %v475 = vld [vmem:[%s467 + $0x1c] sm:$0xf]
        %v476 = vld [vmem:[%s467 + $0x20] sm:$0xf]
        %v477 = vld [vmem:[%s467 + $0x24] sm:$0xf]
        %v478 = vld [vmem:[%s467 + $0x28] sm:$0xf]
        %v479 = vld [vmem:[%s467 + $0x2c] sm:$0xf]
        %v480 = vld [vmem:[%s467 + $0x30] sm:$0xf]
        %v481 = vld [vmem:[%s467 + $0x34] sm:$0xf]
        %v482 = vld [vmem:[%s467 + $0x38] sm:$0xf]
        %v483 = vld [vmem:[%s467 + $0x3c] sm:$0xf]
        %s484 = scalar_lea.vmem %s353, 128 [#allocation2]
        %v485 = vld [vmem:[%s484] sm:$0xf]
        %v486 = vld [vmem:[%s484 + $0x4] sm:$0xf]
        %v487 = vld [vmem:[%s484 + $0x8] sm:$0xf]
        %v488 = vld [vmem:[%s484 + $0xc] sm:$0xf]
        %v489 = vld [vmem:[%s484 + $0x10] sm:$0xf]
        %v490 = vld [vmem:[%s484 + $0x14] sm:$0xf]
        %v491 = vld [vmem:[%s484 + $0x18] sm:$0xf]
        %v492 = vld [vmem:[%s484 + $0x1c] sm:$0xf]
        %v493 = vld [vmem:[%s484 + $0x20] sm:$0xf]
        %v494 = vld [vmem:[%s484 + $0x24] sm:$0xf]
        %v495 = vld [vmem:[%s484 + $0x28] sm:$0xf]
        %v496 = vld [vmem:[%s484 + $0x2c] sm:$0xf]
        %v497 = vld [vmem:[%s484 + $0x30] sm:$0xf]
        %v498 = vld [vmem:[%s484 + $0x34] sm:$0xf]
        %v499 = vld [vmem:[%s484 + $0x38] sm:$0xf]
        %v500 = vld [vmem:[%s484 + $0x3c] sm:$0xf]
        %s501 = scalar_lea.vmem %s353, 192 [#allocation2]
        %v502 = vld [vmem:[%s501] sm:$0xf]
        %v503 = vld [vmem:[%s501 + $0x4] sm:$0xf]
        %v504 = vld [vmem:[%s501 + $0x8] sm:$0xf]
        %v505 = vld [vmem:[%s501 + $0xc] sm:$0xf]
        %v506 = vld [vmem:[%s501 + $0x10] sm:$0xf]
        %v507 = vld [vmem:[%s501 + $0x14] sm:$0xf]
        %v508 = vld [vmem:[%s501 + $0x18] sm:$0xf]
        %v509 = vld [vmem:[%s501 + $0x1c] sm:$0xf]
        %v510 = vld [vmem:[%s501 + $0x20] sm:$0xf]
        %v511 = vld [vmem:[%s501 + $0x24] sm:$0xf]
        %v512 = vld [vmem:[%s501 + $0x28] sm:$0xf]
        %v513 = vld [vmem:[%s501 + $0x2c] sm:$0xf]
        %v514 = vld [vmem:[%s501 + $0x30] sm:$0xf]
        %v515 = vld [vmem:[%s501 + $0x34] sm:$0xf]
        %v516 = vld [vmem:[%s501 + $0x38] sm:$0xf]
        %v517 = vld [vmem:[%s501 + $0x3c] sm:$0xf]
        %v518 = vld [vmem:[%s443] sm:$0x1]
        %v519 = vld [vmem:[%s443 + $0x1] sm:$0x1]
        %v520 = vld [vmem:[%s443 + $0x2] sm:$0x1]
        %v521 = vld [vmem:[%s443 + $0x3] sm:$0x1]
        %v522 = vld [vmem:[%s443 + $0x4] sm:$0x1]
        %v523 = vld [vmem:[%s443 + $0x5] sm:$0x1]
        %v524 = vld [vmem:[%s443 + $0x6] sm:$0x1]
        %v525 = vld [vmem:[%s443 + $0x7] sm:$0x1]
        %v526 = vld [vmem:[%s443 + $0x8] sm:$0x1]
        %v527 = vpack.c.bf16 %v450, %v449
        %v528 = vlaneseq
        %v529 = vshrl.u32 %v528, 7
        %v530 = vsub.s32 0, %v529
        %v531 = vrot.slane %v518, %v530
        %v548 = vunpack.c.l.b16 %v451
        %v549 = vunpack.c.l.b16 %v452
        %v550 = vunpack.c.l.b16 %v453
        %v551 = vunpack.c.l.b16 %v454
        %v552 = vunpack.c.l.b16 %v455
        %v553 = vunpack.c.l.b16 %v456
        %v554 = vunpack.c.l.b16 %v457
        %v555 = vunpack.c.l.b16 %v458
        %v556 = vunpack.c.l.b16 %v459
        %v557 = vunpack.c.l.b16 %v460
        %v558 = vunpack.c.l.b16 %v461
        %v559 = vunpack.c.l.b16 %v462
        %v560 = vunpack.c.l.b16 %v463
        %v561 = vunpack.c.l.b16 %v464
        %v562 = vunpack.c.l.b16 %v465
        %v563 = vunpack.c.l.b16 %v466
        %v564 = vpack.c.b16 %v549, %v548
        %v565 = vpack.c.b16 %v551, %v550
        %v566 = vpack.c.b16 %v553, %v552
        %v567 = vpack.c.b16 %v555, %v554
        %v568 = vpack.c.b16 %v557, %v556
        %v569 = vpack.c.b16 %v559, %v558
        %v570 = vpack.c.b16 %v561, %v560
        %v571 = vpack.c.b16 %v563, %v562
        %580 = vmatprep.subr.bf16.mxu0 0
        %581 = vmatpush1.bf16.msra.mxu0 %v564
        %582 = vmatprep.subr.bf16.mxu0 0
        %583 = vmatpush1.bf16.msra.mxu0 %v565
        %584 = vmatprep.subr.bf16.mxu0 0
        %585 = vmatpush1.bf16.msra.mxu0 %v566
        %586 = vmatprep.subr.bf16.mxu0 0
        %587 = vmatpush1.bf16.msra.mxu0 %v567
        %588 = vmatprep.subr.bf16.mxu0 0
        %589 = vmatpush1.bf16.msra.mxu0 %v568
        %590 = vmatprep.subr.bf16.mxu0 0
        %591 = vmatpush1.bf16.msra.mxu0 %v569
        %592 = vmatprep.subr.bf16.mxu0 0
        %593 = vmatpush1.bf16.msra.mxu0 %v570
        %594 = vmatprep.subr.bf16.mxu0 0
        %595 = vmatpush1.bf16.msra.mxu0 %v571
        %596 = vmatprep.subr.bf16.mxu0 0
        %597 = vmatpush1.bf16.msra.mxu0 0
        %598 = vmatprep.subr.bf16.mxu0 0
        %599 = vmatpush1.bf16.msra.mxu0 0
        %600 = vmatprep.subr.bf16.mxu0 0
        %601 = vmatpush1.bf16.msra.mxu0 0
        %602 = vmatprep.subr.bf16.mxu0 0
        %603 = vmatpush1.bf16.msra.mxu0 0
        %604 = vmatprep.subr.bf16.mxu0 0
        %605 = vmatpush1.bf16.msra.mxu0 0
        %606 = vmatprep.subr.bf16.mxu0 0
        %607 = vmatpush1.bf16.msra.mxu0 0
        %608 = vmatprep.subr.bf16.mxu0 0
        %609 = vmatpush1.bf16.msra.mxu0 0
        %610 = vmatprep.subr.bf16.mxu0 0
        %611 = vmatpush1.bf16.msra.mxu0 0
        %612 = vmatprep.mubr.bf16.mxu0 0
        %613 = vmatmul.mubr.bf16.gmra.mrb[0].mxu0 %v527
        %v614 = vpop.f32.mrb[0].mxu0
        %v615 = vadd.f32 %v531, %v614
        %v616 = vpop.f32.mrb[0].mxu0
        %v617 = vpop.f32.mrb[0].mxu0
        %v618 = vadd.f32 %v531, %v617
        %v619 = vpop.f32.mrb[0].mxu0
        %620 = vdwg.mxu0
        %v621 = vlaneseq
        %v622 = vshrl.u32 %v621, 7
        %v623 = vsub.s32 0, %v622
        %v624 = vrot.slane %v519, %v623
        %v641 = vunpack.c.l.b16 %v468
        %v642 = vunpack.c.l.b16 %v469
        %v643 = vunpack.c.l.b16 %v470
        %v644 = vunpack.c.l.b16 %v471
        %v645 = vunpack.c.l.b16 %v472
        %v646 = vunpack.c.l.b16 %v473
        %v647 = vunpack.c.l.b16 %v474
        %v648 = vunpack.c.l.b16 %v475
        %v649 = vunpack.c.l.b16 %v476
        %v650 = vunpack.c.l.b16 %v477
        %v651 = vunpack.c.l.b16 %v478
        %v652 = vunpack.c.l.b16 %v479
        %v653 = vunpack.c.l.b16 %v480
        %v654 = vunpack.c.l.b16 %v481
        %v655 = vunpack.c.l.b16 %v482
        %v656 = vunpack.c.l.b16 %v483
        %v657 = vpack.c.b16 %v642, %v641
        %v658 = vpack.c.b16 %v644, %v643
        %v659 = vpack.c.b16 %v646, %v645
        %v660 = vpack.c.b16 %v648, %v647
        %v661 = vpack.c.b16 %v650, %v649
        %v662 = vpack.c.b16 %v652, %v651
        %v663 = vpack.c.b16 %v654, %v653
        %v664 = vpack.c.b16 %v656, %v655
        %673 = vmatprep.subr.bf16.mxu0 0
        %674 = vmatpush1.bf16.msra.mxu0 %v657
        %675 = vmatprep.subr.bf16.mxu0 0
        %676 = vmatpush1.bf16.msra.mxu0 %v658
        %677 = vmatprep.subr.bf16.mxu0 0
        %678 = vmatpush1.bf16.msra.mxu0 %v659
        %679 = vmatprep.subr.bf16.mxu0 0
        %680 = vmatpush1.bf16.msra.mxu0 %v660
        %681 = vmatprep.subr.bf16.mxu0 0
        %682 = vmatpush1.bf16.msra.mxu0 %v661
        %683 = vmatprep.subr.bf16.mxu0 0
        %684 = vmatpush1.bf16.msra.mxu0 %v662
        %685 = vmatprep.subr.bf16.mxu0 0
        %686 = vmatpush1.bf16.msra.mxu0 %v663
        %687 = vmatprep.subr.bf16.mxu0 0
        %688 = vmatpush1.bf16.msra.mxu0 %v664
        %689 = vmatprep.subr.bf16.mxu0 0
        %690 = vmatpush1.bf16.msra.mxu0 0
        %691 = vmatprep.subr.bf16.mxu0 0
        %692 = vmatpush1.bf16.msra.mxu0 0
        %693 = vmatprep.subr.bf16.mxu0 0
        %694 = vmatpush1.bf16.msra.mxu0 0
        %695 = vmatprep.subr.bf16.mxu0 0
        %696 = vmatpush1.bf16.msra.mxu0 0
        %697 = vmatprep.subr.bf16.mxu0 0
        %698 = vmatpush1.bf16.msra.mxu0 0
        %699 = vmatprep.subr.bf16.mxu0 0
        %700 = vmatpush1.bf16.msra.mxu0 0
        %701 = vmatprep.subr.bf16.mxu0 0
        %702 = vmatpush1.bf16.msra.mxu0 0
        %703 = vmatprep.subr.bf16.mxu0 0
        %704 = vmatpush1.bf16.msra.mxu0 0
        %705 = vmatprep.mubr.bf16.mxu0 0
        %706 = vmatmul.mubr.bf16.gmra.mrb[0].mxu0 %v527
        %v707 = vpop.f32.mrb[0].mxu0
        %v708 = vadd.f32 %v624, %v707
        %v709 = vpop.f32.mrb[0].mxu0
        %v710 = vpop.f32.mrb[0].mxu0
        %v711 = vadd.f32 %v624, %v710
        %v712 = vpop.f32.mrb[0].mxu0
        %713 = vdwg.mxu0
        %v714 = vlaneseq
        %v715 = vshrl.u32 %v714, 7
        %v716 = vsub.s32 0, %v715
        %v717 = vrot.slane %v520, %v716
        %v734 = vunpack.c.l.b16 %v485
        %v735 = vunpack.c.l.b16 %v486
        %v736 = vunpack.c.l.b16 %v487
        %v737 = vunpack.c.l.b16 %v488
        %v738 = vunpack.c.l.b16 %v489
        %v739 = vunpack.c.l.b16 %v490
        %v740 = vunpack.c.l.b16 %v491
        %v741 = vunpack.c.l.b16 %v492
        %v742 = vunpack.c.l.b16 %v493
        %v743 = vunpack.c.l.b16 %v494
        %v744 = vunpack.c.l.b16 %v495
        %v745 = vunpack.c.l.b16 %v496
        %v746 = vunpack.c.l.b16 %v497
        %v747 = vunpack.c.l.b16 %v498
        %v748 = vunpack.c.l.b16 %v499
        %v749 = vunpack.c.l.b16 %v500
        %v750 = vpack.c.b16 %v735, %v734
        %v751 = vpack.c.b16 %v737, %v736
        %v752 = vpack.c.b16 %v739, %v738
        %v753 = vpack.c.b16 %v741, %v740
        %v754 = vpack.c.b16 %v743, %v742
        %v755 = vpack.c.b16 %v745, %v744
        %v756 = vpack.c.b16 %v747, %v746
        %v757 = vpack.c.b16 %v749, %v748
        %766 = vmatprep.subr.bf16.mxu0 0
        %767 = vmatpush1.bf16.msra.mxu0 %v750
        %768 = vmatprep.subr.bf16.mxu0 0
        %769 = vmatpush1.bf16.msra.mxu0 %v751
        %770 = vmatprep.subr.bf16.mxu0 0
        %771 = vmatpush1.bf16.msra.mxu0 %v752
        %772 = vmatprep.subr.bf16.mxu0 0
        %773 = vmatpush1.bf16.msra.mxu0 %v753
        %774 = vmatprep.subr.bf16.mxu0 0
        %775 = vmatpush1.bf16.msra.mxu0 %v754
        %776 = vmatprep.subr.bf16.mxu0 0
        %777 = vmatpush1.bf16.msra.mxu0 %v755
        %778 = vmatprep.subr.bf16.mxu0 0
        %779 = vmatpush1.bf16.msra.mxu0 %v756
        %780 = vmatprep.subr.bf16.mxu0 0
        %781 = vmatpush1.bf16.msra.mxu0 %v757
        %782 = vmatprep.subr.bf16.mxu0 0
        %783 = vmatpush1.bf16.msra.mxu0 0
        %784 = vmatprep.subr.bf16.mxu0 0
        %785 = vmatpush1.bf16.msra.mxu0 0
        %786 = vmatprep.subr.bf16.mxu0 0
        %787 = vmatpush1.bf16.msra.mxu0 0
        %788 = vmatprep.subr.bf16.mxu0 0
        %789 = vmatpush1.bf16.msra.mxu0 0
        %790 = vmatprep.subr.bf16.mxu0 0
        %791 = vmatpush1.bf16.msra.mxu0 0
        %792 = vmatprep.subr.bf16.mxu0 0
        %793 = vmatpush1.bf16.msra.mxu0 0
        %794 = vmatprep.subr.bf16.mxu0 0
        %795 = vmatpush1.bf16.msra.mxu0 0
        %796 = vmatprep.subr.bf16.mxu0 0
        %797 = vmatpush1.bf16.msra.mxu0 0
        %798 = vmatprep.mubr.bf16.mxu0 0
        %799 = vmatmul.mubr.bf16.gmra.mrb[0].mxu0 %v527
        %v800 = vpop.f32.mrb[0].mxu0
        %v801 = vadd.f32 %v717, %v800
        %v802 = vpop.f32.mrb[0].mxu0
        %v803 = vpop.f32.mrb[0].mxu0
        %v804 = vadd.f32 %v717, %v803
        %v805 = vpop.f32.mrb[0].mxu0
        %806 = vdwg.mxu0
        %v807 = vpack.c.bf16 %v615, %v615
        %v808 = vpack.c.bf16 %v618, %v618
        %v809 = vpack.c.bf16 %v708, %v708
        %v810 = vpack.c.bf16 %v711, %v711
        %v811 = vpack.c.bf16 %v801, %v801
        %v812 = vpack.c.bf16 %v804, %v804
        %813 = vmatprep.subr.bf16.mxu0 0
        %814 = vmatpush1.bf16.xpose.msra.mxu0 %v809
        %815 = vmatprep.subr.bf16.mxu0 0
        %816 = vmatpush1.bf16.xpose.msra.mxu0 0
        %817 = vmatprep.subr.bf16.mxu0 0
        %818 = vmatpush1.bf16.xpose.msra.mxu0 0
        %819 = vmatprep.subr.bf16.mxu0 0
        %820 = vmatpush1.bf16.xpose.msra.mxu0 0
        %821 = vmatprep.subr.bf16.mxu0 0
        %822 = vmatpush1.bf16.xpose.msra.mxu0 0
        %823 = vmatprep.subr.bf16.mxu0 0
        %824 = vmatpush1.bf16.xpose.msra.mxu0 0
        %825 = vmatprep.subr.bf16.mxu0 0
        %826 = vmatpush1.bf16.xpose.msra.mxu0 0
        %827 = vmatprep.subr.bf16.mxu0 0
        %828 = vmatpush1.bf16.xpose.msra.mxu0 0
        %829 = vmatprep.subr.bf16.mxu0 0
        %830 = vmatpush1.bf16.xpose.msra.mxu0 0
        %831 = vmatprep.subr.bf16.mxu0 0
        %832 = vmatpush1.bf16.xpose.msra.mxu0 0
        %833 = vmatprep.subr.bf16.mxu0 0
        %834 = vmatpush1.bf16.xpose.msra.mxu0 0
        %835 = vmatprep.subr.bf16.mxu0 0
        %836 = vmatpush1.bf16.xpose.msra.mxu0 0
        %837 = vmatprep.subr.bf16.mxu0 0
        %838 = vmatpush1.bf16.xpose.msra.mxu0 0
        %839 = vmatprep.subr.bf16.mxu0 0
        %840 = vmatpush1.bf16.xpose.msra.mxu0 0
        %841 = vmatprep.subr.bf16.mxu0 0
        %842 = vmatpush1.bf16.xpose.msra.mxu0 0
        %843 = vmatprep.subr.bf16.mxu0 0
        %844 = vmatpush1.bf16.xpose.msra.mxu0 0
        %845 = vmatprep.mubr.bf16.mxu0 0
        %846 = vmatmul.mubr.bf16.gmra.mrb[0].mxu0 %v807
        %v847 = vpop.f32.mrb[0].mxu0
        %v848 = vadd.f32 0.0, %v847
        %v849 = vpop.f32.mrb[0].mxu0
        %v850 = vpop.f32.mrb[0].mxu0
        %v851 = vpop.f32.mrb[0].mxu0
        %852 = vdwg.mxu0
        %853 = vmatprep.subr.bf16.mxu0 0
        %854 = vmatpush1.bf16.xpose.msra.mxu0 %v810
        %855 = vmatprep.subr.bf16.mxu0 0
        %856 = vmatpush1.bf16.xpose.msra.mxu0 0
        %857 = vmatprep.subr.bf16.mxu0 0
        %858 = vmatpush1.bf16.xpose.msra.mxu0 0
        %859 = vmatprep.subr.bf16.mxu0 0
        %860 = vmatpush1.bf16.xpose.msra.mxu0 0
        %861 = vmatprep.subr.bf16.mxu0 0
        %862 = vmatpush1.bf16.xpose.msra.mxu0 0
        %863 = vmatprep.subr.bf16.mxu0 0
        %864 = vmatpush1.bf16.xpose.msra.mxu0 0
        %865 = vmatprep.subr.bf16.mxu0 0
        %866 = vmatpush1.bf16.xpose.msra.mxu0 0
        %867 = vmatprep.subr.bf16.mxu0 0
        %868 = vmatpush1.bf16.xpose.msra.mxu0 0
        %869 = vmatprep.subr.bf16.mxu0 0
        %870 = vmatpush1.bf16.xpose.msra.mxu0 0
        %871 = vmatprep.subr.bf16.mxu0 0
        %872 = vmatpush1.bf16.xpose.msra.mxu0 0
        %873 = vmatprep.subr.bf16.mxu0 0
        %874 = vmatpush1.bf16.xpose.msra.mxu0 0
        %875 = vmatprep.subr.bf16.mxu0 0
        %876 = vmatpush1.bf16.xpose.msra.mxu0 0
        %877 = vmatprep.subr.bf16.mxu0 0
        %878 = vmatpush1.bf16.xpose.msra.mxu0 0
        %879 = vmatprep.subr.bf16.mxu0 0
        %880 = vmatpush1.bf16.xpose.msra.mxu0 0
        %881 = vmatprep.subr.bf16.mxu0 0
        %882 = vmatpush1.bf16.xpose.msra.mxu0 0
        %883 = vmatprep.subr.bf16.mxu0 0
        %884 = vmatpush1.bf16.xpose.msra.mxu0 0
        %885 = vmatprep.mubr.bf16.mxu0 0
        %886 = vmatmul.mubr.bf16.gmra.mrb[0].mxu0 %v808
        %v887 = vpop.f32.mrb[0].mxu0
        %v888 = vadd.f32 0.0, %v887
        %v889 = vpop.f32.mrb[0].mxu0
        %v890 = vpop.f32.mrb[0].mxu0
        %v891 = vpop.f32.mrb[0].mxu0
        %892 = vdwg.mxu0
        %v893 = vmul.f32 %v848, 0.088388346
        %v894 = vmul.f32 %v888, 0.088388346
        %vm895 = vcmask 64512
        %v896 = vsel %vm895, %v893, -inf
        %897 = vmax.xlane.f32.xlu0 %v896
        %v898 = vpop.xlane.xlu0 %897
        %v899 = vsel %vm895, %v894, -inf
        %900 = vmax.xlane.f32.xlu0 %v899
        %v901 = vpop.xlane.xlu0 %900
        %v902 = vsub.f32 %v893, %v898
        %v903 = vsub.f32 %v894, %v901
        %v904 = vmul.f32 %v902, 1.442695
        %v905 = vpow.pop %v904
        %v906 = vmul.f32 %v903, 1.442695
        %v907 = vpow.pop %v906
        %v908 = vsel %vm895, %v905, 0.0
        %909 = vadd.xlane.f32.xlu0 %v908
        %v910 = vpop.xlane.xlu0 %909
        %v911 = vsel %vm895, %v907, 0.0
        %912 = vadd.xlane.f32.xlu0 %v911
        %v913 = vpop.xlane.xlu0 %912
        %v914 = vrcp.pop %v910
        %v915 = vmul.f32 %v905, %v914
        %v916 = vrcp.pop %v913
        %v917 = vmul.f32 %v907, %v916
        %v918 = vpack.c.bf16 %v915, %v915
        %v919 = vpack.c.bf16 %v917, %v917
        %v921 = vsel %vm895, %v918, 0
        %vm923 = vcmask 1043456
        %v925 = vsel %vm923, %v811, 0
        %927 = vmatprep.subr.bf16.mxu0 0
        %928 = vmatpush1.bf16.msra.mxu0 %v925
        %929 = vmatprep.subr.bf16.mxu0 0
        %930 = vmatpush1.bf16.msra.mxu0 0
        %931 = vmatprep.subr.bf16.mxu0 0
        %932 = vmatpush1.bf16.msra.mxu0 0
        %933 = vmatprep.subr.bf16.mxu0 0
        %934 = vmatpush1.bf16.msra.mxu0 0
        %935 = vmatprep.subr.bf16.mxu0 0
        %936 = vmatpush1.bf16.msra.mxu0 0
        %937 = vmatprep.subr.bf16.mxu0 0
        %938 = vmatpush1.bf16.msra.mxu0 0
        %939 = vmatprep.subr.bf16.mxu0 0
        %940 = vmatpush1.bf16.msra.mxu0 0
        %941 = vmatprep.subr.bf16.mxu0 0
        %942 = vmatpush1.bf16.msra.mxu0 0
        %943 = vmatprep.subr.bf16.mxu0 0
        %944 = vmatpush1.bf16.msra.mxu0 0
        %945 = vmatprep.subr.bf16.mxu0 0
        %946 = vmatpush1.bf16.msra.mxu0 0
        %947 = vmatprep.subr.bf16.mxu0 0
        %948 = vmatpush1.bf16.msra.mxu0 0
        %949 = vmatprep.subr.bf16.mxu0 0
        %950 = vmatpush1.bf16.msra.mxu0 0
        %951 = vmatprep.subr.bf16.mxu0 0
        %952 = vmatpush1.bf16.msra.mxu0 0
        %953 = vmatprep.subr.bf16.mxu0 0
        %954 = vmatpush1.bf16.msra.mxu0 0
        %955 = vmatprep.subr.bf16.mxu0 0
        %956 = vmatpush1.bf16.msra.mxu0 0
        %957 = vmatprep.subr.bf16.mxu0 0
        %958 = vmatpush1.bf16.msra.mxu0 0
        %959 = vmatprep.mubr.bf16.mxu0 0
        %960 = vmatmul.mubr.bf16.gmra.mrb[0].mxu0 %v921
        %v961 = vpop.f32.mrb[0].mxu0
        %v962 = vadd.f32 0.0, %v961
        %v963 = vpop.f32.mrb[0].mxu0
        %v964 = vpop.f32.mrb[0].mxu0
        %v965 = vpop.f32.mrb[0].mxu0
        %966 = vdwg.mxu0
        %v968 = vsel %vm895, %v919, 0
        %v971 = vsel %vm923, %v812, 0
        %973 = vmatprep.subr.bf16.mxu0 0
        %974 = vmatpush1.bf16.msra.mxu0 %v971
        %975 = vmatprep.subr.bf16.mxu0 0
        %976 = vmatpush1.bf16.msra.mxu0 0
        %977 = vmatprep.subr.bf16.mxu0 0
        %978 = vmatpush1.bf16.msra.mxu0 0
        %979 = vmatprep.subr.bf16.mxu0 0
        %980 = vmatpush1.bf16.msra.mxu0 0
        %981 = vmatprep.subr.bf16.mxu0 0
        %982 = vmatpush1.bf16.msra.mxu0 0
        %983 = vmatprep.subr.bf16.mxu0 0
        %984 = vmatpush1.bf16.msra.mxu0 0
        %985 = vmatprep.subr.bf16.mxu0 0
        %986 = vmatpush1.bf16.msra.mxu0 0
        %987 = vmatprep.subr.bf16.mxu0 0
        %988 = vmatpush1.bf16.msra.mxu0 0
        %989 = vmatprep.subr.bf16.mxu0 0
        %990 = vmatpush1.bf16.msra.mxu0 0
        %991 = vmatprep.subr.bf16.mxu0 0
        %992 = vmatpush1.bf16.msra.mxu0 0
        %993 = vmatprep.subr.bf16.mxu0 0
        %994 = vmatpush1.bf16.msra.mxu0 0
        %995 = vmatprep.subr.bf16.mxu0 0
        %996 = vmatpush1.bf16.msra.mxu0 0
        %997 = vmatprep.subr.bf16.mxu0 0
        %998 = vmatpush1.bf16.msra.mxu0 0
        %999 = vmatprep.subr.bf16.mxu0 0
        %1000 = vmatpush1.bf16.msra.mxu0 0
        %1001 = vmatprep.subr.bf16.mxu0 0
        %1002 = vmatpush1.bf16.msra.mxu0 0
        %1003 = vmatprep.subr.bf16.mxu0 0
        %1004 = vmatpush1.bf16.msra.mxu0 0
        %1005 = vmatprep.mubr.bf16.mxu0 0
        %1006 = vmatmul.mubr.bf16.gmra.mrb[0].mxu0 %v968
        %v1007 = vpop.f32.mrb[0].mxu0
        %v1008 = vadd.f32 0.0, %v1007
        %v1009 = vpop.f32.mrb[0].mxu0
        %v1010 = vpop.f32.mrb[0].mxu0
        %v1011 = vpop.f32.mrb[0].mxu0
        %1012 = vdwg.mxu0
        %v1013 = vpack.c.bf16 %v1008, %v962
        %v1014 = vlaneseq
        %v1015 = vshrl.u32 %v1014, 7
        %v1016 = vsub.s32 0, %v1015
        %v1017 = vrot.slane %v521, %v1016
        %v1034 = vunpack.c.l.b16 %v502
        %v1035 = vunpack.c.l.b16 %v503
        %v1036 = vunpack.c.l.b16 %v504
        %v1037 = vunpack.c.l.b16 %v505
        %v1038 = vunpack.c.l.b16 %v506
        %v1039 = vunpack.c.l.b16 %v507
        %v1040 = vunpack.c.l.b16 %v508
        %v1041 = vunpack.c.l.b16 %v509
        %v1042 = vunpack.c.l.b16 %v510
        %v1043 = vunpack.c.l.b16 %v511
        %v1044 = vunpack.c.l.b16 %v512
        %v1045 = vunpack.c.l.b16 %v513
        %v1046 = vunpack.c.l.b16 %v514
        %v1047 = vunpack.c.l.b16 %v515
        %v1048 = vunpack.c.l.b16 %v516
        %v1049 = vunpack.c.l.b16 %v517
        %v1050 = vpack.c.b16 %v1035, %v1034
        %v1051 = vpack.c.b16 %v1037, %v1036
        %v1052 = vpack.c.b16 %v1039, %v1038
        %v1053 = vpack.c.b16 %v1041, %v1040
        %v1054 = vpack.c.b16 %v1043, %v1042
        %v1055 = vpack.c.b16 %v1045, %v1044
        %v1056 = vpack.c.b16 %v1047, %v1046
        %v1057 = vpack.c.b16 %v1049, %v1048
        %1066 = vmatprep.subr.bf16.mxu0 0
        %1067 = vmatpush1.bf16.msra.mxu0 %v1050
        %1068 = vmatprep.subr.bf16.mxu0 0
        %1069 = vmatpush1.bf16.msra.mxu0 %v1051
        %1070 = vmatprep.subr.bf16.mxu0 0
        %1071 = vmatpush1.bf16.msra.mxu0 %v1052
        %1072 = vmatprep.subr.bf16.mxu0 0
        %1073 = vmatpush1.bf16.msra.mxu0 %v1053
        %1074 = vmatprep.subr.bf16.mxu0 0
        %1075 = vmatpush1.bf16.msra.mxu0 %v1054
        %1076 = vmatprep.subr.bf16.mxu0 0
        %1077 = vmatpush1.bf16.msra.mxu0 %v1055
        %1078 = vmatprep.subr.bf16.mxu0 0
        %1079 = vmatpush1.bf16.msra.mxu0 %v1056
        %1080 = vmatprep.subr.bf16.mxu0 0
        %1081 = vmatpush1.bf16.msra.mxu0 %v1057
        %1082 = vmatprep.subr.bf16.mxu0 0
        %1083 = vmatpush1.bf16.msra.mxu0 0
        %1084 = vmatprep.subr.bf16.mxu0 0
        %1085 = vmatpush1.bf16.msra.mxu0 0
        %1086 = vmatprep.subr.bf16.mxu0 0
        %1087 = vmatpush1.bf16.msra.mxu0 0
        %1088 = vmatprep.subr.bf16.mxu0 0
        %1089 = vmatpush1.bf16.msra.mxu0 0
        %1090 = vmatprep.subr.bf16.mxu0 0
        %1091 = vmatpush1.bf16.msra.mxu0 0
        %1092 = vmatprep.subr.bf16.mxu0 0
        %1093 = vmatpush1.bf16.msra.mxu0 0
        %1094 = vmatprep.subr.bf16.mxu0 0
        %1095 = vmatpush1.bf16.msra.mxu0 0
        %1096 = vmatprep.subr.bf16.mxu0 0
        %1097 = vmatpush1.bf16.msra.mxu0 0
        %1098 = vmatprep.mubr.bf16.mxu0 0
        %1099 = vmatmul.mubr.bf16.gmra.mrb[0].mxu0 %v1013
        %v1100 = vpop.f32.mrb[0].mxu0
        %v1101 = vadd.f32 %v1017, %v1100
        %v1102 = vpop.f32.mrb[0].mxu0
        %v1103 = vpop.f32.mrb[0].mxu0
        %v1104 = vadd.f32 %v1017, %v1103
        %v1105 = vpop.f32.mrb[0].mxu0
        %1106 = vdwg.mxu0
        %v1107 = vadd.f32 %v449, %v1101
        %v1108 = vadd.f32 %v450, %v1104
        %1109 = vadd.xlane.f32.xlu0 %v1107
        %v1110 = vpop.xlane.xlu0 %1109
        %1111 = vadd.xlane.f32.xlu0 %v1108
        %v1112 = vpop.xlane.xlu0 %1111
        %v1113 = vrcp.pop 128.0
        %v1114 = vmul.f32 %v1110, %v1113
        %v1115 = vmul.f32 %v1112, %v1113
        %v1116 = vsub.f32 %v1107, %v1114
        %v1117 = vsub.f32 %v1108, %v1115
        %v1118 = vmul.f32 %v1116, %v1116
        %v1119 = vmul.f32 %v1117, %v1117
        %1120 = vadd.xlane.f32.xlu0 %v1118
        %v1121 = vpop.xlane.xlu0 %1120
        %1122 = vadd.xlane.f32.xlu0 %v1119
        %v1123 = vpop.xlane.xlu0 %1122
        %v1124 = vmul.f32 %v1121, %v1113
        %v1125 = vmul.f32 %v1123, %v1113
        %v1126 = vadd.f32 %v1124, 1e-05
        %v1127 = vadd.f32 %v1125, 1e-05
        %v1128 = vrsqrt.pop %v1126
        %v1129 = vrsqrt.pop %v1127
        %v1130 = vmul.f32 %v1116, %v1128
        %v1131 = vmul.f32 %v1117, %v1129
        %v1132 = vlaneseq
        %v1133 = vshrl.u32 %v1132, 7
        %v1134 = vsub.s32 0, %v1133
        %v1135 = vrot.slane %v523, %v1134
        %v1136 = vmul.f32 %v1130, %v1135
        %v1137 = vmul.f32 %v1131, %v1135
        %v1138 = vlaneseq
        %v1139 = vshrl.u32 %v1138, 7
        %v1140 = vsub.s32 0, %v1139
        %v1141 = vrot.slane %v524, %v1140
        %v1142 = vadd.f32 %v1136, %v1141
        %v1143 = vadd.f32 %v1137, %v1141
        %v1144 = vpack.c.bf16 %v1143, %v1142
        %v1145 = vld [vmem:[%s362] sm:$0xff]
        %v1146 = vld [vmem:[%s362 + $0x8] sm:$0xff]
        %v1147 = vld [vmem:[%s362 + $0x10] sm:$0xff]
        %v1148 = vld [vmem:[%s362 + $0x18] sm:$0xff]
        %v1149 = vld [vmem:[%s362 + $0x20] sm:$0xff]
        %v1150 = vld [vmem:[%s362 + $0x28] sm:$0xff]
        %v1151 = vld [vmem:[%s362 + $0x30] sm:$0xff]
        %v1152 = vld [vmem:[%s362 + $0x38] sm:$0xff]
        %v1153 = vld [vmem:[%s362 + $0x40] sm:$0xff]
        %v1154 = vld [vmem:[%s362 + $0x48] sm:$0xff]
        %v1155 = vld [vmem:[%s362 + $0x50] sm:$0xff]
        %v1156 = vld [vmem:[%s362 + $0x58] sm:$0xff]
        %v1157 = vld [vmem:[%s362 + $0x60] sm:$0xff]
        %v1158 = vld [vmem:[%s362 + $0x68] sm:$0xff]
        %v1159 = vld [vmem:[%s362 + $0x70] sm:$0xff]
        %v1160 = vld [vmem:[%s362 + $0x78] sm:$0xff]
        %v1161 = vld [vmem:[%s438] sm:$0x3]
        %v1163 = vlaneseq
        %v1164 = vshrl.u32 %v1163, 7
        %v1165 = vsub.s32 0, %v1164
        %v1166 = vrot.slane %v1161, %v1165
        %v1167 = vlaneseq
        %v1168 = vshrl.u32 %v1167, 7
        %v1169 = vsub.s32 1, %v1168
        %v1170 = vrot.slane %v1161, %v1169
        %v1189 = vunpack.c.l.b16 %v1145
        %v1190 = vunpack.c.h.b16 %v1145
        %v1191 = vunpack.c.l.b16 %v1146
        %v1192 = vunpack.c.h.b16 %v1146
        %v1193 = vunpack.c.l.b16 %v1147
        %v1194 = vunpack.c.h.b16 %v1147
        %v1195 = vunpack.c.l.b16 %v1148
        %v1196 = vunpack.c.h.b16 %v1148
        %v1197 = vunpack.c.l.b16 %v1149
        %v1198 = vunpack.c.h.b16 %v1149
        %v1199 = vunpack.c.l.b16 %v1150
        %v1200 = vunpack.c.h.b16 %v1150
        %v1201 = vunpack.c.l.b16 %v1151
        %v1202 = vunpack.c.h.b16 %v1151
        %v1203 = vunpack.c.l.b16 %v1152
        %v1204 = vunpack.c.h.b16 %v1152
        %v1205 = vunpack.c.l.b16 %v1153
        %v1206 = vunpack.c.h.b16 %v1153
        %v1207 = vunpack.c.l.b16 %v1154
        %v1208 = vunpack.c.h.b16 %v1154
        %v1209 = vunpack.c.l.b16 %v1155
        %v1210 = vunpack.c.h.b16 %v1155
        %v1211 = vunpack.c.l.b16 %v1156
        %v1212 = vunpack.c.h.b16 %v1156
        %v1213 = vunpack.c.l.b16 %v1157
        %v1214 = vunpack.c.h.b16 %v1157
        %v1215 = vunpack.c.l.b16 %v1158
        %v1216 = vunpack.c.h.b16 %v1158
        %v1217 = vunpack.c.l.b16 %v1159
        %v1218 = vunpack.c.h.b16 %v1159
        %v1219 = vunpack.c.l.b16 %v1160
        %v1220 = vunpack.c.h.b16 %v1160
        %v1221 = vpack.c.b16 %v1191, %v1189
        %v1222 = vpack.c.b16 %v1192, %v1190
        %v1223 = vpack.c.b16 %v1195, %v1193
        %v1224 = vpack.c.b16 %v1196, %v1194
        %v1225 = vpack.c.b16 %v1199, %v1197
        %v1226 = vpack.c.b16 %v1200, %v1198
        %v1227 = vpack.c.b16 %v1203, %v1201
        %v1228 = vpack.c.b16 %v1204, %v1202
        %v1229 = vpack.c.b16 %v1207, %v1205
        %v1230 = vpack.c.b16 %v1208, %v1206
        %v1231 = vpack.c.b16 %v1211, %v1209
        %v1232 = vpack.c.b16 %v1212, %v1210
        %v1233 = vpack.c.b16 %v1215, %v1213
        %v1234 = vpack.c.b16 %v1216, %v1214
        %v1235 = vpack.c.b16 %v1219, %v1217
        %v1236 = vpack.c.b16 %v1220, %v1218
        %1253 = vmatprep.subr.bf16.mxu0 %v1222
        %1254 = vmatpush1.bf16.msra.mxu0 %v1221
        %1255 = vmatprep.subr.bf16.mxu0 %v1224
        %1256 = vmatpush1.bf16.msra.mxu0 %v1223
        %1257 = vmatprep.subr.bf16.mxu0 %v1226
        %1258 = vmatpush1.bf16.msra.mxu0 %v1225
        %1259 = vmatprep.subr.bf16.mxu0 %v1228
        %1260 = vmatpush1.bf16.msra.mxu0 %v1227
        %1261 = vmatprep.subr.bf16.mxu0 %v1230
        %1262 = vmatpush1.bf16.msra.mxu0 %v1229
        %1263 = vmatprep.subr.bf16.mxu0 %v1232
        %1264 = vmatpush1.bf16.msra.mxu0 %v1231
        %1265 = vmatprep.subr.bf16.mxu0 %v1234
        %1266 = vmatpush1.bf16.msra.mxu0 %v1233
        %1267 = vmatprep.subr.bf16.mxu0 %v1236
        %1268 = vmatpush1.bf16.msra.mxu0 %v1235
        %1269 = vmatprep.subr.bf16.mxu0 0
        %1270 = vmatpush1.bf16.msra.mxu0 0
        %1271 = vmatprep.subr.bf16.mxu0 0
        %1272 = vmatpush1.bf16.msra.mxu0 0
        %1273 = vmatprep.subr.bf16.mxu0 0
        %1274 = vmatpush1.bf16.msra.mxu0 0
        %1275 = vmatprep.subr.bf16.mxu0 0
        %1276 = vmatpush1.bf16.msra.mxu0 0
        %1277 = vmatprep.subr.bf16.mxu0 0
        %1278 = vmatpush1.bf16.msra.mxu0 0
        %1279 = vmatprep.subr.bf16.mxu0 0
        %1280 = vmatpush1.bf16.msra.mxu0 0
        %1281 = vmatprep.subr.bf16.mxu0 0
        %1282 = vmatpush1.bf16.msra.mxu0 0
        %1283 = vmatprep.subr.bf16.mxu0 0
        %1284 = vmatpush1.bf16.msra.mxu0 0
        %1285 = vmatprep.mubr.bf16.mxu0 0
        %1286 = vmatmul.mubr.bf16.gmra.mrb[0].mxu0 %v1144
        %v1287 = vpop.f32.mrb[0].mxu0
        %v1288 = vadd.f32 %v1166, %v1287
        %v1289 = vpop.f32.mrb[0].mxu0
        %v1290 = vadd.f32 %v1170, %v1289
        %v1291 = vpop.f32.mrb[0].mxu0
        %v1292 = vadd.f32 %v1166, %v1291
        %v1293 = vpop.f32.mrb[0].mxu0
        %v1294 = vadd.f32 %v1170, %v1293
        %1295 = vdwg.mxu0
        %v1296 = vmul.f32 %v1288, %v1288
        %v1297 = vmul.f32 %v1290, %v1290
        %v1298 = vmul.f32 %v1292, %v1292
        %v1299 = vmul.f32 %v1294, %v1294
        %v1300 = vmul.f32 %v1288, %v1296
        %v1301 = vmul.f32 %v1290, %v1297
        %v1302 = vmul.f32 %v1292, %v1298
        %v1303 = vmul.f32 %v1294, %v1299
        %v1304 = vmul.f32 %v1300, 0.044715
        %v1305 = vmul.f32 %v1301, 0.044715
        %v1306 = vmul.f32 %v1302, 0.044715
        %v1307 = vmul.f32 %v1303, 0.044715
        %v1308 = vadd.f32 %v1288, %v1304
        %v1309 = vadd.f32 %v1290, %v1305
        %v1310 = vadd.f32 %v1292, %v1306
        %v1311 = vadd.f32 %v1294, %v1307
        %v1312 = vmul.f32 %v1308, 0.7978846
        %v1313 = vmul.f32 %v1309, 0.7978846
        %v1314 = vmul.f32 %v1310, 0.7978846
        %v1315 = vmul.f32 %v1311, 0.7978846
        %v1316 = vtanh.pop %v1312
        %v1317 = vtanh.pop %v1313
        %v1318 = vtanh.pop %v1314
        %v1319 = vtanh.pop %v1315
        %v1320 = vadd.f32 %v1316, 1.0
        %v1321 = vadd.f32 %v1317, 1.0
        %v1322 = vadd.f32 %v1318, 1.0
        %v1323 = vadd.f32 %v1319, 1.0
        %v1324 = vmul.f32 %v1320, 0.5
        %v1325 = vmul.f32 %v1321, 0.5
        %v1326 = vmul.f32 %v1322, 0.5
        %v1327 = vmul.f32 %v1323, 0.5
        %v1328 = vmul.f32 %v1288, %v1324
        %v1329 = vmul.f32 %v1290, %v1325
        %v1330 = vmul.f32 %v1292, %v1326
        %v1331 = vmul.f32 %v1294, %v1327
        %v1332 = vpack.c.bf16 %v1330, %v1328
        %v1333 = vpack.c.bf16 %v1331, %v1329
        %v1334 = vld [vmem:[%s371] sm:$0xf]
        %v1335 = vld [vmem:[%s371 + $0x4] sm:$0xf]
        %v1336 = vld [vmem:[%s371 + $0x8] sm:$0xf]
        %v1337 = vld [vmem:[%s371 + $0xc] sm:$0xf]
        %v1338 = vld [vmem:[%s371 + $0x10] sm:$0xf]
        %v1339 = vld [vmem:[%s371 + $0x14] sm:$0xf]
        %v1340 = vld [vmem:[%s371 + $0x18] sm:$0xf]
        %v1341 = vld [vmem:[%s371 + $0x1c] sm:$0xf]
        %v1342 = vld [vmem:[%s371 + $0x20] sm:$0xf]
        %v1343 = vld [vmem:[%s371 + $0x24] sm:$0xf]
        %v1344 = vld [vmem:[%s371 + $0x28] sm:$0xf]
        %v1345 = vld [vmem:[%s371 + $0x2c] sm:$0xf]
        %v1346 = vld [vmem:[%s371 + $0x30] sm:$0xf]
        %v1347 = vld [vmem:[%s371 + $0x34] sm:$0xf]
        %v1348 = vld [vmem:[%s371 + $0x38] sm:$0xf]
        %v1349 = vld [vmem:[%s371 + $0x3c] sm:$0xf]
        %v1350 = vld [vmem:[%s371 + $0x40] sm:$0xf]
        %v1351 = vld [vmem:[%s371 + $0x44] sm:$0xf]
        %v1352 = vld [vmem:[%s371 + $0x48] sm:$0xf]
        %v1353 = vld [vmem:[%s371 + $0x4c] sm:$0xf]
        %v1354 = vld [vmem:[%s371 + $0x50] sm:$0xf]
        %v1355 = vld [vmem:[%s371 + $0x54] sm:$0xf]
        %v1356 = vld [vmem:[%s371 + $0x58] sm:$0xf]
        %v1357 = vld [vmem:[%s371 + $0x5c] sm:$0xf]
        %v1358 = vld [vmem:[%s371 + $0x60] sm:$0xf]
        %v1359 = vld [vmem:[%s371 + $0x64] sm:$0xf]
        %v1360 = vld [vmem:[%s371 + $0x68] sm:$0xf]
        %v1361 = vld [vmem:[%s371 + $0x6c] sm:$0xf]
        %v1362 = vld [vmem:[%s371 + $0x70] sm:$0xf]
        %v1363 = vld [vmem:[%s371 + $0x74] sm:$0xf]
        %v1364 = vld [vmem:[%s371 + $0x78] sm:$0xf]
        %v1365 = vld [vmem:[%s371 + $0x7c] sm:$0xf]
        %v1366 = vlaneseq
        %v1367 = vshrl.u32 %v1366, 7
        %v1368 = vsub.s32 0, %v1367
        %v1369 = vrot.slane %v522, %v1368
        %v1402 = vunpack.c.l.b16 %v1334
        %v1403 = vunpack.c.l.b16 %v1335
        %v1404 = vunpack.c.l.b16 %v1336
        %v1405 = vunpack.c.l.b16 %v1337
        %v1406 = vunpack.c.l.b16 %v1338
        %v1407 = vunpack.c.l.b16 %v1339
        %v1408 = vunpack.c.l.b16 %v1340
        %v1409 = vunpack.c.l.b16 %v1341
        %v1410 = vunpack.c.l.b16 %v1342
        %v1411 = vunpack.c.l.b16 %v1343
        %v1412 = vunpack.c.l.b16 %v1344
        %v1413 = vunpack.c.l.b16 %v1345
        %v1414 = vunpack.c.l.b16 %v1346
        %v1415 = vunpack.c.l.b16 %v1347
        %v1416 = vunpack.c.l.b16 %v1348
        %v1417 = vunpack.c.l.b16 %v1349
        %v1418 = vunpack.c.l.b16 %v1350
        %v1419 = vunpack.c.l.b16 %v1351
        %v1420 = vunpack.c.l.b16 %v1352
        %v1421 = vunpack.c.l.b16 %v1353
        %v1422 = vunpack.c.l.b16 %v1354
        %v1423 = vunpack.c.l.b16 %v1355
        %v1424 = vunpack.c.l.b16 %v1356
        %v1425 = vunpack.c.l.b16 %v1357
        %v1426 = vunpack.c.l.b16 %v1358
        %v1427 = vunpack.c.l.b16 %v1359
        %v1428 = vunpack.c.l.b16 %v1360
        %v1429 = vunpack.c.l.b16 %v1361
        %v1430 = vunpack.c.l.b16 %v1362
        %v1431 = vunpack.c.l.b16 %v1363
        %v1432 = vunpack.c.l.b16 %v1364
        %v1433 = vunpack.c.l.b16 %v1365
        %v1434 = vpack.c.b16 %v1403, %v1402
        %v1435 = vpack.c.b16 %v1405, %v1404
        %v1436 = vpack.c.b16 %v1407, %v1406
        %v1437 = vpack.c.b16 %v1409, %v1408
        %v1438 = vpack.c.b16 %v1411, %v1410
        %v1439 = vpack.c.b16 %v1413, %v1412
        %v1440 = vpack.c.b16 %v1415, %v1414
        %v1441 = vpack.c.b16 %v1417, %v1416
        %v1442 = vpack.c.b16 %v1419, %v1418
        %v1443 = vpack.c.b16 %v1421, %v1420
        %v1444 = vpack.c.b16 %v1423, %v1422
        %v1445 = vpack.c.b16 %v1425, %v1424
        %v1446 = vpack.c.b16 %v1427, %v1426
        %v1447 = vpack.c.b16 %v1429, %v1428
        %v1448 = vpack.c.b16 %v1431, %v1430
        %v1449 = vpack.c.b16 %v1433, %v1432
        %1466 = vmatprep.subr.bf16.mxu0 0
        %1467 = vmatpush1.bf16.msra.mxu0 %v1434
        %1468 = vmatprep.subr.bf16.mxu0 0
        %1469 = vmatpush1.bf16.msra.mxu0 %v1435
        %1470 = vmatprep.subr.bf16.mxu0 0
        %1471 = vmatpush1.bf16.msra.mxu0 %v1436
        %1472 = vmatprep.subr.bf16.mxu0 0
        %1473 = vmatpush1.bf16.msra.mxu0 %v1437
        %1474 = vmatprep.subr.bf16.mxu0 0
        %1475 = vmatpush1.bf16.msra.mxu0 %v1438
        %1476 = vmatprep.subr.bf16.mxu0 0
        %1477 = vmatpush1.bf16.msra.mxu0 %v1439
        %1478 = vmatprep.subr.bf16.mxu0 0
        %1479 = vmatpush1.bf16.msra.mxu0 %v1440
        %1480 = vmatprep.subr.bf16.mxu0 0
        %1481 = vmatpush1.bf16.msra.mxu0 %v1441
        %1482 = vmatprep.subr.bf16.mxu0 0
        %1483 = vmatpush1.bf16.msra.mxu0 %v1442
        %1484 = vmatprep.subr.bf16.mxu0 0
        %1485 = vmatpush1.bf16.msra.mxu0 %v1443
        %1486 = vmatprep.subr.bf16.mxu0 0
        %1487 = vmatpush1.bf16.msra.mxu0 %v1444
        %1488 = vmatprep.subr.bf16.mxu0 0
        %1489 = vmatpush1.bf16.msra.mxu0 %v1445
        %1490 = vmatprep.subr.bf16.mxu0 0
        %1491 = vmatpush1.bf16.msra.mxu0 %v1446
        %1492 = vmatprep.subr.bf16.mxu0 0
        %1493 = vmatpush1.bf16.msra.mxu0 %v1447
        %1494 = vmatprep.subr.bf16.mxu0 0
        %1495 = vmatpush1.bf16.msra.mxu0 %v1448
        %1496 = vmatprep.subr.bf16.mxu0 0
        %1497 = vmatpush1.bf16.msra.mxu0 %v1449
        %1498 = vmatprep.mubr.bf16.mxu0 %v1333
        %1499 = vmatmul.mubr.bf16.gmra.mrb[0].mxu0 %v1332
        %v1500 = vpop.f32.mrb[0].mxu0
        %v1501 = vadd.f32 %v1369, %v1500
        %v1502 = vpop.f32.mrb[0].mxu0
        %v1503 = vpop.f32.mrb[0].mxu0
        %v1504 = vadd.f32 %v1369, %v1503
        %v1505 = vpop.f32.mrb[0].mxu0
        %1506 = vdwg.mxu0
        %v1507 = vadd.f32 %v1142, %v1501
        %v1508 = vadd.f32 %v1143, %v1504
        %1509 = vadd.xlane.f32.xlu0 %v1507
        %v1510 = vpop.xlane.xlu0 %1509
        %1511 = vadd.xlane.f32.xlu0 %v1508
        %v1512 = vpop.xlane.xlu0 %1511
        %v1513 = vmul.f32 %v1510, %v1113
        %v1514 = vmul.f32 %v1512, %v1113
        %v1515 = vsub.f32 %v1507, %v1513
        %v1516 = vsub.f32 %v1508, %v1514
        %v1517 = vmul.f32 %v1515, %v1515
        %v1518 = vmul.f32 %v1516, %v1516
        %1519 = vadd.xlane.f32.xlu0 %v1517
        %v1520 = vpop.xlane.xlu0 %1519
        %1521 = vadd.xlane.f32.xlu0 %v1518
        %v1522 = vpop.xlane.xlu0 %1521
        %v1523 = vmul.f32 %v1520, %v1113
        %v1524 = vmul.f32 %v1522, %v1113
        %v1525 = vadd.f32 %v1523, 1e-05
        %v1526 = vadd.f32 %v1524, 1e-05
        %v1527 = vrsqrt.pop %v1525
        %v1528 = vrsqrt.pop %v1526
        %v1529 = vmul.f32 %v1515, %v1527
        %v1530 = vmul.f32 %v1516, %v1528
        %v1531 = vlaneseq
        %v1532 = vshrl.u32 %v1531, 7
        %v1533 = vsub.s32 0, %v1532
        %v1534 = vrot.slane %v525, %v1533
        %v1535 = vmul.f32 %v1529, %v1534
        %v1536 = vmul.f32 %v1530, %v1534
        %v1537 = vlaneseq
        %v1538 = vshrl.u32 %v1537, 7
        %v1539 = vsub.s32 0, %v1538
        %v1540 = vrot.slane %v526, %v1539
        %v1541 = vadd.f32 %v1535, %v1540
        %v1542 = vadd.f32 %v1536, %v1540
        %s1543 = scalar_lea.vmem %s353, 256 [#allocation2]
        %v1544 = vld [vmem:[%s1543] sm:$0xf]
        %v1545 = vld [vmem:[%s1543 + $0x4] sm:$0xf]
        %v1546 = vld [vmem:[%s1543 + $0x8] sm:$0xf]
        %v1547 = vld [vmem:[%s1543 + $0xc] sm:$0xf]
        %v1548 = vld [vmem:[%s1543 + $0x10] sm:$0xf]
        %v1549 = vld [vmem:[%s1543 + $0x14] sm:$0xf]
        %v1550 = vld [vmem:[%s1543 + $0x18] sm:$0xf]
        %v1551 = vld [vmem:[%s1543 + $0x1c] sm:$0xf]
        %v1552 = vld [vmem:[%s1543 + $0x20] sm:$0xf]
        %v1553 = vld [vmem:[%s1543 + $0x24] sm:$0xf]
        %v1554 = vld [vmem:[%s1543 + $0x28] sm:$0xf]
        %v1555 = vld [vmem:[%s1543 + $0x2c] sm:$0xf]
        %v1556 = vld [vmem:[%s1543 + $0x30] sm:$0xf]
        %v1557 = vld [vmem:[%s1543 + $0x34] sm:$0xf]
        %v1558 = vld [vmem:[%s1543 + $0x38] sm:$0xf]
        %v1559 = vld [vmem:[%s1543 + $0x3c] sm:$0xf]
        %s1560 = scalar_lea.vmem %s353, 320 [#allocation2]
        %v1561 = vld [vmem:[%s1560] sm:$0xf]
        %v1562 = vld [vmem:[%s1560 + $0x4] sm:$0xf]
        %v1563 = vld [vmem:[%s1560 + $0x8] sm:$0xf]
        %v1564 = vld [vmem:[%s1560 + $0xc] sm:$0xf]
        %v1565 = vld [vmem:[%s1560 + $0x10] sm:$0xf]
        %v1566 = vld [vmem:[%s1560 + $0x14] sm:$0xf]
        %v1567 = vld [vmem:[%s1560 + $0x18] sm:$0xf]
        %v1568 = vld [vmem:[%s1560 + $0x1c] sm:$0xf]
        %v1569 = vld [vmem:[%s1560 + $0x20] sm:$0xf]
        %v1570 = vld [vmem:[%s1560 + $0x24] sm:$0xf]
        %v1571 = vld [vmem:[%s1560 + $0x28] sm:$0xf]
        %v1572 = vld [vmem:[%s1560 + $0x2c] sm:$0xf]
        %v1573 = vld [vmem:[%s1560 + $0x30] sm:$0xf]
        %v1574 = vld [vmem:[%s1560 + $0x34] sm:$0xf]
        %v1575 = vld [vmem:[%s1560 + $0x38] sm:$0xf]
        %v1576 = vld [vmem:[%s1560 + $0x3c] sm:$0xf]
        %s1577 = scalar_lea.vmem %s353, 384 [#allocation2]
        %v1578 = vld [vmem:[%s1577] sm:$0xf]
        %v1579 = vld [vmem:[%s1577 + $0x4] sm:$0xf]
        %v1580 = vld [vmem:[%s1577 + $0x8] sm:$0xf]
        %v1581 = vld [vmem:[%s1577 + $0xc] sm:$0xf]
        %v1582 = vld [vmem:[%s1577 + $0x10] sm:$0xf]
        %v1583 = vld [vmem:[%s1577 + $0x14] sm:$0xf]
        %v1584 = vld [vmem:[%s1577 + $0x18] sm:$0xf]
        %v1585 = vld [vmem:[%s1577 + $0x1c] sm:$0xf]
        %v1586 = vld [vmem:[%s1577 + $0x20] sm:$0xf]
        %v1587 = vld [vmem:[%s1577 + $0x24] sm:$0xf]
        %v1588 = vld [vmem:[%s1577 + $0x28] sm:$0xf]
        %v1589 = vld [vmem:[%s1577 + $0x2c] sm:$0xf]
        %v1590 = vld [vmem:[%s1577 + $0x30] sm:$0xf]
        %v1591 = vld [vmem:[%s1577 + $0x34] sm:$0xf]
        %v1592 = vld [vmem:[%s1577 + $0x38] sm:$0xf]
        %v1593 = vld [vmem:[%s1577 + $0x3c] sm:$0xf]
        %s1594 = scalar_lea.vmem %s353, 448 [#allocation2]
        %v1595 = vld [vmem:[%s1594] sm:$0xf]
        %v1596 = vld [vmem:[%s1594 + $0x4] sm:$0xf]
        %v1597 = vld [vmem:[%s1594 + $0x8] sm:$0xf]
        %v1598 = vld [vmem:[%s1594 + $0xc] sm:$0xf]
        %v1599 = vld [vmem:[%s1594 + $0x10] sm:$0xf]
        %v1600 = vld [vmem:[%s1594 + $0x14] sm:$0xf]
        %v1601 = vld [vmem:[%s1594 + $0x18] sm:$0xf]
        %v1602 = vld [vmem:[%s1594 + $0x1c] sm:$0xf]
        %v1603 = vld [vmem:[%s1594 + $0x20] sm:$0xf]
        %v1604 = vld [vmem:[%s1594 + $0x24] sm:$0xf]
        %v1605 = vld [vmem:[%s1594 + $0x28] sm:$0xf]
        %v1606 = vld [vmem:[%s1594 + $0x2c] sm:$0xf]
        %v1607 = vld [vmem:[%s1594 + $0x30] sm:$0xf]
        %v1608 = vld [vmem:[%s1594 + $0x34] sm:$0xf]
        %v1609 = vld [vmem:[%s1594 + $0x38] sm:$0xf]
        %v1610 = vld [vmem:[%s1594 + $0x3c] sm:$0xf]
        %s1611 = scalar_lea.vmem %s443, 16
        %v1612 = vld [vmem:[%s1611] sm:$0x1]
        %v1613 = vld [vmem:[%s1611 + $0x1] sm:$0x1]
        %v1614 = vld [vmem:[%s1611 + $0x2] sm:$0x1]
        %v1615 = vld [vmem:[%s1611 + $0x3] sm:$0x1]
        %v1616 = vld [vmem:[%s1611 + $0x4] sm:$0x1]
        %v1617 = vld [vmem:[%s1611 + $0x5] sm:$0x1]
        %v1618 = vld [vmem:[%s1611 + $0x6] sm:$0x1]
        %v1619 = vld [vmem:[%s1611 + $0x7] sm:$0x1]
        %v1620 = vld [vmem:[%s1611 + $0x8] sm:$0x1]
        %v1621 = vpack.c.bf16 %v1542, %v1541
        %v1622 = vlaneseq
        %v1623 = vshrl.u32 %v1622, 7
        %v1624 = vsub.s32 0, %v1623
        %v1625 = vrot.slane %v1612, %v1624
        %v1642 = vunpack.c.l.b16 %v1544
        %v1643 = vunpack.c.l.b16 %v1545
        %v1644 = vunpack.c.l.b16 %v1546
        %v1645 = vunpack.c.l.b16 %v1547
        %v1646 = vunpack.c.l.b16 %v1548
        %v1647 = vunpack.c.l.b16 %v1549
        %v1648 = vunpack.c.l.b16 %v1550
        %v1649 = vunpack.c.l.b16 %v1551
        %v1650 = vunpack.c.l.b16 %v1552
        %v1651 = vunpack.c.l.b16 %v1553
        %v1652 = vunpack.c.l.b16 %v1554
        %v1653 = vunpack.c.l.b16 %v1555
        %v1654 = vunpack.c.l.b16 %v1556
        %v1655 = vunpack.c.l.b16 %v1557
        %v1656 = vunpack.c.l.b16 %v1558
        %v1657 = vunpack.c.l.b16 %v1559
        %v1658 = vpack.c.b16 %v1643, %v1642
        %v1659 = vpack.c.b16 %v1645, %v1644
        %v1660 = vpack.c.b16 %v1647, %v1646
        %v1661 = vpack.c.b16 %v1649, %v1648
        %v1662 = vpack.c.b16 %v1651, %v1650
        %v1663 = vpack.c.b16 %v1653, %v1652
        %v1664 = vpack.c.b16 %v1655, %v1654
        %v1665 = vpack.c.b16 %v1657, %v1656
        %1674 = vmatprep.subr.bf16.mxu0 0
        %1675 = vmatpush1.bf16.msra.mxu0 %v1658
        %1676 = vmatprep.subr.bf16.mxu0 0
        %1677 = vmatpush1.bf16.msra.mxu0 %v1659
        %1678 = vmatprep.subr.bf16.mxu0 0
        %1679 = vmatpush1.bf16.msra.mxu0 %v1660
        %1680 = vmatprep.subr.bf16.mxu0 0
        %1681 = vmatpush1.bf16.msra.mxu0 %v1661
        %1682 = vmatprep.subr.bf16.mxu0 0
        %1683 = vmatpush1.bf16.msra.mxu0 %v1662
        %1684 = vmatprep.subr.bf16.mxu0 0
        %1685 = vmatpush1.bf16.msra.mxu0 %v1663
        %1686 = vmatprep.subr.bf16.mxu0 0
        %1687 = vmatpush1.bf16.msra.mxu0 %v1664
        %1688 = vmatprep.subr.bf16.mxu0 0
        %1689 = vmatpush1.bf16.msra.mxu0 %v1665
        %1690 = vmatprep.subr.bf16.mxu0 0
        %1691 = vmatpush1.bf16.msra.mxu0 0
        %1692 = vmatprep.subr.bf16.mxu0 0
        %1693 = vmatpush1.bf16.msra.mxu0 0
        %1694 = vmatprep.subr.bf16.mxu0 0
        %1695 = vmatpush1.bf16.msra.mxu0 0
        %1696 = vmatprep.subr.bf16.mxu0 0
        %1697 = vmatpush1.bf16.msra.mxu0 0
        %1698 = vmatprep.subr.bf16.mxu0 0
        %1699 = vmatpush1.bf16.msra.mxu0 0
        %1700 = vmatprep.subr.bf16.mxu0 0
        %1701 = vmatpush1.bf16.msra.mxu0 0
        %1702 = vmatprep.subr.bf16.mxu0 0
        %1703 = vmatpush1.bf16.msra.mxu0 0
        %1704 = vmatprep.subr.bf16.mxu0 0
        %1705 = vmatpush1.bf16.msra.mxu0 0
        %1706 = vmatprep.mubr.bf16.mxu0 0
        %1707 = vmatmul.mubr.bf16.gmra.mrb[0].mxu0 %v1621
        %v1708 = vpop.f32.mrb[0].mxu0
        %v1709 = vadd.f32 %v1625, %v1708
        %v1710 = vpop.f32.mrb[0].mxu0
        %v1711 = vpop.f32.mrb[0].mxu0
        %v1712 = vadd.f32 %v1625, %v1711
        %v1713 = vpop.f32.mrb[0].mxu0
        %1714 = vdwg.mxu0
        %v1715 = vlaneseq
        %v1716 = vshrl.u32 %v1715, 7
        %v1717 = vsub.s32 0, %v1716
        %v1718 = vrot.slane %v1613, %v1717
        %v1735 = vunpack.c.l.b16 %v1561
        %v1736 = vunpack.c.l.b16 %v1562
        %v1737 = vunpack.c.l.b16 %v1563
        %v1738 = vunpack.c.l.b16 %v1564
        %v1739 = vunpack.c.l.b16 %v1565
        %v1740 = vunpack.c.l.b16 %v1566
        %v1741 = vunpack.c.l.b16 %v1567
        %v1742 = vunpack.c.l.b16 %v1568
        %v1743 = vunpack.c.l.b16 %v1569
        %v1744 = vunpack.c.l.b16 %v1570
        %v1745 = vunpack.c.l.b16 %v1571
        %v1746 = vunpack.c.l.b16 %v1572
        %v1747 = vunpack.c.l.b16 %v1573
        %v1748 = vunpack.c.l.b16 %v1574
        %v1749 = vunpack.c.l.b16 %v1575
        %v1750 = vunpack.c.l.b16 %v1576
        %v1751 = vpack.c.b16 %v1736, %v1735
        %v1752 = vpack.c.b16 %v1738, %v1737
        %v1753 = vpack.c.b16 %v1740, %v1739
        %v1754 = vpack.c.b16 %v1742, %v1741
        %v1755 = vpack.c.b16 %v1744, %v1743
        %v1756 = vpack.c.b16 %v1746, %v1745
        %v1757 = vpack.c.b16 %v1748, %v1747
        %v1758 = vpack.c.b16 %v1750, %v1749
        %1767 = vmatprep.subr.bf16.mxu0 0
        %1768 = vmatpush1.bf16.msra.mxu0 %v1751
        %1769 = vmatprep.subr.bf16.mxu0 0
        %1770 = vmatpush1.bf16.msra.mxu0 %v1752
        %1771 = vmatprep.subr.bf16.mxu0 0
        %1772 = vmatpush1.bf16.msra.mxu0 %v1753
        %1773 = vmatprep.subr.bf16.mxu0 0
        %1774 = vmatpush1.bf16.msra.mxu0 %v1754
        %1775 = vmatprep.subr.bf16.mxu0 0
        %1776 = vmatpush1.bf16.msra.mxu0 %v1755
        %1777 = vmatprep.subr.bf16.mxu0 0
        %1778 = vmatpush1.bf16.msra.mxu0 %v1756
        %1779 = vmatprep.subr.bf16.mxu0 0
        %1780 = vmatpush1.bf16.msra.mxu0 %v1757
        %1781 = vmatprep.subr.bf16.mxu0 0
        %1782 = vmatpush1.bf16.msra.mxu0 %v1758
        %1783 = vmatprep.subr.bf16.mxu0 0
        %1784 = vmatpush1.bf16.msra.mxu0 0
        %1785 = vmatprep.subr.bf16.mxu0 0
        %1786 = vmatpush1.bf16.msra.mxu0 0
        %1787 = vmatprep.subr.bf16.mxu0 0
        %1788 = vmatpush1.bf16.msra.mxu0 0
        %1789 = vmatprep.subr.bf16.mxu0 0
        %1790 = vmatpush1.bf16.msra.mxu0 0
        %1791 = vmatprep.subr.bf16.mxu0 0
        %1792 = vmatpush1.bf16.msra.mxu0 0
        %1793 = vmatprep.subr.bf16.mxu0 0
        %1794 = vmatpush1.bf16.msra.mxu0 0
        %1795 = vmatprep.subr.bf16.mxu0 0
        %1796 = vmatpush1.bf16.msra.mxu0 0
        %1797 = vmatprep.subr.bf16.mxu0 0
        %1798 = vmatpush1.bf16.msra.mxu0 0
        %1799 = vmatprep.mubr.bf16.mxu0 0
        %1800 = vmatmul.mubr.bf16.gmra.mrb[0].mxu0 %v1621
        %v1801 = vpop.f32.mrb[0].mxu0
        %v1802 = vadd.f32 %v1718, %v1801
        %v1803 = vpop.f32.mrb[0].mxu0
        %v1804 = vpop.f32.mrb[0].mxu0
        %v1805 = vadd.f32 %v1718, %v1804
        %v1806 = vpop.f32.mrb[0].mxu0
        %1807 = vdwg.mxu0
        %v1808 = vlaneseq
        %v1809 = vshrl.u32 %v1808, 7
        %v1810 = vsub.s32 0, %v1809
        %v1811 = vrot.slane %v1614, %v1810
        %v1828 = vunpack.c.l.b16 %v1578
        %v1829 = vunpack.c.l.b16 %v1579
        %v1830 = vunpack.c.l.b16 %v1580
        %v1831 = vunpack.c.l.b16 %v1581
        %v1832 = vunpack.c.l.b16 %v1582
        %v1833 = vunpack.c.l.b16 %v1583
        %v1834 = vunpack.c.l.b16 %v1584
        %v1835 = vunpack.c.l.b16 %v1585
        %v1836 = vunpack.c.l.b16 %v1586
        %v1837 = vunpack.c.l.b16 %v1587
        %v1838 = vunpack.c.l.b16 %v1588
        %v1839 = vunpack.c.l.b16 %v1589
        %v1840 = vunpack.c.l.b16 %v1590
        %v1841 = vunpack.c.l.b16 %v1591
        %v1842 = vunpack.c.l.b16 %v1592
        %v1843 = vunpack.c.l.b16 %v1593
        %v1844 = vpack.c.b16 %v1829, %v1828
        %v1845 = vpack.c.b16 %v1831, %v1830
        %v1846 = vpack.c.b16 %v1833, %v1832
        %v1847 = vpack.c.b16 %v1835, %v1834
        %v1848 = vpack.c.b16 %v1837, %v1836
        %v1849 = vpack.c.b16 %v1839, %v1838
        %v1850 = vpack.c.b16 %v1841, %v1840
        %v1851 = vpack.c.b16 %v1843, %v1842
        %1860 = vmatprep.subr.bf16.mxu0 0
        %1861 = vmatpush1.bf16.msra.mxu0 %v1844
        %1862 = vmatprep.subr.bf16.mxu0 0
        %1863 = vmatpush1.bf16.msra.mxu0 %v1845
        %1864 = vmatprep.subr.bf16.mxu0 0
        %1865 = vmatpush1.bf16.msra.mxu0 %v1846
        %1866 = vmatprep.subr.bf16.mxu0 0
        %1867 = vmatpush1.bf16.msra.mxu0 %v1847
        %1868 = vmatprep.subr.bf16.mxu0 0
        %1869 = vmatpush1.bf16.msra.mxu0 %v1848
        %1870 = vmatprep.subr.bf16.mxu0 0
        %1871 = vmatpush1.bf16.msra.mxu0 %v1849
        %1872 = vmatprep.subr.bf16.mxu0 0
        %1873 = vmatpush1.bf16.msra.mxu0 %v1850
        %1874 = vmatprep.subr.bf16.mxu0 0
        %1875 = vmatpush1.bf16.msra.mxu0 %v1851
        %1876 = vmatprep.subr.bf16.mxu0 0
        %1877 = vmatpush1.bf16.msra.mxu0 0
        %1878 = vmatprep.subr.bf16.mxu0 0
        %1879 = vmatpush1.bf16.msra.mxu0 0
        %1880 = vmatprep.subr.bf16.mxu0 0
        %1881 = vmatpush1.bf16.msra.mxu0 0
        %1882 = vmatprep.subr.bf16.mxu0 0
        %1883 = vmatpush1.bf16.msra.mxu0 0
        %1884 = vmatprep.subr.bf16.mxu0 0
        %1885 = vmatpush1.bf16.msra.mxu0 0
        %1886 = vmatprep.subr.bf16.mxu0 0
        %1887 = vmatpush1.bf16.msra.mxu0 0
        %1888 = vmatprep.subr.bf16.mxu0 0
        %1889 = vmatpush1.bf16.msra.mxu0 0
        %1890 = vmatprep.subr.bf16.mxu0 0
        %1891 = vmatpush1.bf16.msra.mxu0 0
        %1892 = vmatprep.mubr.bf16.mxu0 0
        %1893 = vmatmul.mubr.bf16.gmra.mrb[0].mxu0 %v1621
        %v1894 = vpop.f32.mrb[0].mxu0
        %v1895 = vadd.f32 %v1811, %v1894
        %v1896 = vpop.f32.mrb[0].mxu0
        %v1897 = vpop.f32.mrb[0].mxu0
        %v1898 = vadd.f32 %v1811, %v1897
        %v1899 = vpop.f32.mrb[0].mxu0
        %1900 = vdwg.mxu0
        %v1901 = vpack.c.bf16 %v1709, %v1709
        %v1902 = vpack.c.bf16 %v1712, %v1712
        %v1903 = vpack.c.bf16 %v1802, %v1802
        %v1904 = vpack.c.bf16 %v1805, %v1805
        %v1905 = vpack.c.bf16 %v1895, %v1895
        %v1906 = vpack.c.bf16 %v1898, %v1898
        %1907 = vmatprep.subr.bf16.mxu0 0
        %1908 = vmatpush1.bf16.xpose.msra.mxu0 %v1903
        %1909 = vmatprep.subr.bf16.mxu0 0
        %1910 = vmatpush1.bf16.xpose.msra.mxu0 0
        %1911 = vmatprep.subr.bf16.mxu0 0
        %1912 = vmatpush1.bf16.xpose.msra.mxu0 0
        %1913 = vmatprep.subr.bf16.mxu0 0
        %1914 = vmatpush1.bf16.xpose.msra.mxu0 0
        %1915 = vmatprep.subr.bf16.mxu0 0
        %1916 = vmatpush1.bf16.xpose.msra.mxu0 0
        %1917 = vmatprep.subr.bf16.mxu0 0
        %1918 = vmatpush1.bf16.xpose.msra.mxu0 0
        %1919 = vmatprep.subr.bf16.mxu0 0
        %1920 = vmatpush1.bf16.xpose.msra.mxu0 0
        %1921 = vmatprep.subr.bf16.mxu0 0
        %1922 = vmatpush1.bf16.xpose.msra.mxu0 0
        %1923 = vmatprep.subr.bf16.mxu0 0
        %1924 = vmatpush1.bf16.xpose.msra.mxu0 0
        %1925 = vmatprep.subr.bf16.mxu0 0
        %1926 = vmatpush1.bf16.xpose.msra.mxu0 0
        %1927 = vmatprep.subr.bf16.mxu0 0
        %1928 = vmatpush1.bf16.xpose.msra.mxu0 0
        %1929 = vmatprep.subr.bf16.mxu0 0
        %1930 = vmatpush1.bf16.xpose.msra.mxu0 0
        %1931 = vmatprep.subr.bf16.mxu0 0
        %1932 = vmatpush1.bf16.xpose.msra.mxu0 0
        %1933 = vmatprep.subr.bf16.mxu0 0
        %1934 = vmatpush1.bf16.xpose.msra.mxu0 0
        %1935 = vmatprep.subr.bf16.mxu0 0
        %1936 = vmatpush1.bf16.xpose.msra.mxu0 0
        %1937 = vmatprep.subr.bf16.mxu0 0
        %1938 = vmatpush1.bf16.xpose.msra.mxu0 0
        %1939 = vmatprep.mubr.bf16.mxu0 0
        %1940 = vmatmul.mubr.bf16.gmra.mrb[0].mxu0 %v1901
        %v1941 = vpop.f32.mrb[0].mxu0
        %v1942 = vadd.f32 0.0, %v1941
        %v1943 = vpop.f32.mrb[0].mxu0
        %v1944 = vpop.f32.mrb[0].mxu0
        %v1945 = vpop.f32.mrb[0].mxu0
        %1946 = vdwg.mxu0
        %1947 = vmatprep.subr.bf16.mxu0 0
        %1948 = vmatpush1.bf16.xpose.msra.mxu0 %v1904
        %1949 = vmatprep.subr.bf16.mxu0 0
        %1950 = vmatpush1.bf16.xpose.msra.mxu0 0
        %1951 = vmatprep.subr.bf16.mxu0 0
        %1952 = vmatpush1.bf16.xpose.msra.mxu0 0
        %1953 = vmatprep.subr.bf16.mxu0 0
        %1954 = vmatpush1.bf16.xpose.msra.mxu0 0
        %1955 = vmatprep.subr.bf16.mxu0 0
        %1956 = vmatpush1.bf16.xpose.msra.mxu0 0
        %1957 = vmatprep.subr.bf16.mxu0 0
        %1958 = vmatpush1.bf16.xpose.msra.mxu0 0
        %1959 = vmatprep.subr.bf16.mxu0 0
        %1960 = vmatpush1.bf16.xpose.msra.mxu0 0
        %1961 = vmatprep.subr.bf16.mxu0 0
        %1962 = vmatpush1.bf16.xpose.msra.mxu0 0
        %1963 = vmatprep.subr.bf16.mxu0 0
        %1964 = vmatpush1.bf16.xpose.msra.mxu0 0
        %1965 = vmatprep.subr.bf16.mxu0 0
        %1966 = vmatpush1.bf16.xpose.msra.mxu0 0
        %1967 = vmatprep.subr.bf16.mxu0 0
        %1968 = vmatpush1.bf16.xpose.msra.mxu0 0
        %1969 = vmatprep.subr.bf16.mxu0 0
        %1970 = vmatpush1.bf16.xpose.msra.mxu0 0
        %1971 = vmatprep.subr.bf16.mxu0 0
        %1972 = vmatpush1.bf16.xpose.msra.mxu0 0
        %1973 = vmatprep.subr.bf16.mxu0 0
        %1974 = vmatpush1.bf16.xpose.msra.mxu0 0
        %1975 = vmatprep.subr.bf16.mxu0 0
        %1976 = vmatpush1.bf16.xpose.msra.mxu0 0
        %1977 = vmatprep.subr.bf16.mxu0 0
        %1978 = vmatpush1.bf16.xpose.msra.mxu0 0
        %1979 = vmatprep.mubr.bf16.mxu0 0
        %1980 = vmatmul.mubr.bf16.gmra.mrb[0].mxu0 %v1902
        %v1981 = vpop.f32.mrb[0].mxu0
        %v1982 = vadd.f32 0.0, %v1981
        %v1983 = vpop.f32.mrb[0].mxu0
        %v1984 = vpop.f32.mrb[0].mxu0
        %v1985 = vpop.f32.mrb[0].mxu0
        %1986 = vdwg.mxu0
        %v1987 = vmul.f32 %v1942, 0.088388346
        %v1988 = vmul.f32 %v1982, 0.088388346
        %v1989 = vsel %vm895, %v1987, -inf
        %1990 = vmax.xlane.f32.xlu0 %v1989
        %v1991 = vpop.xlane.xlu0 %1990
        %v1992 = vsel %vm895, %v1988, -inf
        %1993 = vmax.xlane.f32.xlu0 %v1992
        %v1994 = vpop.xlane.xlu0 %1993
        %v1995 = vsub.f32 %v1987, %v1991
        %v1996 = vsub.f32 %v1988, %v1994
        %v1997 = vmul.f32 %v1995, 1.442695
        %v1998 = vpow.pop %v1997
        %v1999 = vmul.f32 %v1996, 1.442695
        %v2000 = vpow.pop %v1999
        %v2001 = vsel %vm895, %v1998, 0.0
        %2002 = vadd.xlane.f32.xlu0 %v2001
        %v2003 = vpop.xlane.xlu0 %2002
        %v2004 = vsel %vm895, %v2000, 0.0
        %2005 = vadd.xlane.f32.xlu0 %v2004
        %v2006 = vpop.xlane.xlu0 %2005
        %v2007 = vrcp.pop %v2003
        %v2008 = vmul.f32 %v1998, %v2007
        %v2009 = vrcp.pop %v2006
        %v2010 = vmul.f32 %v2000, %v2009
        %v2011 = vpack.c.bf16 %v2008, %v2008
        %v2012 = vpack.c.bf16 %v2010, %v2010
        %v2014 = vsel %vm895, %v2011, 0
        %v2017 = vsel %vm923, %v1905, 0
        %2019 = vmatprep.subr.bf16.mxu0 0
        %2020 = vmatpush1.bf16.msra.mxu0 %v2017
        %2021 = vmatprep.subr.bf16.mxu0 0
        %2022 = vmatpush1.bf16.msra.mxu0 0
        %2023 = vmatprep.subr.bf16.mxu0 0
        %2024 = vmatpush1.bf16.msra.mxu0 0
        %2025 = vmatprep.subr.bf16.mxu0 0
        %2026 = vmatpush1.bf16.msra.mxu0 0
        %2027 = vmatprep.subr.bf16.mxu0 0
        %2028 = vmatpush1.bf16.msra.mxu0 0
        %2029 = vmatprep.subr.bf16.mxu0 0
        %2030 = vmatpush1.bf16.msra.mxu0 0
        %2031 = vmatprep.subr.bf16.mxu0 0
        %2032 = vmatpush1.bf16.msra.mxu0 0
        %2033 = vmatprep.subr.bf16.mxu0 0
        %2034 = vmatpush1.bf16.msra.mxu0 0
        %2035 = vmatprep.subr.bf16.mxu0 0
        %2036 = vmatpush1.bf16.msra.mxu0 0
        %2037 = vmatprep.subr.bf16.mxu0 0
        %2038 = vmatpush1.bf16.msra.mxu0 0
        %2039 = vmatprep.subr.bf16.mxu0 0
        %2040 = vmatpush1.bf16.msra.mxu0 0
        %2041 = vmatprep.subr.bf16.mxu0 0
        %2042 = vmatpush1.bf16.msra.mxu0 0
        %2043 = vmatprep.subr.bf16.mxu0 0
        %2044 = vmatpush1.bf16.msra.mxu0 0
        %2045 = vmatprep.subr.bf16.mxu0 0
        %2046 = vmatpush1.bf16.msra.mxu0 0
        %2047 = vmatprep.subr.bf16.mxu0 0
        %2048 = vmatpush1.bf16.msra.mxu0 0
        %2049 = vmatprep.subr.bf16.mxu0 0
        %2050 = vmatpush1.bf16.msra.mxu0 0
        %2051 = vmatprep.mubr.bf16.mxu0 0
        %2052 = vmatmul.mubr.bf16.gmra.mrb[0].mxu0 %v2014
        %v2053 = vpop.f32.mrb[0].mxu0
        %v2054 = vadd.f32 0.0, %v2053
        %v2055 = vpop.f32.mrb[0].mxu0
        %v2056 = vpop.f32.mrb[0].mxu0
        %v2057 = vpop.f32.mrb[0].mxu0
        %2058 = vdwg.mxu0
        %v2060 = vsel %vm895, %v2012, 0
        %v2063 = vsel %vm923, %v1906, 0
        %2065 = vmatprep.subr.bf16.mxu0 0
        %2066 = vmatpush1.bf16.msra.mxu0 %v2063
        %2067 = vmatprep.subr.bf16.mxu0 0
        %2068 = vmatpush1.bf16.msra.mxu0 0
        %2069 = vmatprep.subr.bf16.mxu0 0
        %2070 = vmatpush1.bf16.msra.mxu0 0
        %2071 = vmatprep.subr.bf16.mxu0 0
        %2072 = vmatpush1.bf16.msra.mxu0 0
        %2073 = vmatprep.subr.bf16.mxu0 0
        %2074 = vmatpush1.bf16.msra.mxu0 0
        %2075 = vmatprep.subr.bf16.mxu0 0
        %2076 = vmatpush1.bf16.msra.mxu0 0
        %2077 = vmatprep.subr.bf16.mxu0 0
        %2078 = vmatpush1.bf16.msra.mxu0 0
        %2079 = vmatprep.subr.bf16.mxu0 0
        %2080 = vmatpush1.bf16.msra.mxu0 0
        %2081 = vmatprep.subr.bf16.mxu0 0
        %2082 = vmatpush1.bf16.msra.mxu0 0
        %2083 = vmatprep.subr.bf16.mxu0 0
        %2084 = vmatpush1.bf16.msra.mxu0 0
        %2085 = vmatprep.subr.bf16.mxu0 0
        %2086 = vmatpush1.bf16.msra.mxu0 0
        %2087 = vmatprep.subr.bf16.mxu0 0
        %2088 = vmatpush1.bf16.msra.mxu0 0
        %2089 = vmatprep.subr.bf16.mxu0 0
        %2090 = vmatpush1.bf16.msra.mxu0 0
        %2091 = vmatprep.subr.bf16.mxu0 0
        %2092 = vmatpush1.bf16.msra.mxu0 0
        %2093 = vmatprep.subr.bf16.mxu0 0
        %2094 = vmatpush1.bf16.msra.mxu0 0
        %2095 = vmatprep.subr.bf16.mxu0 0
        %2096 = vmatpush1.bf16.msra.mxu0 0
        %2097 = vmatprep.mubr.bf16.mxu0 0
        %2098 = vmatmul.mubr.bf16.gmra.mrb[0].mxu0 %v2060
        %v2099 = vpop.f32.mrb[0].mxu0
        %v2100 = vadd.f32 0.0, %v2099
        %v2101 = vpop.f32.mrb[0].mxu0
        %v2102 = vpop.f32.mrb[0].mxu0
        %v2103 = vpop.f32.mrb[0].mxu0
        %2104 = vdwg.mxu0
        %v2105 = vpack.c.bf16 %v2100, %v2054
        %v2106 = vlaneseq
        %v2107 = vshrl.u32 %v2106, 7
        %v2108 = vsub.s32 0, %v2107
        %v2109 = vrot.slane %v1615, %v2108
        %v2126 = vunpack.c.l.b16 %v1595
        %v2127 = vunpack.c.l.b16 %v1596
        %v2128 = vunpack.c.l.b16 %v1597
        %v2129 = vunpack.c.l.b16 %v1598
        %v2130 = vunpack.c.l.b16 %v1599
        %v2131 = vunpack.c.l.b16 %v1600
        %v2132 = vunpack.c.l.b16 %v1601
        %v2133 = vunpack.c.l.b16 %v1602
        %v2134 = vunpack.c.l.b16 %v1603
        %v2135 = vunpack.c.l.b16 %v1604
        %v2136 = vunpack.c.l.b16 %v1605
        %v2137 = vunpack.c.l.b16 %v1606
        %v2138 = vunpack.c.l.b16 %v1607
        %v2139 = vunpack.c.l.b16 %v1608
        %v2140 = vunpack.c.l.b16 %v1609
        %v2141 = vunpack.c.l.b16 %v1610
        %v2142 = vpack.c.b16 %v2127, %v2126
        %v2143 = vpack.c.b16 %v2129, %v2128
        %v2144 = vpack.c.b16 %v2131, %v2130
        %v2145 = vpack.c.b16 %v2133, %v2132
        %v2146 = vpack.c.b16 %v2135, %v2134
        %v2147 = vpack.c.b16 %v2137, %v2136
        %v2148 = vpack.c.b16 %v2139, %v2138
        %v2149 = vpack.c.b16 %v2141, %v2140
        %2158 = vmatprep.subr.bf16.mxu0 0
        %2159 = vmatpush1.bf16.msra.mxu0 %v2142
        %2160 = vmatprep.subr.bf16.mxu0 0
        %2161 = vmatpush1.bf16.msra.mxu0 %v2143
        %2162 = vmatprep.subr.bf16.mxu0 0
        %2163 = vmatpush1.bf16.msra.mxu0 %v2144
        %2164 = vmatprep.subr.bf16.mxu0 0
        %2165 = vmatpush1.bf16.msra.mxu0 %v2145
        %2166 = vmatprep.subr.bf16.mxu0 0
        %2167 = vmatpush1.bf16.msra.mxu0 %v2146
        %2168 = vmatprep.subr.bf16.mxu0 0
        %2169 = vmatpush1.bf16.msra.mxu0 %v2147
        %2170 = vmatprep.subr.bf16.mxu0 0
        %2171 = vmatpush1.bf16.msra.mxu0 %v2148
        %2172 = vmatprep.subr.bf16.mxu0 0
        %2173 = vmatpush1.bf16.msra.mxu0 %v2149
        %2174 = vmatprep.subr.bf16.mxu0 0
        %2175 = vmatpush1.bf16.msra.mxu0 0
        %2176 = vmatprep.subr.bf16.mxu0 0
        %2177 = vmatpush1.bf16.msra.mxu0 0
        %2178 = vmatprep.subr.bf16.mxu0 0
        %2179 = vmatpush1.bf16.msra.mxu0 0
        %2180 = vmatprep.subr.bf16.mxu0 0
        %2181 = vmatpush1.bf16.msra.mxu0 0
        %2182 = vmatprep.subr.bf16.mxu0 0
        %2183 = vmatpush1.bf16.msra.mxu0 0
        %2184 = vmatprep.subr.bf16.mxu0 0
        %2185 = vmatpush1.bf16.msra.mxu0 0
        %2186 = vmatprep.subr.bf16.mxu0 0
        %2187 = vmatpush1.bf16.msra.mxu0 0
        %2188 = vmatprep.subr.bf16.mxu0 0
        %2189 = vmatpush1.bf16.msra.mxu0 0
        %2190 = vmatprep.mubr.bf16.mxu0 0
        %2191 = vmatmul.mubr.bf16.gmra.mrb[0].mxu0 %v2105
        %v2192 = vpop.f32.mrb[0].mxu0
        %v2193 = vadd.f32 %v2109, %v2192
        %v2194 = vpop.f32.mrb[0].mxu0
        %v2195 = vpop.f32.mrb[0].mxu0
        %v2196 = vadd.f32 %v2109, %v2195
        %v2197 = vpop.f32.mrb[0].mxu0
        %2198 = vdwg.mxu0
        %v2199 = vadd.f32 %v1541, %v2193
        %v2200 = vadd.f32 %v1542, %v2196
        %2201 = vadd.xlane.f32.xlu0 %v2199
        %v2202 = vpop.xlane.xlu0 %2201
        %2203 = vadd.xlane.f32.xlu0 %v2200
        %v2204 = vpop.xlane.xlu0 %2203
        %v2205 = vmul.f32 %v2202, %v1113
        %v2206 = vmul.f32 %v2204, %v1113
        %v2207 = vsub.f32 %v2199, %v2205
        %v2208 = vsub.f32 %v2200, %v2206
        %v2209 = vmul.f32 %v2207, %v2207
        %v2210 = vmul.f32 %v2208, %v2208
        %2211 = vadd.xlane.f32.xlu0 %v2209
        %v2212 = vpop.xlane.xlu0 %2211
        %2213 = vadd.xlane.f32.xlu0 %v2210
        %v2214 = vpop.xlane.xlu0 %2213
        %v2215 = vmul.f32 %v2212, %v1113
        %v2216 = vmul.f32 %v2214, %v1113
        %v2217 = vadd.f32 %v2215, 1e-05
        %v2218 = vadd.f32 %v2216, 1e-05
        %v2219 = vrsqrt.pop %v2217
        %v2220 = vrsqrt.pop %v2218
        %v2221 = vmul.f32 %v2207, %v2219
        %v2222 = vmul.f32 %v2208, %v2220
        %v2223 = vlaneseq
        %v2224 = vshrl.u32 %v2223, 7
        %v2225 = vsub.s32 0, %v2224
        %v2226 = vrot.slane %v1617, %v2225
        %v2227 = vmul.f32 %v2221, %v2226
        %v2228 = vmul.f32 %v2222, %v2226
        %v2229 = vlaneseq
        %v2230 = vshrl.u32 %v2229, 7
        %v2231 = vsub.s32 0, %v2230
        %v2232 = vrot.slane %v1618, %v2231
        %v2233 = vadd.f32 %v2227, %v2232
        %v2234 = vadd.f32 %v2228, %v2232
        %v2235 = vpack.c.bf16 %v2234, %v2233
        %s2236 = scalar_lea.vmem %s362, 128 [#allocation5]
        %v2237 = vld [vmem:[%s2236] sm:$0xff]
        %v2238 = vld [vmem:[%s2236 + $0x8] sm:$0xff]
        %v2239 = vld [vmem:[%s2236 + $0x10] sm:$0xff]
        %v2240 = vld [vmem:[%s2236 + $0x18] sm:$0xff]
        %v2241 = vld [vmem:[%s2236 + $0x20] sm:$0xff]
        %v2242 = vld [vmem:[%s2236 + $0x28] sm:$0xff]
        %v2243 = vld [vmem:[%s2236 + $0x30] sm:$0xff]
        %v2244 = vld [vmem:[%s2236 + $0x38] sm:$0xff]
        %v2245 = vld [vmem:[%s2236 + $0x40] sm:$0xff]
        %v2246 = vld [vmem:[%s2236 + $0x48] sm:$0xff]
        %v2247 = vld [vmem:[%s2236 + $0x50] sm:$0xff]
        %v2248 = vld [vmem:[%s2236 + $0x58] sm:$0xff]
        %v2249 = vld [vmem:[%s2236 + $0x60] sm:$0xff]
        %v2250 = vld [vmem:[%s2236 + $0x68] sm:$0xff]
        %v2251 = vld [vmem:[%s2236 + $0x70] sm:$0xff]
        %v2252 = vld [vmem:[%s2236 + $0x78] sm:$0xff]
        %s2253 = scalar_lea.vmem %s438, 2
        %v2254 = vld [vmem:[%s2253] sm:$0x3]
        %v2256 = vlaneseq
        %v2257 = vshrl.u32 %v2256, 7
        %v2258 = vsub.s32 0, %v2257
        %v2259 = vrot.slane %v2254, %v2258
        %v2260 = vlaneseq
        %v2261 = vshrl.u32 %v2260, 7
        %v2262 = vsub.s32 1, %v2261
        %v2263 = vrot.slane %v2254, %v2262
        %v2282 = vunpack.c.l.b16 %v2237
        %v2283 = vunpack.c.h.b16 %v2237
        %v2284 = vunpack.c.l.b16 %v2238
        %v2285 = vunpack.c.h.b16 %v2238
        %v2286 = vunpack.c.l.b16 %v2239
        %v2287 = vunpack.c.h.b16 %v2239
        %v2288 = vunpack.c.l.b16 %v2240
        %v2289 = vunpack.c.h.b16 %v2240
        %v2290 = vunpack.c.l.b16 %v2241
        %v2291 = vunpack.c.h.b16 %v2241
        %v2292 = vunpack.c.l.b16 %v2242
        %v2293 = vunpack.c.h.b16 %v2242
        %v2294 = vunpack.c.l.b16 %v2243
        %v2295 = vunpack.c.h.b16 %v2243
        %v2296 = vunpack.c.l.b16 %v2244
        %v2297 = vunpack.c.h.b16 %v2244
        %v2298 = vunpack.c.l.b16 %v2245
        %v2299 = vunpack.c.h.b16 %v2245
        %v2300 = vunpack.c.l.b16 %v2246
        %v2301 = vunpack.c.h.b16 %v2246
        %v2302 = vunpack.c.l.b16 %v2247
        %v2303 = vunpack.c.h.b16 %v2247
        %v2304 = vunpack.c.l.b16 %v2248
        %v2305 = vunpack.c.h.b16 %v2248
        %v2306 = vunpack.c.l.b16 %v2249
        %v2307 = vunpack.c.h.b16 %v2249
        %v2308 = vunpack.c.l.b16 %v2250
        %v2309 = vunpack.c.h.b16 %v2250
        %v2310 = vunpack.c.l.b16 %v2251
        %v2311 = vunpack.c.h.b16 %v2251
        %v2312 = vunpack.c.l.b16 %v2252
        %v2313 = vunpack.c.h.b16 %v2252
        %v2314 = vpack.c.b16 %v2284, %v2282
        %v2315 = vpack.c.b16 %v2285, %v2283
        %v2316 = vpack.c.b16 %v2288, %v2286
        %v2317 = vpack.c.b16 %v2289, %v2287
        %v2318 = vpack.c.b16 %v2292, %v2290
        %v2319 = vpack.c.b16 %v2293, %v2291
        %v2320 = vpack.c.b16 %v2296, %v2294
        %v2321 = vpack.c.b16 %v2297, %v2295
        %v2322 = vpack.c.b16 %v2300, %v2298
        %v2323 = vpack.c.b16 %v2301, %v2299
        %v2324 = vpack.c.b16 %v2304, %v2302
        %v2325 = vpack.c.b16 %v2305, %v2303
        %v2326 = vpack.c.b16 %v2308, %v2306
        %v2327 = vpack.c.b16 %v2309, %v2307
        %v2328 = vpack.c.b16 %v2312, %v2310
        %v2329 = vpack.c.b16 %v2313, %v2311
        %2346 = vmatprep.subr.bf16.mxu0 %v2315
        %2347 = vmatpush1.bf16.msra.mxu0 %v2314
        %2348 = vmatprep.subr.bf16.mxu0 %v2317
        %2349 = vmatpush1.bf16.msra.mxu0 %v2316
        %2350 = vmatprep.subr.bf16.mxu0 %v2319
        %2351 = vmatpush1.bf16.msra.mxu0 %v2318
        %2352 = vmatprep.subr.bf16.mxu0 %v2321
        %2353 = vmatpush1.bf16.msra.mxu0 %v2320
        %2354 = vmatprep.subr.bf16.mxu0 %v2323
        %2355 = vmatpush1.bf16.msra.mxu0 %v2322
        %2356 = vmatprep.subr.bf16.mxu0 %v2325
        %2357 = vmatpush1.bf16.msra.mxu0 %v2324
        %2358 = vmatprep.subr.bf16.mxu0 %v2327
        %2359 = vmatpush1.bf16.msra.mxu0 %v2326
        %2360 = vmatprep.subr.bf16.mxu0 %v2329
        %2361 = vmatpush1.bf16.msra.mxu0 %v2328
        %2362 = vmatprep.subr.bf16.mxu0 0
        %2363 = vmatpush1.bf16.msra.mxu0 0
        %2364 = vmatprep.subr.bf16.mxu0 0
        %2365 = vmatpush1.bf16.msra.mxu0 0
        %2366 = vmatprep.subr.bf16.mxu0 0
        %2367 = vmatpush1.bf16.msra.mxu0 0
        %2368 = vmatprep.subr.bf16.mxu0 0
        %2369 = vmatpush1.bf16.msra.mxu0 0
        %2370 = vmatprep.subr.bf16.mxu0 0
        %2371 = vmatpush1.bf16.msra.mxu0 0
        %2372 = vmatprep.subr.bf16.mxu0 0
        %2373 = vmatpush1.bf16.msra.mxu0 0
        %2374 = vmatprep.subr.bf16.mxu0 0
        %2375 = vmatpush1.bf16.msra.mxu0 0
        %2376 = vmatprep.subr.bf16.mxu0 0
        %2377 = vmatpush1.bf16.msra.mxu0 0
        %2378 = vmatprep.mubr.bf16.mxu0 0
        %2379 = vmatmul.mubr.bf16.gmra.mrb[0].mxu0 %v2235
        %v2380 = vpop.f32.mrb[0].mxu0
        %v2381 = vadd.f32 %v2259, %v2380
        %v2382 = vpop.f32.mrb[0].mxu0
        %v2383 = vadd.f32 %v2263, %v2382
        %v2384 = vpop.f32.mrb[0].mxu0
        %v2385 = vadd.f32 %v2259, %v2384
        %v2386 = vpop.f32.mrb[0].mxu0
        %v2387 = vadd.f32 %v2263, %v2386
        %2388 = vdwg.mxu0
        %v2389 = vmul.f32 %v2381, %v2381
        %v2390 = vmul.f32 %v2383, %v2383
        %v2391 = vmul.f32 %v2385, %v2385
        %v2392 = vmul.f32 %v2387, %v2387
        %v2393 = vmul.f32 %v2381, %v2389
        %v2394 = vmul.f32 %v2383, %v2390
        %v2395 = vmul.f32 %v2385, %v2391
        %v2396 = vmul.f32 %v2387, %v2392
        %v2397 = vmul.f32 %v2393, 0.044715
        %v2398 = vmul.f32 %v2394, 0.044715
        %v2399 = vmul.f32 %v2395, 0.044715
        %v2400 = vmul.f32 %v2396, 0.044715
        %v2401 = vadd.f32 %v2381, %v2397
        %v2402 = vadd.f32 %v2383, %v2398
        %v2403 = vadd.f32 %v2385, %v2399
        %v2404 = vadd.f32 %v2387, %v2400
        %v2405 = vmul.f32 %v2401, 0.7978846
        %v2406 = vmul.f32 %v2402, 0.7978846
        %v2407 = vmul.f32 %v2403, 0.7978846
        %v2408 = vmul.f32 %v2404, 0.7978846
        %v2409 = vtanh.pop %v2405
        %v2410 = vtanh.pop %v2406
        %v2411 = vtanh.pop %v2407
        %v2412 = vtanh.pop %v2408
        %v2413 = vadd.f32 %v2409, 1.0
        %v2414 = vadd.f32 %v2410, 1.0
        %v2415 = vadd.f32 %v2411, 1.0
        %v2416 = vadd.f32 %v2412, 1.0
        %v2417 = vmul.f32 %v2413, 0.5
        %v2418 = vmul.f32 %v2414, 0.5
        %v2419 = vmul.f32 %v2415, 0.5
        %v2420 = vmul.f32 %v2416, 0.5
        %v2421 = vmul.f32 %v2381, %v2417
        %v2422 = vmul.f32 %v2383, %v2418
        %v2423 = vmul.f32 %v2385, %v2419
        %v2424 = vmul.f32 %v2387, %v2420
        %v2425 = vpack.c.bf16 %v2423, %v2421
        %v2426 = vpack.c.bf16 %v2424, %v2422
        %s2427 = scalar_lea.vmem %s371, 128 [#allocation7]
        %v2428 = vld [vmem:[%s2427] sm:$0xf]
        %v2429 = vld [vmem:[%s2427 + $0x4] sm:$0xf]
        %v2430 = vld [vmem:[%s2427 + $0x8] sm:$0xf]
        %v2431 = vld [vmem:[%s2427 + $0xc] sm:$0xf]
        %v2432 = vld [vmem:[%s2427 + $0x10] sm:$0xf]
        %v2433 = vld [vmem:[%s2427 + $0x14] sm:$0xf]
        %v2434 = vld [vmem:[%s2427 + $0x18] sm:$0xf]
        %v2435 = vld [vmem:[%s2427 + $0x1c] sm:$0xf]
        %v2436 = vld [vmem:[%s2427 + $0x20] sm:$0xf]
        %v2437 = vld [vmem:[%s2427 + $0x24] sm:$0xf]
        %v2438 = vld [vmem:[%s2427 + $0x28] sm:$0xf]
        %v2439 = vld [vmem:[%s2427 + $0x2c] sm:$0xf]
        %v2440 = vld [vmem:[%s2427 + $0x30] sm:$0xf]
        %v2441 = vld [vmem:[%s2427 + $0x34] sm:$0xf]
        %v2442 = vld [vmem:[%s2427 + $0x38] sm:$0xf]
        %v2443 = vld [vmem:[%s2427 + $0x3c] sm:$0xf]
        %v2444 = vld [vmem:[%s2427 + $0x40] sm:$0xf]
        %v2445 = vld [vmem:[%s2427 + $0x44] sm:$0xf]
        %v2446 = vld [vmem:[%s2427 + $0x48] sm:$0xf]
        %v2447 = vld [vmem:[%s2427 + $0x4c] sm:$0xf]
        %v2448 = vld [vmem:[%s2427 + $0x50] sm:$0xf]
        %v2449 = vld [vmem:[%s2427 + $0x54] sm:$0xf]
        %v2450 = vld [vmem:[%s2427 + $0x58] sm:$0xf]
        %v2451 = vld [vmem:[%s2427 + $0x5c] sm:$0xf]
        %v2452 = vld [vmem:[%s2427 + $0x60] sm:$0xf]
        %v2453 = vld [vmem:[%s2427 + $0x64] sm:$0xf]
        %v2454 = vld [vmem:[%s2427 + $0x68] sm:$0xf]
        %v2455 = vld [vmem:[%s2427 + $0x6c] sm:$0xf]
        %v2456 = vld [vmem:[%s2427 + $0x70] sm:$0xf]
        %v2457 = vld [vmem:[%s2427 + $0x74] sm:$0xf]
        %v2458 = vld [vmem:[%s2427 + $0x78] sm:$0xf]
        %v2459 = vld [vmem:[%s2427 + $0x7c] sm:$0xf]
        %v2460 = vlaneseq
        %v2461 = vshrl.u32 %v2460, 7
        %v2462 = vsub.s32 0, %v2461
        %v2463 = vrot.slane %v1616, %v2462
        %v2496 = vunpack.c.l.b16 %v2428
        %v2497 = vunpack.c.l.b16 %v2429
        %v2498 = vunpack.c.l.b16 %v2430
        %v2499 = vunpack.c.l.b16 %v2431
        %v2500 = vunpack.c.l.b16 %v2432
        %v2501 = vunpack.c.l.b16 %v2433
        %v2502 = vunpack.c.l.b16 %v2434
        %v2503 = vunpack.c.l.b16 %v2435
        %v2504 = vunpack.c.l.b16 %v2436
        %v2505 = vunpack.c.l.b16 %v2437
        %v2506 = vunpack.c.l.b16 %v2438
        %v2507 = vunpack.c.l.b16 %v2439
        %v2508 = vunpack.c.l.b16 %v2440
        %v2509 = vunpack.c.l.b16 %v2441
        %v2510 = vunpack.c.l.b16 %v2442
        %v2511 = vunpack.c.l.b16 %v2443
        %v2512 = vunpack.c.l.b16 %v2444
        %v2513 = vunpack.c.l.b16 %v2445
        %v2514 = vunpack.c.l.b16 %v2446
        %v2515 = vunpack.c.l.b16 %v2447
        %v2516 = vunpack.c.l.b16 %v2448
        %v2517 = vunpack.c.l.b16 %v2449
        %v2518 = vunpack.c.l.b16 %v2450
        %v2519 = vunpack.c.l.b16 %v2451
        %v2520 = vunpack.c.l.b16 %v2452
        %v2521 = vunpack.c.l.b16 %v2453
        %v2522 = vunpack.c.l.b16 %v2454
        %v2523 = vunpack.c.l.b16 %v2455
        %v2524 = vunpack.c.l.b16 %v2456
        %v2525 = vunpack.c.l.b16 %v2457
        %v2526 = vunpack.c.l.b16 %v2458
        %v2527 = vunpack.c.l.b16 %v2459
        %v2528 = vpack.c.b16 %v2497, %v2496
        %v2529 = vpack.c.b16 %v2499, %v2498
        %v2530 = vpack.c.b16 %v2501, %v2500
        %v2531 = vpack.c.b16 %v2503, %v2502
        %v2532 = vpack.c.b16 %v2505, %v2504
        %v2533 = vpack.c.b16 %v2507, %v2506
        %v2534 = vpack.c.b16 %v2509, %v2508
        %v2535 = vpack.c.b16 %v2511, %v2510
        %v2536 = vpack.c.b16 %v2513, %v2512
        %v2537 = vpack.c.b16 %v2515, %v2514
        %v2538 = vpack.c.b16 %v2517, %v2516
        %v2539 = vpack.c.b16 %v2519, %v2518
        %v2540 = vpack.c.b16 %v2521, %v2520
        %v2541 = vpack.c.b16 %v2523, %v2522
        %v2542 = vpack.c.b16 %v2525, %v2524
        %v2543 = vpack.c.b16 %v2527, %v2526
        %2560 = vmatprep.subr.bf16.mxu0 0
        %2561 = vmatpush1.bf16.msra.mxu0 %v2528
        %2562 = vmatprep.subr.bf16.mxu0 0
        %2563 = vmatpush1.bf16.msra.mxu0 %v2529
        %2564 = vmatprep.subr.bf16.mxu0 0
        %2565 = vmatpush1.bf16.msra.mxu0 %v2530
        %2566 = vmatprep.subr.bf16.mxu0 0
        %2567 = vmatpush1.bf16.msra.mxu0 %v2531
        %2568 = vmatprep.subr.bf16.mxu0 0
        %2569 = vmatpush1.bf16.msra.mxu0 %v2532
        %2570 = vmatprep.subr.bf16.mxu0 0
        %2571 = vmatpush1.bf16.msra.mxu0 %v2533
        %2572 = vmatprep.subr.bf16.mxu0 0
        %2573 = vmatpush1.bf16.msra.mxu0 %v2534
        %2574 = vmatprep.subr.bf16.mxu0 0
        %2575 = vmatpush1.bf16.msra.mxu0 %v2535
        %2576 = vmatprep.subr.bf16.mxu0 0
        %2577 = vmatpush1.bf16.msra.mxu0 %v2536
        %2578 = vmatprep.subr.bf16.mxu0 0
        %2579 = vmatpush1.bf16.msra.mxu0 %v2537
        %2580 = vmatprep.subr.bf16.mxu0 0
        %2581 = vmatpush1.bf16.msra.mxu0 %v2538
        %2582 = vmatprep.subr.bf16.mxu0 0
        %2583 = vmatpush1.bf16.msra.mxu0 %v2539
        %2584 = vmatprep.subr.bf16.mxu0 0
        %2585 = vmatpush1.bf16.msra.mxu0 %v2540
        %2586 = vmatprep.subr.bf16.mxu0 0
        %2587 = vmatpush1.bf16.msra.mxu0 %v2541
        %2588 = vmatprep.subr.bf16.mxu0 0
        %2589 = vmatpush1.bf16.msra.mxu0 %v2542
        %2590 = vmatprep.subr.bf16.mxu0 0
        %2591 = vmatpush1.bf16.msra.mxu0 %v2543
        %2592 = vmatprep.mubr.bf16.mxu0 %v2426
        %2593 = vmatmul.mubr.bf16.gmra.mrb[0].mxu0 %v2425
        %v2594 = vpop.f32.mrb[0].mxu0
        %v2595 = vadd.f32 %v2463, %v2594
        %v2596 = vpop.f32.mrb[0].mxu0
        %v2597 = vpop.f32.mrb[0].mxu0
        %v2598 = vadd.f32 %v2463, %v2597
        %v2599 = vpop.f32.mrb[0].mxu0
        %2600 = vdwg.mxu0
        %v2601 = vadd.f32 %v2233, %v2595
        %v2602 = vadd.f32 %v2234, %v2598
        %2603 = vadd.xlane.f32.xlu0 %v2601
        %v2604 = vpop.xlane.xlu0 %2603
        %2605 = vadd.xlane.f32.xlu0 %v2602
        %v2606 = vpop.xlane.xlu0 %2605
        %v2607 = vmul.f32 %v2604, %v1113
        %v2608 = vmul.f32 %v2606, %v1113
        %v2609 = vsub.f32 %v2601, %v2607
        %v2610 = vsub.f32 %v2602, %v2608
        %v2611 = vmul.f32 %v2609, %v2609
        %v2612 = vmul.f32 %v2610, %v2610
        %2613 = vadd.xlane.f32.xlu0 %v2611
        %v2614 = vpop.xlane.xlu0 %2613
        %2615 = vadd.xlane.f32.xlu0 %v2612
        %v2616 = vpop.xlane.xlu0 %2615
        %v2617 = vmul.f32 %v2614, %v1113
        %v2618 = vmul.f32 %v2616, %v1113
        %v2619 = vadd.f32 %v2617, 1e-05
        %v2620 = vadd.f32 %v2618, 1e-05
        %v2621 = vrsqrt.pop %v2619
        %v2622 = vrsqrt.pop %v2620
        %v2623 = vmul.f32 %v2609, %v2621
        %v2624 = vmul.f32 %v2610, %v2622
        %v2625 = vlaneseq
        %v2626 = vshrl.u32 %v2625, 7
        %v2627 = vsub.s32 0, %v2626
        %v2628 = vrot.slane %v1619, %v2627
        %v2629 = vmul.f32 %v2623, %v2628
        %v2630 = vmul.f32 %v2624, %v2628
        %v2631 = vlaneseq
        %v2632 = vshrl.u32 %v2631, 7
        %v2633 = vsub.s32 0, %v2632
        %v2634 = vrot.slane %v1620, %v2633
        %v2635 = vadd.f32 %v2629, %v2634
        %v2636 = vadd.f32 %v2630, %v2634
        %v2637 = vrot.slane %v2635, 4
        %v2638 = vmax.f32 %v2635, %v2637
        %v2639 = vrot.slane %v2638, 2
        %v2640 = vmax.f32 %v2638, %v2639
        %v2641 = vrot.slane %v2640, 1
        %v2642 = vmax.f32 %v2640, %v2641
        %v2643 = vrot.slane %v2636, 4
        %v2644 = vmax.f32 %v2636, %v2643
        %v2645 = vrot.slane %v2644, 2
        %v2646 = vmax.f32 %v2644, %v2645
        %v2647 = vrot.slane %v2646, 1
        %v2648 = vmax.f32 %v2646, %v2647
        %v2649 = vld [vmem:[%s447] sm:$0x3]
        %vm2650 = vcmp.ge.u32.totalorder %v2649, 1288490188
        %v2651 = vmul.f32 %v2642, 1.4285715
        %v2652 = vmul.f32 %v2648, 1.4285715
        %vm2655 = vcmask 1041409
        %v2656 = vsel %vm2655, %v2652, %v2651
        %v2658 = vsel %vm2650, %v2656, 0.0
        %2659 = vst [vmem:[%s429] sm:$0x3] %v2658
        %s2660 = sand.u32 %s217, 1
        %s2661 = scalar_lea.sflag [#allocation4], %s2660
        %s2662 = sand.u32 %s217, 1
        %s2663 = smul.addr %s2662, 2
        %s2664 = scalar_lea.vmem [#allocation8], %s2663
        // Predicated region
        $region61: #{tpu_custom_call.1} parent=47 // pred_check
          %p2665 = pneg %p227
        $region62: #{tpu_custom_call.1} parent=47 // pred_check_branch
          %2667 = sbr.rel (%p2665) target = $region64
        $region63: #{tpu_custom_call.1} parent=47 // pred_region
          %s2669 = ssub.s32 32, 32
          %2670 = vsyncadd %s2661, %s2669
          %s2671 = smul.addr %s27, 32
          %s2672 = scalar_lea.hbm %s7, %s2671
          %s2674 = sshll.u32 %s2664, 4
          %s2675 = int_to_ptr.vmem [resolvable:$true] %s2674
          %2677 = dma.vmem_to_hbm [thread:$0]  %s2675, 32, %s2672, %s2661
        $region64: #{tpu_custom_call.1} parent=47 // pred_fallthru
          _
      $region48: #{tpu_custom_call.1} parent=5 // pred_fallthru
        _
      %p2678 = scmp.le.s32.totalorder 2, %s22
      // Predicated region
      $region65: #{tpu_custom_call.1} parent=5 // pred_check
        %p2679 = pneg %p2678
      $region66: #{tpu_custom_call.1} parent=5 // pred_check_branch
        %2681 = sbr.rel (%p2679) target = $region68
      $region67: #{tpu_custom_call.1} parent=5 // pred_region
        %s2682 = ssub.s32 %s22, 2
        // Predicated region
        $region69: #{tpu_custom_call.1} parent=67 // pred_check
          %p2683 = pneg %p233
        $region70: #{tpu_custom_call.1} parent=67 // pred_check_branch
          %2685 = sbr.rel (%p2683) target = $region72
        $region71: #{tpu_custom_call.1} parent=67 // pred_region
          %s2686 = sand.u32 %s218, 1
          %s2687 = scalar_lea.sflag [#allocation4], %s2686
          %s2688 = sand.u32 %s218, 1
          %s2689 = smul.addr %s2688, 2
          %s2690 = scalar_lea.vmem [#allocation8], %s2689
          %2691 = dma.done %s2687, 32
        $region72: #{tpu_custom_call.1} parent=67 // pred_fallthru
          _
      $region68: #{tpu_custom_call.1} parent=5 // pred_fallthru
        _
    $region6: #{tpu_custom_call.1} parent=1 // loop_footer
      %s26 = sadd.s32 1, %s22
    $region7: #{tpu_custom_call.1} parent=1 // loop_footer_branch
      %21 = sbr.rel target = $region3
    $region8: #{tpu_custom_call.1} parent=1 // loop_exit
      _
    %2692 = vsyncpa [#allocation3], 1
    %s2693 = scalar_lea.sflag [#allocation3], 1
    %2694 = vsyncpa %s2693, 1
    %2695 = vsyncpa [#allocation6], 1
    %s2696 = scalar_lea.sflag [#allocation6], 1
    %2697 = vsyncpa %s2696, 1
    %2698 = vsyncpa [#allocation4], 1
    %s2699 = scalar_lea.sflag [#allocation4], 1
    %2700 = vsyncpa %s2699, 1

</llo_original>
